<compile_context>
chip_gen: v7x
topology: tpu7x:2x2x1
jax: 0.10.0
libtpu: 0.0.40
codegen_flags: <defaults>
</compile_context>

<pallas_src>
import math
from functools import partial

import jax
import jax.numpy as jnp
from jax.experimental import pallas as pl
from jax.experimental.pallas import tpu as pltpu

# module constants (match the PyTorch script: K=20 categories, N=3 latents)
N_LAT = 3      # latent_dim
K_CAT = 20     # categorical_dim
TEMP = 1.0
HARD = False
EPS = 1e-10    # eps used by gumbel_softmax -> sample_gumbel in the reference

H1, H2, OUT = 256, 512, 2352
OUT_PAD = 2432            # 19 * 128, lane-aligned fc6 width


def _round_up(a, m):
    return (a + m - 1) // m * m


def _grouped_softmax(v, masks):
    """Softmax over each contiguous K_CAT-wide lane group of v (TB, N*K)."""
    m = None
    for msk in masks:
        gm = jnp.max(jnp.where(msk, v, jnp.float32(-1e30)), axis=-1, keepdims=True)
        m = gm if m is None else jnp.where(msk, gm, m)
    e = jnp.exp(v - m)
    s = None
    for msk in masks:
        gs = jnp.sum(jnp.where(msk, e, 0.0), axis=-1, keepdims=True)
        s = gs if s is None else jnp.where(msk, gs, s)
    return e * pl.reciprocal(s, approx=True)


def decoder_kernel(x_ref, g_ref, w4_ref, b4_ref, w5_ref, b5_ref, w6_ref, b6_ref,
                   out_ref, qy_ref, *, inv_temp):
    """One batch tile: gumbel-softmax(z), softmax(q_y), 3-layer MLP."""
    x = x_ref[...].astype(jnp.float32)   # (TB, N*K) logits
    g = g_ref[...].astype(jnp.float32)   # (TB, N*K) gumbel noise

    # lane-group masks for the N contiguous K-wide categorical groups
    lane = jax.lax.broadcasted_iota(jnp.int32, x.shape, 1)
    masks = [(lane >= n * K_CAT) & (lane < (n + 1) * K_CAT) for n in range(N_LAT)]

    # gumbel-softmax sample (soft) and plain softmax(q_y), both per group
    z = _grouped_softmax((x + g) * inv_temp, masks)      # (TB, N*K)
    qy_ref[...] = _grouped_softmax(x, masks)
    # TODO(synk): hard=True straight-through (argmax one-hot) branch not implemented;
    #             the reference script calls forward with hard=False.

    # fc4 -> relu -> fc5 -> relu -> fc6 -> sigmoid
    # bf16 operands on the MXU, f32 accumulation.
    h4 = jnp.maximum(
        jnp.dot(z.astype(jnp.bfloat16), w4_ref[...],
                preferred_element_type=jnp.float32) + b4_ref[...], 0.0)
    h5 = jnp.maximum(
        jnp.dot(h4.astype(jnp.bfloat16), w5_ref[...],
                preferred_element_type=jnp.float32) + b5_ref[...], 0.0)
    o = jnp.dot(h5.astype(jnp.bfloat16), w6_ref[...],
                preferred_element_type=jnp.float32) + b6_ref[...]
    out_ref[...] = pl.reciprocal(1.0 + jnp.exp(-o), approx=True)


def discrete_decoder_forward(x, params, gumbel_noise, temp=TEMP, hard=HARD,
                             tile_b=256):
    """Equivalent of DiscreteDecoder.forward(x, temp, hard) (hard=False path)."""
    if hard:
        raise NotImplementedError("hard=True straight-through path not implemented")
    bs, nk = x.shape
    assert nk == N_LAT * K_CAT
    w4, b4, w5, b5, w6, b6 = params

    # ---- batch tiling: clamp tile for tiny batches, zero-pad ragged batches ----
    tb = max(8, min(int(tile_b), _round_up(bs, 8)))
    tb = _round_up(tb, 8)
    pad_bs = _round_up(bs, tb)
    if pad_bs != bs:
        pad = pad_bs - bs
        x = jnp.pad(x, ((0, pad), (0, 0)))
        gumbel_noise = jnp.pad(gumbel_noise, ((0, pad), (0, 0)))

    # ---- weights: bf16, fc6 padded to a lane-aligned width ----
    w4b = w4.astype(jnp.bfloat16)
    w5b = w5.astype(jnp.bfloat16)
    w6b = jnp.pad(w6, ((0, 0), (0, OUT_PAD - OUT))).astype(jnp.bfloat16)
    b6p = jnp.pad(b6, ((0, 0), (0, OUT_PAD - OUT)))

    kernel = partial(decoder_kernel, inv_temp=float(1.0 / temp))
    out, qy = pl.pallas_call(
        kernel,
        out_shape=(jax.ShapeDtypeStruct((pad_bs, OUT_PAD), jnp.float32),
                   jax.ShapeDtypeStruct((pad_bs, nk), jnp.float32)),
        grid_spec=pltpu.PrefetchScalarGridSpec(
            num_scalar_prefetch=0,
            grid=(pad_bs // tb,),
            in_specs=[
                pl.BlockSpec((tb, nk),       lambda i: (i, 0)),   # x
                pl.BlockSpec((tb, nk),       lambda i: (i, 0)),   # gumbel noise
                pl.BlockSpec((nk, H1),       lambda i: (0, 0)),   # W4 (bf16)
                pl.BlockSpec((1, H1),        lambda i: (0, 0)),   # b4
                pl.BlockSpec((H1, H2),       lambda i: (0, 0)),   # W5 (bf16)
                pl.BlockSpec((1, H2),        lambda i: (0, 0)),   # b5
                pl.BlockSpec((H2, OUT_PAD),  lambda i: (0, 0)),   # W6 (bf16, padded)
                pl.BlockSpec((1, OUT_PAD),   lambda i: (0, 0)),   # b6 (padded)
            ],
            out_specs=[
                pl.BlockSpec((tb, OUT_PAD),  lambda i: (i, 0)),   # sigmoid(fc6(...))
                pl.BlockSpec((tb, nk),       lambda i: (i, 0)),   # softmax(q_y)
            ],
        ),
        compiler_params=pltpu.CompilerParams(
            dimension_semantics=("parallel",),
            vmem_limit_bytes=32 * 1024 * 1024),
    )(x, gumbel_noise, w4b, b4, w5b, b5, w6b, b6p)

    # strip batch / lane padding; (bs, N*K) -> (bs*N, K) like the PyTorch reshape
    recon = out[:bs, :OUT]
    qy_soft = qy[:bs].reshape(bs * N_LAT, K_CAT)
    return recon, qy_soft


def _reference_forward(x, params, gumbel, temp):
    """Pure-JAX f32 reference of DiscreteDecoder.forward (hard=False)."""
    w4, b4, w5, b5, w6, b6 = params
    bs = x.shape[0]
    logits = x.reshape(bs * N_LAT, K_CAT)
    noise = gumbel.reshape(bs * N_LAT, K_CAT)
    z = jax.nn.softmax((logits + noise) / temp, axis=-1).reshape(bs, N_LAT * K_CAT)
    h4 = jax.nn.relu(z @ w4 + b4)
    h5 = jax.nn.relu(h4 @ w5 + b5)
    recon = jax.nn.sigmoid(h5 @ w6 + b6)
    qy = jax.nn.softmax(logits, axis=-1)
    return recon, qy


def _linear_init(kw, kb, fan_in, fan_out):
    """Deterministic PyTorch-style Linear init; weight stored as (fan_in, fan_out)."""
    bound = 1.0 / math.sqrt(fan_in)
    w = jax.random.uniform(kw, (fan_in, fan_out), jnp.float32, -bound, bound)
    b = jax.random.uniform(kb, (1, fan_out), jnp.float32, -bound, bound)
    return w, b


if __name__ == "__main__":
    key = jax.random.PRNGKey(0)
    bs = 20                                  # small demo batch (ragged on purpose)
    k_x, k_u, k4w, k4b, k5w, k5b, k6w, k6b = jax.random.split(key, 8)

    # input logits x: (bs, N*K)
    x = jax.random.normal(k_x, (bs, N_LAT * K_CAT), jnp.float32)

    # sample_gumbel: U ~ Uniform(0,1); g = -log(eps - log(U + eps)), eps=1e-10
    U = jax.random.uniform(k_u, (bs, N_LAT * K_CAT), jnp.float32)
    gumbel = -jnp.log(EPS - jnp.log(U + EPS))

    # deterministic parameters (shapes from __init__: 60 -> 256 -> 512 -> 2352)
    w4, b4 = _linear_init(k4w, k4b, N_LAT * K_CAT, H1)
    w5, b5 = _linear_init(k5w, k5b, H1, H2)
    w6, b6 = _linear_init(k6w, k6b, H2, OUT)
    params = (w4, b4, w5, b5, w6, b6)

    # small tile_b in the demo so the grid has multiple steps + batch padding path
    recon, qy_soft = discrete_decoder_forward(
        x, params, gumbel, temp=TEMP, hard=HARD, tile_b=8)
    jax.block_until_ready((recon, qy_soft))

    assert recon.shape == (bs, OUT)
    assert qy_soft.shape == (bs * N_LAT, K_CAT)

    # f32 reference check (loose tolerance: bf16 weights/activations + approx recip)
    ref_recon, ref_qy = _reference_forward(x, params, gumbel, TEMP)
    assert float(jnp.max(jnp.abs(recon - ref_recon))) < 5e-2
    assert float(jnp.max(jnp.abs(qy_soft - ref_qy))) < 5e-2
    print("KERNEL_OK")
</pallas_src>

<mosaic_0001>
module attributes {stable_mosaic.version = 11 : i64} {
  func.func @decoder_kernel(%arg0: i32, %arg1: memref<8x60xf32, #tpu.memory_space<vmem>>, %arg2: memref<8x60xf32, #tpu.memory_space<vmem>>, %arg3: memref<60x256xbf16, #tpu.memory_space<vmem>>, %arg4: memref<1x256xf32, #tpu.memory_space<vmem>>, %arg5: memref<256x512xbf16, #tpu.memory_space<vmem>>, %arg6: memref<1x512xf32, #tpu.memory_space<vmem>>, %arg7: memref<512x2432xbf16, #tpu.memory_space<vmem>>, %arg8: memref<1x2432xf32, #tpu.memory_space<vmem>>, %arg9: memref<8x2432xf32, #tpu.memory_space<vmem>>, %arg10: memref<8x60xf32, #tpu.memory_space<vmem>>) attributes {dimension_semantics = [#tpu.dimension_semantics<parallel>], iteration_bounds = array<i64: 3>, scalar_prefetch = 0 : i64, scratch_operands = 0 : i64, tpu.core_type = #tpu.core_type<tc>, window_params = [{transform_indices = @transform_0, window_bounds = array<i64: 8, 60>}, {transform_indices = @transform_1, window_bounds = array<i64: 8, 60>}, {pipeline_mode = #tpu.pipeline_mode<synchronous>, transform_indices = @transform_2, window_bounds = array<i64: 60, 256>}, {pipeline_mode = #tpu.pipeline_mode<synchronous>, transform_indices = @transform_3, window_bounds = array<i64: 1, 256>}, {pipeline_mode = #tpu.pipeline_mode<synchronous>, transform_indices = @transform_4, window_bounds = array<i64: 256, 512>}, {pipeline_mode = #tpu.pipeline_mode<synchronous>, transform_indices = @transform_5, window_bounds = array<i64: 1, 512>}, {pipeline_mode = #tpu.pipeline_mode<synchronous>, transform_indices = @transform_6, window_bounds = array<i64: 512, 2432>}, {pipeline_mode = #tpu.pipeline_mode<synchronous>, transform_indices = @transform_7, window_bounds = array<i64: 1, 2432>}, {transform_indices = @transform_8, window_bounds = array<i64: 8, 2432>}, {transform_indices = @transform_9, window_bounds = array<i64: 8, 60>}]} {
    %c0 = arith.constant 0 : index
    %c0_0 = arith.constant 0 : index
    %0 = vector.load %arg1[%c0, %c0_0] : memref<8x60xf32, #tpu.memory_space<vmem>>, vector<8x60xf32>
    %c0_1 = arith.constant 0 : index
    %c0_2 = arith.constant 0 : index
    %1 = vector.load %arg2[%c0_1, %c0_2] : memref<8x60xf32, #tpu.memory_space<vmem>>, vector<8x60xf32>
    %2 = tpu.iota {dimensions = array<i32: 1>} : vector<8x60xi32>
    %c0_i32 = arith.constant 0 : i32
    %3 = vector.broadcast %c0_i32 : i32 to vector<8x60xi32>
    %4 = arith.cmpi sge, %2, %3 : vector<8x60xi32>
    %c20_i32 = arith.constant 20 : i32
    %5 = vector.broadcast %c20_i32 : i32 to vector<8x60xi32>
    %6 = arith.cmpi slt, %2, %5 : vector<8x60xi32>
    %7 = arith.andi %4, %6 : vector<8x60xi1>
    %c20_i32_3 = arith.constant 20 : i32
    %8 = vector.broadcast %c20_i32_3 : i32 to vector<8x60xi32>
    %9 = arith.cmpi sge, %2, %8 : vector<8x60xi32>
    %c40_i32 = arith.constant 40 : i32
    %10 = vector.broadcast %c40_i32 : i32 to vector<8x60xi32>
    %11 = arith.cmpi slt, %2, %10 : vector<8x60xi32>
    %12 = arith.andi %9, %11 : vector<8x60xi1>
    %c40_i32_4 = arith.constant 40 : i32
    %13 = vector.broadcast %c40_i32_4 : i32 to vector<8x60xi32>
    %14 = arith.cmpi sge, %2, %13 : vector<8x60xi32>
    %c60_i32 = arith.constant 60 : i32
    %15 = vector.broadcast %c60_i32 : i32 to vector<8x60xi32>
    %16 = arith.cmpi slt, %2, %15 : vector<8x60xi32>
    %17 = arith.andi %14, %16 : vector<8x60xi1>
    %18 = arith.addf %0, %1 : vector<8x60xf32>
    %cst = arith.constant 1.000000e+00 : f32
    %19 = vector.broadcast %cst : f32 to vector<8x60xf32>
    %20 = arith.mulf %18, %19 : vector<8x60xf32>
    %cst_5 = arith.constant -1.000000e+30 : f32
    %21 = vector.broadcast %cst_5 : f32 to vector<8x60xf32>
    %22 = arith.select %7, %20, %21 : vector<8x60xi1>, vector<8x60xf32>
    %cst_6 = arith.constant dense<0xFF800000> : vector<8xf32>
    %23 = vector.multi_reduction <maximumf>, %22, %cst_6 [1] : vector<8x60xf32> to vector<8xf32>
    %24 = vector.shape_cast %23 : vector<8xf32> to vector<8x1xf32>
    %cst_7 = arith.constant -1.000000e+30 : f32
    %25 = vector.broadcast %cst_7 : f32 to vector<8x60xf32>
    %26 = arith.select %12, %20, %25 : vector<8x60xi1>, vector<8x60xf32>
    %cst_8 = arith.constant dense<0xFF800000> : vector<8xf32>
    %27 = vector.multi_reduction <maximumf>, %26, %cst_8 [1] : vector<8x60xf32> to vector<8xf32>
    %28 = vector.shape_cast %27 : vector<8xf32> to vector<8x1xf32>
    %29 = vector.shape_cast %28 : vector<8x1xf32> to vector<8x1xf32>
    %30 = vector.broadcast %29 : vector<8x1xf32> to vector<8x60xf32>
    %31 = vector.shape_cast %24 : vector<8x1xf32> to vector<8x1xf32>
    %32 = vector.broadcast %31 : vector<8x1xf32> to vector<8x60xf32>
    %33 = arith.select %12, %30, %32 : vector<8x60xi1>, vector<8x60xf32>
    %cst_9 = arith.constant -1.000000e+30 : f32
    %34 = vector.broadcast %cst_9 : f32 to vector<8x60xf32>
    %35 = arith.select %17, %20, %34 : vector<8x60xi1>, vector<8x60xf32>
    %cst_10 = arith.constant dense<0xFF800000> : vector<8xf32>
    %36 = vector.multi_reduction <maximumf>, %35, %cst_10 [1] : vector<8x60xf32> to vector<8xf32>
    %37 = vector.shape_cast %36 : vector<8xf32> to vector<8x1xf32>
    %38 = vector.shape_cast %37 : vector<8x1xf32> to vector<8x1xf32>
    %39 = vector.broadcast %38 : vector<8x1xf32> to vector<8x60xf32>
    %40 = arith.select %17, %39, %33 : vector<8x60xi1>, vector<8x60xf32>
    %41 = arith.subf %20, %40 : vector<8x60xf32>
    %42 = math.exp %41 : vector<8x60xf32>
    %cst_11 = arith.constant 0.000000e+00 : f32
    %43 = vector.broadcast %cst_11 : f32 to vector<8x60xf32>
    %44 = arith.select %7, %42, %43 : vector<8x60xi1>, vector<8x60xf32>
    %cst_12 = arith.constant dense<0.000000e+00> : vector<8xf32>
    %45 = vector.multi_reduction <add>, %44, %cst_12 [1] : vector<8x60xf32> to vector<8xf32>
    %46 = vector.shape_cast %45 : vector<8xf32> to vector<8x1xf32>
    %cst_13 = arith.constant 0.000000e+00 : f32
    %47 = vector.broadcast %cst_13 : f32 to vector<8x60xf32>
    %48 = arith.select %12, %42, %47 : vector<8x60xi1>, vector<8x60xf32>
    %cst_14 = arith.constant dense<0.000000e+00> : vector<8xf32>
    %49 = vector.multi_reduction <add>, %48, %cst_14 [1] : vector<8x60xf32> to vector<8xf32>
    %50 = vector.shape_cast %49 : vector<8xf32> to vector<8x1xf32>
    %51 = vector.shape_cast %50 : vector<8x1xf32> to vector<8x1xf32>
    %52 = vector.broadcast %51 : vector<8x1xf32> to vector<8x60xf32>
    %53 = vector.shape_cast %46 : vector<8x1xf32> to vector<8x1xf32>
    %54 = vector.broadcast %53 : vector<8x1xf32> to vector<8x60xf32>
    %55 = arith.select %12, %52, %54 : vector<8x60xi1>, vector<8x60xf32>
    %cst_15 = arith.constant 0.000000e+00 : f32
    %56 = vector.broadcast %cst_15 : f32 to vector<8x60xf32>
    %57 = arith.select %17, %42, %56 : vector<8x60xi1>, vector<8x60xf32>
    %cst_16 = arith.constant dense<0.000000e+00> : vector<8xf32>
    %58 = vector.multi_reduction <add>, %57, %cst_16 [1] : vector<8x60xf32> to vector<8xf32>
    %59 = vector.shape_cast %58 : vector<8xf32> to vector<8x1xf32>
    %60 = vector.shape_cast %59 : vector<8x1xf32> to vector<8x1xf32>
    %61 = vector.broadcast %60 : vector<8x1xf32> to vector<8x60xf32>
    %62 = arith.select %17, %61, %55 : vector<8x60xi1>, vector<8x60xf32>
    %63 = tpu.reciprocal %62 {approx = true} : vector<8x60xf32> -> vector<8x60xf32>
    %64 = arith.mulf %42, %63 : vector<8x60xf32>
    %cst_17 = arith.constant -1.000000e+30 : f32
    %65 = vector.broadcast %cst_17 : f32 to vector<8x60xf32>
    %66 = arith.select %7, %0, %65 : vector<8x60xi1>, vector<8x60xf32>
    %cst_18 = arith.constant dense<0xFF800000> : vector<8xf32>
    %67 = vector.multi_reduction <maximumf>, %66, %cst_18 [1] : vector<8x60xf32> to vector<8xf32>
    %68 = vector.shape_cast %67 : vector<8xf32> to vector<8x1xf32>
    %cst_19 = arith.constant -1.000000e+30 : f32
    %69 = vector.broadcast %cst_19 : f32 to vector<8x60xf32>
    %70 = arith.select %12, %0, %69 : vector<8x60xi1>, vector<8x60xf32>
    %cst_20 = arith.constant dense<0xFF800000> : vector<8xf32>
    %71 = vector.multi_reduction <maximumf>, %70, %cst_20 [1] : vector<8x60xf32> to vector<8xf32>
    %72 = vector.shape_cast %71 : vector<8xf32> to vector<8x1xf32>
    %73 = vector.shape_cast %72 : vector<8x1xf32> to vector<8x1xf32>
    %74 = vector.broadcast %73 : vector<8x1xf32> to vector<8x60xf32>
    %75 = vector.shape_cast %68 : vector<8x1xf32> to vector<8x1xf32>
    %76 = vector.broadcast %75 : vector<8x1xf32> to vector<8x60xf32>
    %77 = arith.select %12, %74, %76 : vector<8x60xi1>, vector<8x60xf32>
    %cst_21 = arith.constant -1.000000e+30 : f32
    %78 = vector.broadcast %cst_21 : f32 to vector<8x60xf32>
    %79 = arith.select %17, %0, %78 : vector<8x60xi1>, vector<8x60xf32>
    %cst_22 = arith.constant dense<0xFF800000> : vector<8xf32>
    %80 = vector.multi_reduction <maximumf>, %79, %cst_22 [1] : vector<8x60xf32> to vector<8xf32>
    %81 = vector.shape_cast %80 : vector<8xf32> to vector<8x1xf32>
    %82 = vector.shape_cast %81 : vector<8x1xf32> to vector<8x1xf32>
    %83 = vector.broadcast %82 : vector<8x1xf32> to vector<8x60xf32>
    %84 = arith.select %17, %83, %77 : vector<8x60xi1>, vector<8x60xf32>
    %85 = arith.subf %0, %84 : vector<8x60xf32>
    %86 = math.exp %85 : vector<8x60xf32>
    %cst_23 = arith.constant 0.000000e+00 : f32
    %87 = vector.broadcast %cst_23 : f32 to vector<8x60xf32>
    %88 = arith.select %7, %86, %87 : vector<8x60xi1>, vector<8x60xf32>
    %cst_24 = arith.constant dense<0.000000e+00> : vector<8xf32>
    %89 = vector.multi_reduction <add>, %88, %cst_24 [1] : vector<8x60xf32> to vector<8xf32>
    %90 = vector.shape_cast %89 : vector<8xf32> to vector<8x1xf32>
    %cst_25 = arith.constant 0.000000e+00 : f32
    %91 = vector.broadcast %cst_25 : f32 to vector<8x60xf32>
    %92 = arith.select %12, %86, %91 : vector<8x60xi1>, vector<8x60xf32>
    %cst_26 = arith.constant dense<0.000000e+00> : vector<8xf32>
    %93 = vector.multi_reduction <add>, %92, %cst_26 [1] : vector<8x60xf32> to vector<8xf32>
    %94 = vector.shape_cast %93 : vector<8xf32> to vector<8x1xf32>
    %95 = vector.shape_cast %94 : vector<8x1xf32> to vector<8x1xf32>
    %96 = vector.broadcast %95 : vector<8x1xf32> to vector<8x60xf32>
    %97 = vector.shape_cast %90 : vector<8x1xf32> to vector<8x1xf32>
    %98 = vector.broadcast %97 : vector<8x1xf32> to vector<8x60xf32>
    %99 = arith.select %12, %96, %98 : vector<8x60xi1>, vector<8x60xf32>
    %cst_27 = arith.constant 0.000000e+00 : f32
    %100 = vector.broadcast %cst_27 : f32 to vector<8x60xf32>
    %101 = arith.select %17, %86, %100 : vector<8x60xi1>, vector<8x60xf32>
    %cst_28 = arith.constant dense<0.000000e+00> : vector<8xf32>
    %102 = vector.multi_reduction <add>, %101, %cst_28 [1] : vector<8x60xf32> to vector<8xf32>
    %103 = vector.shape_cast %102 : vector<8xf32> to vector<8x1xf32>
    %104 = vector.shape_cast %103 : vector<8x1xf32> to vector<8x1xf32>
    %105 = vector.broadcast %104 : vector<8x1xf32> to vector<8x60xf32>
    %106 = arith.select %17, %105, %99 : vector<8x60xi1>, vector<8x60xf32>
    %107 = tpu.reciprocal %106 {approx = true} : vector<8x60xf32> -> vector<8x60xf32>
    %108 = arith.mulf %86, %107 : vector<8x60xf32>
    %c0_29 = arith.constant 0 : index
    %c0_30 = arith.constant 0 : index
    %109 = vector.load %arg10[%c0_29, %c0_30] : memref<8x60xf32, #tpu.memory_space<vmem>>, vector<8x60xf32>
    tpu.vector_store %arg10[%c0_29, %c0_30], %108 {strides = array<i32>} : memref<8x60xf32, #tpu.memory_space<vmem>>, vector<8x60xf32>,
    %110 = arith.truncf %64 : vector<8x60xf32> to vector<8x60xbf16>
    %c0_31 = arith.constant 0 : index
    %c0_32 = arith.constant 0 : index
    %111 = vector.load %arg3[%c0_31, %c0_32] : memref<60x256xbf16, #tpu.memory_space<vmem>>, vector<60x256xbf16>
    %cst_33 = arith.constant dense<0.000000e+00> : vector<8x256xf32>
    %112 = tpu.matmul %110, %111, %cst_33 {dimension_numbers = #tpu.dot_dimension_numbers<[1], [0], [0], [1], [0, 0, 1, 1], [], []>} : vector<8x60xbf16>, vector<60x256xbf16>, vector<8x256xf32> -> vector<8x256xf32>
    %c0_34 = arith.constant 0 : index
    %c0_35 = arith.constant 0 : index
    %113 = vector.load %arg4[%c0_34, %c0_35] : memref<1x256xf32, #tpu.memory_space<vmem>>, vector<1x256xf32>
    %114 = vector.broadcast %113 : vector<1x256xf32> to vector<8x256xf32>
    %115 = arith.addf %112, %114 : vector<8x256xf32>
    %cst_36 = arith.constant 0.000000e+00 : f32
    %116 = vector.broadcast %cst_36 : f32 to vector<8x256xf32>
    %117 = arith.maximumf %115, %116 : vector<8x256xf32>
    %118 = arith.truncf %117 : vector<8x256xf32> to vector<8x256xbf16>
    %c0_37 = arith.constant 0 : index
    %c0_38 = arith.constant 0 : index
    %119 = vector.load %arg5[%c0_37, %c0_38] : memref<256x512xbf16, #tpu.memory_space<vmem>>, vector<256x512xbf16>
    %cst_39 = arith.constant dense<0.000000e+00> : vector<8x512xf32>
    %120 = tpu.matmul %118, %119, %cst_39 {dimension_numbers = #tpu.dot_dimension_numbers<[1], [0], [0], [1], [0, 0, 1, 1], [], []>} : vector<8x256xbf16>, vector<256x512xbf16>, vector<8x512xf32> -> vector<8x512xf32>
    %c0_40 = arith.constant 0 : index
    %c0_41 = arith.constant 0 : index
    %121 = vector.load %arg6[%c0_40, %c0_41] : memref<1x512xf32, #tpu.memory_space<vmem>>, vector<1x512xf32>
    %122 = vector.broadcast %121 : vector<1x512xf32> to vector<8x512xf32>
    %123 = arith.addf %120, %122 : vector<8x512xf32>
    %cst_42 = arith.constant 0.000000e+00 : f32
    %124 = vector.broadcast %cst_42 : f32 to vector<8x512xf32>
    %125 = arith.maximumf %123, %124 : vector<8x512xf32>
    %126 = arith.truncf %125 : vector<8x512xf32> to vector<8x512xbf16>
    %c0_43 = arith.constant 0 : index
    %c0_44 = arith.constant 0 : index
    %127 = vector.load %arg7[%c0_43, %c0_44] : memref<512x2432xbf16, #tpu.memory_space<vmem>>, vector<512x2432xbf16>
    %cst_45 = arith.constant dense<0.000000e+00> : vector<8x2432xf32>
    %128 = tpu.matmul %126, %127, %cst_45 {dimension_numbers = #tpu.dot_dimension_numbers<[1], [0], [0], [1], [0, 0, 1, 1], [], []>} : vector<8x512xbf16>, vector<512x2432xbf16>, vector<8x2432xf32> -> vector<8x2432xf32>
    %c0_46 = arith.constant 0 : index
    %c0_47 = arith.constant 0 : index
    %129 = vector.load %arg8[%c0_46, %c0_47] : memref<1x2432xf32, #tpu.memory_space<vmem>>, vector<1x2432xf32>
    %130 = vector.broadcast %129 : vector<1x2432xf32> to vector<8x2432xf32>
    %131 = arith.addf %128, %130 : vector<8x2432xf32>
    %cst_48 = arith.constant 0.000000e+00 : f32
    %132 = vector.broadcast %cst_48 : f32 to vector<8x2432xf32>
    %133 = arith.subf %132, %131 : vector<8x2432xf32>
    %134 = math.exp %133 : vector<8x2432xf32>
    %cst_49 = arith.constant 1.000000e+00 : f32
    %135 = vector.broadcast %cst_49 : f32 to vector<8x2432xf32>
    %136 = arith.addf %135, %134 : vector<8x2432xf32>
    %137 = tpu.reciprocal %136 {approx = true} : vector<8x2432xf32> -> vector<8x2432xf32>
    %c0_50 = arith.constant 0 : index
    %c0_51 = arith.constant 0 : index
    %138 = vector.load %arg9[%c0_50, %c0_51] : memref<8x2432xf32, #tpu.memory_space<vmem>>, vector<8x2432xf32>
    tpu.vector_store %arg9[%c0_50, %c0_51], %137 {strides = array<i32>} : memref<8x2432xf32, #tpu.memory_space<vmem>>, vector<8x2432xf32>,
    return
  }
  func.func @transform_0(%arg0: i32) -> (i32, i32) {
    %c0_i32 = arith.constant 0 : i32
    %c0_i32_0 = arith.constant 0 : i32
    return %arg0, %c0_i32 : i32, i32
  }
  func.func @transform_1(%arg0: i32) -> (i32, i32) {
    %c0_i32 = arith.constant 0 : i32
    %c0_i32_0 = arith.constant 0 : i32
    return %arg0, %c0_i32 : i32, i32
  }
  func.func @transform_2(%arg0: i32) -> (i32, i32) {
    %c0_i32 = arith.constant 0 : i32
    %c0_i32_0 = arith.constant 0 : i32
    %c0_i32_1 = arith.constant 0 : i32
    return %c0_i32, %c0_i32_0 : i32, i32
  }
  func.func @transform_3(%arg0: i32) -> (i32, i32) {
    %c0_i32 = arith.constant 0 : i32
    %c0_i32_0 = arith.constant 0 : i32
    %c0_i32_1 = arith.constant 0 : i32
    return %c0_i32, %c0_i32_0 : i32, i32
  }
  func.func @transform_4(%arg0: i32) -> (i32, i32) {
    %c0_i32 = arith.constant 0 : i32
    %c0_i32_0 = arith.constant 0 : i32
    %c0_i32_1 = arith.constant 0 : i32
    return %c0_i32, %c0_i32_0 : i32, i32
  }
  func.func @transform_5(%arg0: i32) -> (i32, i32) {
    %c0_i32 = arith.constant 0 : i32
    %c0_i32_0 = arith.constant 0 : i32
    %c0_i32_1 = arith.constant 0 : i32
    return %c0_i32, %c0_i32_0 : i32, i32
  }
  func.func @transform_6(%arg0: i32) -> (i32, i32) {
    %c0_i32 = arith.constant 0 : i32
    %c0_i32_0 = arith.constant 0 : i32
    %c0_i32_1 = arith.constant 0 : i32
    return %c0_i32, %c0_i32_0 : i32, i32
  }
  func.func @transform_7(%arg0: i32) -> (i32, i32) {
    %c0_i32 = arith.constant 0 : i32
    %c0_i32_0 = arith.constant 0 : i32
    %c0_i32_1 = arith.constant 0 : i32
    return %c0_i32, %c0_i32_0 : i32, i32
  }
  func.func @transform_8(%arg0: i32) -> (i32, i32) {
    %c0_i32 = arith.constant 0 : i32
    %c0_i32_0 = arith.constant 0 : i32
    return %arg0, %c0_i32 : i32, i32
  }
  func.func @transform_9(%arg0: i32) -> (i32, i32) {
    %c0_i32 = arith.constant 0 : i32
    %c0_i32_0 = arith.constant 0 : i32
    return %arg0, %c0_i32 : i32, i32
  }
}

</mosaic_0001>

<llo_original>
// kernel: tpu_custom_call.1
$region0: #{tpu_custom_call.1}
  #allocation0 [shape = 'u32[]', space=smem, size = 0x4, offset = 0x4, fixed_abs, tag = 'smem constant byte address 0x4 - core index']
  #allocation1 [shape = 'u32[144,128]{1,0:T(1,128)}', space=vmem, size = 0x12000, scoped, tag = 'internal scratch']
  %s0 = inlined_call_operand.hbm [shape: f32[24,60], index: 0, kind: input, shape index: {}]
  %s1 = inlined_call_operand.hbm [shape: f32[24,60], index: 1, kind: input, shape index: {}]
  %s2 = inlined_call_operand.hbm [shape: bf16[60,256], index: 2, kind: input, shape index: {}]
  %s3 = inlined_call_operand.hbm [shape: f32[1,256], index: 3, kind: input, shape index: {}]
  %s4 = inlined_call_operand.hbm [shape: bf16[256,512], index: 4, kind: input, shape index: {}]
  %s5 = inlined_call_operand.hbm [shape: f32[1,512], index: 5, kind: input, shape index: {}]
  %s6 = inlined_call_operand.hbm [shape: bf16[512,2432], index: 6, kind: input, shape index: {}]
  %s7 = inlined_call_operand.hbm [shape: f32[1,2432], index: 7, kind: input, shape index: {}]
  %s8 = inlined_call_operand.hbm [shape: f32[24,2432], index: 8, kind: output, shape index: {0}]
  %s9 = inlined_call_operand.hbm [shape: f32[24,60], index: 9, kind: output, shape index: {1}]
  %10 = xla_tuple %s8, %s9
  %s11 = sld [smem:[#allocation0]]
  $region105: #{tpu_custom_call.1} parent=0
    _
  %s13 = ssub.s32 1, %s11
  %s14 = scalar_select 0, %s13, %s11
  $region1: #{tpu_custom_call.1} parent=0
    #allocation2 [shape = 'u8[8192]{0}', space=vmem, size = 0x2000, scoped, tag = 'input window, operand 0']
    #allocation3 [shape = 's32[2]{0}', space=sflag, size = 0x8, scoped, tag = 'scoped memory for tpu_custom_call.1']
    #allocation4 [shape = 's32[2]{0}', space=sflag, size = 0x8, scoped, tag = 'scoped memory for tpu_custom_call.1']
    #allocation5 [shape = 'u8[8192]{0}', space=vmem, size = 0x2000, scoped, tag = 'input window, operand 1']
    #allocation6 [shape = 's32[2]{0}', space=sflag, size = 0x8, scoped, tag = 'scoped memory for tpu_custom_call.1']
    #allocation7 [shape = 'u8[32768]{0}', space=vmem, size = 0x8000, scoped, tag = 'input window, operand 2, single buffered']
    #allocation8 [shape = 'u8[1024]{0}', space=vmem, size = 0x400, scoped, tag = 'input window, operand 3, single buffered']
    #allocation9 [shape = 's32[1]{0}', space=sflag, size = 0x4, scoped, tag = 'scoped memory for tpu_custom_call.1']
    #allocation10 [shape = 'u8[262144]{0}', space=vmem, size = 0x40000, scoped, tag = 'input window, operand 4, single buffered']
    #allocation11 [shape = 'u8[2048]{0}', space=vmem, size = 0x800, scoped, tag = 'input window, operand 5, single buffered']
    #allocation12 [shape = 's32[1]{0}', space=sflag, size = 0x4, scoped, tag = 'scoped memory for tpu_custom_call.1']
    #allocation13 [shape = 'u8[2490368]{0}', space=vmem, size = 0x260000, scoped, tag = 'input window, operand 6, single buffered']
    #allocation14 [shape = 'u8[9728]{0}', space=vmem, size = 0x2800, scoped, tag = 'input window, operand 7, single buffered']
    #allocation15 [shape = 's32[1]{0}', space=sflag, size = 0x4, scoped, tag = 'scoped memory for tpu_custom_call.1']
    #allocation16 [shape = 'u8[155648]{0}', space=vmem, size = 0x26000, scoped, tag = 'output window, operand 0']
    #allocation17 [shape = 'u8[8192]{0}', space=vmem, size = 0x2000, scoped, tag = 'output window, operand 1']
    #allocation18 [shape = 's32[2]{0}', space=sflag, size = 0x8, scoped, tag = 'scoped memory for tpu_custom_call.1']
    %15 = vsyncpa [#allocation3], 0
    %s16 = scalar_lea.sflag [#allocation3], 1
    %17 = vsyncpa %s16, 0
    %18 = vsyncpa [#allocation6], 0
    %s19 = scalar_lea.sflag [#allocation6], 1
    %20 = vsyncpa %s19, 0
    %21 = vsyncpa [#allocation9], 0
    %22 = vsyncpa [#allocation12], 0
    %23 = vsyncpa [#allocation15], 0
    %24 = vsyncpa [#allocation4], 0
    %s25 = scalar_lea.sflag [#allocation4], 1
    %26 = vsyncpa %s25, 0
    %27 = vsyncpa [#allocation18], 0
    %s28 = scalar_lea.sflag [#allocation18], 1
    %29 = vsyncpa %s28, 0
    loop: start=0, step=1, limit=5
    $region2: #{tpu_custom_call.1} parent=1 // loop_pre_header
      _
    $region3: #{tpu_custom_call.1} parent=1 // loop_header
      %s31 = sphi 0, %s35
      %p32 = scmp.ge.s32.totalorder %s31, 5
      %s41 = sphi 0, %s43
      %s44 = sphi 0, %s41
      %s45 = sphi 0, %s44
      %s61 = sphi 0, %s45
      %s67 = sphi 0, %s69
      %s70 = sphi 0, %s67
      %s71 = sphi 0, %s70
      %s87 = sphi 0, %s71
      %s91 = sphi 0, %s91
      %s93 = sphi 0, %s91
      %s94 = sphi 0, %s93
      %s108 = sphi 0, %s94
      %s112 = sphi 0, %s112
      %s114 = sphi 0, %s112
      %s115 = sphi 0, %s114
      %s129 = sphi 0, %s115
      %s133 = sphi 0, %s133
      %s135 = sphi 0, %s133
      %s136 = sphi 0, %s135
      %s150 = sphi 0, %s136
      %s154 = sphi 0, %s154
      %s156 = sphi 0, %s154
      %s157 = sphi 0, %s156
      %s171 = sphi 0, %s157
      %s175 = sphi 0, %s175
      %s177 = sphi 0, %s175
      %s178 = sphi 0, %s177
      %s192 = sphi 0, %s178
      %s196 = sphi 0, %s196
      %s198 = sphi 0, %s196
      %s199 = sphi 0, %s198
      %s213 = sphi 0, %s199
      %s219 = sphi 0, %s221
      %s222 = sphi 0, %s219
      %s223 = sphi 0, %s222
      %s239 = sphi 0, %s223
      %s245 = sphi 0, %s247
      %s248 = sphi 0, %s245
      %s249 = sphi 0, %s248
      %s265 = sphi 0, %s249
    $region4: #{tpu_custom_call.1} parent=1 // loop_header_branch
      %34 = sbr.rel (%p32) target = $region8
    $region5: #{tpu_custom_call.1} parent=1 // loop_body
      %s36 = ssub.s32 %s31, 1
      %s37 = ssub.s32 %s31, 2
      %s38 = sadd.s32 %s31, 1
      %s39 = ssub.s32 %s31, %s38
      %p40 = scmp.eq.s32.totalorder %s39, 0
      %s42 = sadd.s32 %s41, 1
      %s43 = scalar_select %p40, %s41, %s42
      %p46 = pneg %p40
      %p47 = scmp.eq.s32.totalorder %s31, 2
      %p48 = por %p46, %p47
      %p49 = scmp.ne.s32.totalorder %s41, %s44
      %p50 = scmp.eq.s32.totalorder %s31, 0
      %p51 = por %p49, %p50
      %p52 = scmp.ne.s32.totalorder %s41, %s44
      %p53 = scmp.eq.s32.totalorder %s36, 2
      %p54 = por %p52, %p53
      %p55 = scmp.ne.s32.totalorder %s44, %s45
      %p56 = scmp.eq.s32.totalorder %s36, 0
      %p57 = por %p55, %p56
      %p58 = scmp.ne.s32.totalorder %s44, %s45
      %p59 = scmp.eq.s32.totalorder %s37, 2
      %p60 = por %p58, %p59
      %p62 = scmp.ne.s32.totalorder %s45, %s61
      %p63 = scmp.eq.s32.totalorder %s37, 0
      %p64 = por %p62, %p63
      %s65 = ssub.s32 %s31, %s38
      %p66 = scmp.eq.s32.totalorder %s65, 0
      %s68 = sadd.s32 %s67, 1
      %s69 = scalar_select %p66, %s67, %s68
      %p72 = pneg %p66
      %p73 = scmp.eq.s32.totalorder %s31, 2
      %p74 = por %p72, %p73
      %p75 = scmp.ne.s32.totalorder %s67, %s70
      %p76 = scmp.eq.s32.totalorder %s31, 0
      %p77 = por %p75, %p76
      %p78 = scmp.ne.s32.totalorder %s67, %s70
      %p79 = scmp.eq.s32.totalorder %s36, 2
      %p80 = por %p78, %p79
      %p81 = scmp.ne.s32.totalorder %s70, %s71
      %p82 = scmp.eq.s32.totalorder %s36, 0
      %p83 = por %p81, %p82
      %p84 = scmp.ne.s32.totalorder %s70, %s71
      %p85 = scmp.eq.s32.totalorder %s37, 2
      %p86 = por %p84, %p85
      %p88 = scmp.ne.s32.totalorder %s71, %s87
      %p89 = scmp.eq.s32.totalorder %s37, 0
      %p90 = por %p88, %p89
      %s92 = sadd.s32 %s91, 1
      %p95 = scmp.eq.s32.totalorder %s31, 2
      %p96 = scmp.ne.s32.totalorder %s91, %s93
      %p97 = scmp.eq.s32.totalorder %s31, 0
      %p98 = por %p96, %p97
      %p99 = scmp.ne.s32.totalorder %s91, %s93
      %p100 = scmp.eq.s32.totalorder %s36, 2
      %p101 = por %p99, %p100
      %p102 = scmp.ne.s32.totalorder %s93, %s94
      %p103 = scmp.eq.s32.totalorder %s36, 0
      %p104 = por %p102, %p103
      %p105 = scmp.ne.s32.totalorder %s93, %s94
      %p106 = scmp.eq.s32.totalorder %s37, 2
      %p107 = por %p105, %p106
      %p109 = scmp.ne.s32.totalorder %s94, %s108
      %p110 = scmp.eq.s32.totalorder %s37, 0
      %p111 = por %p109, %p110
      %s113 = sadd.s32 %s112, 1
      %p116 = scmp.eq.s32.totalorder %s31, 2
      %p117 = scmp.ne.s32.totalorder %s112, %s114
      %p118 = scmp.eq.s32.totalorder %s31, 0
      %p119 = por %p117, %p118
      %p120 = scmp.ne.s32.totalorder %s112, %s114
      %p121 = scmp.eq.s32.totalorder %s36, 2
      %p122 = por %p120, %p121
      %p123 = scmp.ne.s32.totalorder %s114, %s115
      %p124 = scmp.eq.s32.totalorder %s36, 0
      %p125 = por %p123, %p124
      %p126 = scmp.ne.s32.totalorder %s114, %s115
      %p127 = scmp.eq.s32.totalorder %s37, 2
      %p128 = por %p126, %p127
      %p130 = scmp.ne.s32.totalorder %s115, %s129
      %p131 = scmp.eq.s32.totalorder %s37, 0
      %p132 = por %p130, %p131
      %s134 = sadd.s32 %s133, 1
      %p137 = scmp.eq.s32.totalorder %s31, 2
      %p138 = scmp.ne.s32.totalorder %s133, %s135
      %p139 = scmp.eq.s32.totalorder %s31, 0
      %p140 = por %p138, %p139
      %p141 = scmp.ne.s32.totalorder %s133, %s135
      %p142 = scmp.eq.s32.totalorder %s36, 2
      %p143 = por %p141, %p142
      %p144 = scmp.ne.s32.totalorder %s135, %s136
      %p145 = scmp.eq.s32.totalorder %s36, 0
      %p146 = por %p144, %p145
      %p147 = scmp.ne.s32.totalorder %s135, %s136
      %p148 = scmp.eq.s32.totalorder %s37, 2
      %p149 = por %p147, %p148
      %p151 = scmp.ne.s32.totalorder %s136, %s150
      %p152 = scmp.eq.s32.totalorder %s37, 0
      %p153 = por %p151, %p152
      %s155 = sadd.s32 %s154, 1
      %p158 = scmp.eq.s32.totalorder %s31, 2
      %p159 = scmp.ne.s32.totalorder %s154, %s156
      %p160 = scmp.eq.s32.totalorder %s31, 0
      %p161 = por %p159, %p160
      %p162 = scmp.ne.s32.totalorder %s154, %s156
      %p163 = scmp.eq.s32.totalorder %s36, 2
      %p164 = por %p162, %p163
      %p165 = scmp.ne.s32.totalorder %s156, %s157
      %p166 = scmp.eq.s32.totalorder %s36, 0
      %p167 = por %p165, %p166
      %p168 = scmp.ne.s32.totalorder %s156, %s157
      %p169 = scmp.eq.s32.totalorder %s37, 2
      %p170 = por %p168, %p169
      %p172 = scmp.ne.s32.totalorder %s157, %s171
      %p173 = scmp.eq.s32.totalorder %s37, 0
      %p174 = por %p172, %p173
      %s176 = sadd.s32 %s175, 1
      %p179 = scmp.eq.s32.totalorder %s31, 2
      %p180 = scmp.ne.s32.totalorder %s175, %s177
      %p181 = scmp.eq.s32.totalorder %s31, 0
      %p182 = por %p180, %p181
      %p183 = scmp.ne.s32.totalorder %s175, %s177
      %p184 = scmp.eq.s32.totalorder %s36, 2
      %p185 = por %p183, %p184
      %p186 = scmp.ne.s32.totalorder %s177, %s178
      %p187 = scmp.eq.s32.totalorder %s36, 0
      %p188 = por %p186, %p187
      %p189 = scmp.ne.s32.totalorder %s177, %s178
      %p190 = scmp.eq.s32.totalorder %s37, 2
      %p191 = por %p189, %p190
      %p193 = scmp.ne.s32.totalorder %s178, %s192
      %p194 = scmp.eq.s32.totalorder %s37, 0
      %p195 = por %p193, %p194
      %s197 = sadd.s32 %s196, 1
      %p200 = scmp.eq.s32.totalorder %s31, 2
      %p201 = scmp.ne.s32.totalorder %s196, %s198
      %p202 = scmp.eq.s32.totalorder %s31, 0
      %p203 = por %p201, %p202
      %p204 = scmp.ne.s32.totalorder %s196, %s198
      %p205 = scmp.eq.s32.totalorder %s36, 2
      %p206 = por %p204, %p205
      %p207 = scmp.ne.s32.totalorder %s198, %s199
      %p208 = scmp.eq.s32.totalorder %s36, 0
      %p209 = por %p207, %p208
      %p210 = scmp.ne.s32.totalorder %s198, %s199
      %p211 = scmp.eq.s32.totalorder %s37, 2
      %p212 = por %p210, %p211
      %p214 = scmp.ne.s32.totalorder %s199, %s213
      %p215 = scmp.eq.s32.totalorder %s37, 0
      %p216 = por %p214, %p215
      %s217 = ssub.s32 %s31, %s38
      %p218 = scmp.eq.s32.totalorder %s217, 0
      %s220 = sadd.s32 %s219, 1
      %s221 = scalar_select %p218, %s219, %s220
      %p224 = pneg %p218
      %p225 = scmp.eq.s32.totalorder %s31, 2
      %p226 = por %p224, %p225
      %p227 = scmp.ne.s32.totalorder %s219, %s222
      %p228 = scmp.eq.s32.totalorder %s31, 0
      %p229 = por %p227, %p228
      %p230 = scmp.ne.s32.totalorder %s219, %s222
      %p231 = scmp.eq.s32.totalorder %s36, 2
      %p232 = por %p230, %p231
      %p233 = scmp.ne.s32.totalorder %s222, %s223
      %p234 = scmp.eq.s32.totalorder %s36, 0
      %p235 = por %p233, %p234
      %p236 = scmp.ne.s32.totalorder %s222, %s223
      %p237 = scmp.eq.s32.totalorder %s37, 2
      %p238 = por %p236, %p237
      %p240 = scmp.ne.s32.totalorder %s223, %s239
      %p241 = scmp.eq.s32.totalorder %s37, 0
      %p242 = por %p240, %p241
      %s243 = ssub.s32 %s31, %s38
      %p244 = scmp.eq.s32.totalorder %s243, 0
      %s246 = sadd.s32 %s245, 1
      %s247 = scalar_select %p244, %s245, %s246
      %p250 = pneg %p244
      %p251 = scmp.eq.s32.totalorder %s31, 2
      %p252 = por %p250, %p251
      %p253 = scmp.ne.s32.totalorder %s245, %s248
      %p254 = scmp.eq.s32.totalorder %s31, 0
      %p255 = por %p253, %p254
      %p256 = scmp.ne.s32.totalorder %s245, %s248
      %p257 = scmp.eq.s32.totalorder %s36, 2
      %p258 = por %p256, %p257
      %p259 = scmp.ne.s32.totalorder %s248, %s249
      %p260 = scmp.eq.s32.totalorder %s36, 0
      %p261 = por %p259, %p260
      %p262 = scmp.ne.s32.totalorder %s248, %s249
      %p263 = scmp.eq.s32.totalorder %s37, 2
      %p264 = por %p262, %p263
      %p266 = scmp.ne.s32.totalorder %s249, %s265
      %p267 = scmp.eq.s32.totalorder %s37, 0
      %p268 = por %p266, %p267
      %p269 = scmp.le.s32.totalorder 1, %s31
      %p270 = scmp.lt.s32.totalorder %s31, 4
      %p271 = pnand %p269, %p270
      %p272 = pneg %p271
      // Predicated region
      $region9: #{tpu_custom_call.1} parent=5 // pred_check
        _
      $region10: #{tpu_custom_call.1} parent=5 // pred_check_branch
        %274 = sbr.rel (%p271) target = $region12
      $region11: #{tpu_custom_call.1} parent=5 // pred_region
        %s275 = ssub.s32 %s31, 1
        // Predicated region
        $region13: #{tpu_custom_call.1} parent=11 // pred_check
          %p276 = pneg %p104
        $region14: #{tpu_custom_call.1} parent=11 // pred_check_branch
          %278 = sbr.rel (%p276) target = $region16
        $region15: #{tpu_custom_call.1} parent=11 // pred_region
          %s280 = ssub.s32 1024, 1024
          %281 = vsyncadd [#allocation6], %s280
          %s282 = sshll.u32 [#allocation7], 4
          %s283 = int_to_ptr.vmem [resolvable:$true] %s282
          %288 = dma.hbm_to_vmem [thread:$0]  %s2, 1024, %s283, [#allocation6], 128, 128, 8
        $region16: #{tpu_custom_call.1} parent=11 // pred_fallthru
          _
        // Predicated region
        $region17: #{tpu_custom_call.1} parent=11 // pred_check
          %p289 = pneg %p125
        $region18: #{tpu_custom_call.1} parent=11 // pred_check_branch
          %291 = sbr.rel (%p289) target = $region20
        $region19: #{tpu_custom_call.1} parent=11 // pred_region
          %s293 = ssub.s32 32, 32
          %294 = vsyncadd [#allocation9], %s293
          %s296 = sshll.u32 [#allocation8], 4
          %s297 = int_to_ptr.vmem [resolvable:$true] %s296
          %299 = dma.hbm_to_vmem [thread:$0]  %s3, 32, %s297, [#allocation9]
        $region20: #{tpu_custom_call.1} parent=11 // pred_fallthru
          _
        // Predicated region
        $region21: #{tpu_custom_call.1} parent=11 // pred_check
          %p300 = pneg %p146
        $region22: #{tpu_custom_call.1} parent=11 // pred_check_branch
          %302 = sbr.rel (%p300) target = $region24
        $region23: #{tpu_custom_call.1} parent=11 // pred_region
          %s304 = ssub.s32 8192, 8192
          %305 = vsyncadd [#allocation9], %s304
          %s306 = sshll.u32 [#allocation10], 4
          %s307 = int_to_ptr.vmem [resolvable:$true] %s306
          %312 = dma.hbm_to_vmem [thread:$0]  %s4, 8192, %s307, [#allocation9], 256, 256, 16
        $region24: #{tpu_custom_call.1} parent=11 // pred_fallthru
          _
        // Predicated region
        $region25: #{tpu_custom_call.1} parent=11 // pred_check
          %p313 = pneg %p167
        $region26: #{tpu_custom_call.1} parent=11 // pred_check_branch
          %315 = sbr.rel (%p313) target = $region28
        $region27: #{tpu_custom_call.1} parent=11 // pred_region
          %s317 = ssub.s32 64, 64
          %318 = vsyncadd [#allocation12], %s317
          %s320 = sshll.u32 [#allocation11], 4
          %s321 = int_to_ptr.vmem [resolvable:$true] %s320
          %323 = dma.hbm_to_vmem [thread:$0]  %s5, 64, %s321, [#allocation12]
        $region28: #{tpu_custom_call.1} parent=11 // pred_fallthru
          _
        // Predicated region
        $region29: #{tpu_custom_call.1} parent=11 // pred_check
          %p324 = pneg %p188
        $region30: #{tpu_custom_call.1} parent=11 // pred_check_branch
          %326 = sbr.rel (%p324) target = $region32
        $region31: #{tpu_custom_call.1} parent=11 // pred_region
          %s328 = ssub.s32 77824, 77824
          %329 = vsyncadd [#allocation12], %s328
          %s330 = sshll.u32 [#allocation13], 4
          %s331 = int_to_ptr.vmem [resolvable:$true] %s330
          %336 = dma.hbm_to_vmem [thread:$0]  %s6, 77824, %s331, [#allocation12], 1216, 1216, 76
        $region32: #{tpu_custom_call.1} parent=11 // pred_fallthru
          _
        // Predicated region
        $region33: #{tpu_custom_call.1} parent=11 // pred_check
          %p337 = pneg %p209
        $region34: #{tpu_custom_call.1} parent=11 // pred_check_branch
          %339 = sbr.rel (%p337) target = $region36
        $region35: #{tpu_custom_call.1} parent=11 // pred_region
          %s341 = ssub.s32 304, 304
          %342 = vsyncadd [#allocation15], %s341
          %s344 = sshll.u32 [#allocation14], 4
          %s345 = int_to_ptr.vmem [resolvable:$true] %s344
          %347 = dma.hbm_to_vmem [thread:$0]  %s7, 304, %s345, [#allocation15]
        $region36: #{tpu_custom_call.1} parent=11 // pred_fallthru
          _
      $region12: #{tpu_custom_call.1} parent=5 // pred_fallthru
        _
      %p348 = scmp.lt.s32.totalorder %s31, 3
      // Predicated region
      $region37: #{tpu_custom_call.1} parent=5 // pred_check
        %p349 = pneg %p348
      $region38: #{tpu_custom_call.1} parent=5 // pred_check_branch
        %351 = sbr.rel (%p349) target = $region40
      $region39: #{tpu_custom_call.1} parent=5 // pred_region
        // Predicated region
        $region41: #{tpu_custom_call.1} parent=39 // pred_check
          %p352 = pneg %p51
        $region42: #{tpu_custom_call.1} parent=39 // pred_check_branch
          %354 = sbr.rel (%p352) target = $region44
        $region43: #{tpu_custom_call.1} parent=39 // pred_region
          %s355 = sand.u32 %s41, 1
          %s356 = scalar_lea.sflag [#allocation3], %s355
          %s357 = sand.u32 %s41, 1
          %s358 = smul.addr %s357, 8
          %s359 = scalar_lea.vmem [#allocation2], %s358
          %s361 = ssub.s32 128, 128
          %362 = vsyncadd %s356, %s361
          %s363 = smul.addr %s31, 128
          %s364 = scalar_lea.hbm %s0, %s363
          %s366 = sshll.u32 %s359, 4
          %s367 = int_to_ptr.vmem [resolvable:$true] %s366
          %369 = dma.hbm_to_vmem [thread:$0]  %s364, 128, %s367, %s356
        $region44: #{tpu_custom_call.1} parent=39 // pred_fallthru
          _
        // Predicated region
        $region45: #{tpu_custom_call.1} parent=39 // pred_check
          %p370 = pneg %p77
        $region46: #{tpu_custom_call.1} parent=39 // pred_check_branch
          %372 = sbr.rel (%p370) target = $region48
        $region47: #{tpu_custom_call.1} parent=39 // pred_region
          %s373 = sand.u32 %s31, 1
          %s374 = scalar_lea.sflag [#allocation6], %s373
          %s375 = sand.u32 %s67, 1
          %s376 = smul.addr %s375, 8
          %s377 = scalar_lea.vmem [#allocation5], %s376
          %s379 = ssub.s32 128, 128
          %380 = vsyncadd %s374, %s379
          %s381 = smul.addr %s31, 128
          %s382 = scalar_lea.hbm %s1, %s381
          %s384 = sshll.u32 %s377, 4
          %s385 = int_to_ptr.vmem [resolvable:$true] %s384
          %387 = dma.hbm_to_vmem [thread:$0]  %s382, 128, %s385, %s374
        $region48: #{tpu_custom_call.1} parent=39 // pred_fallthru
          _
      $region40: #{tpu_custom_call.1} parent=5 // pred_fallthru
        _
      %p388 = scmp.le.s32.totalorder 1, %s31
      %p389 = scmp.lt.s32.totalorder %s31, 4
      %p390 = pnand %p388, %p389
      %p391 = pneg %p390
      // Predicated region
      $region49: #{tpu_custom_call.1} parent=5 // pred_check
        _
      $region50: #{tpu_custom_call.1} parent=5 // pred_check_branch
        %393 = sbr.rel (%p390) target = $region52
      $region51: #{tpu_custom_call.1} parent=5 // pred_region
        %s394 = ssub.s32 %s31, 1
        %s395 = sand.u32 %s44, 1
        %s396 = scalar_lea.sflag [#allocation3], %s395
        %s397 = sand.u32 %s44, 1
        %s398 = smul.addr %s397, 8
        %s399 = scalar_lea.vmem [#allocation2], %s398
        // Predicated region
        $region53: #{tpu_custom_call.1} parent=51 // pred_check
          %p400 = pneg %p57
        $region54: #{tpu_custom_call.1} parent=51 // pred_check_branch
          %402 = sbr.rel (%p400) target = $region56
        $region55: #{tpu_custom_call.1} parent=51 // pred_region
          %403 = dma.done %s396, 128
        $region56: #{tpu_custom_call.1} parent=51 // pred_fallthru
          _
        %s404 = sand.u32 %s36, 1
        %s405 = scalar_lea.sflag [#allocation6], %s404
        %s406 = sand.u32 %s70, 1
        %s407 = smul.addr %s406, 8
        %s408 = scalar_lea.vmem [#allocation5], %s407
        // Predicated region
        $region57: #{tpu_custom_call.1} parent=51 // pred_check
          %p409 = pneg %p83
        $region58: #{tpu_custom_call.1} parent=51 // pred_check_branch
          %411 = sbr.rel (%p409) target = $region60
        $region59: #{tpu_custom_call.1} parent=51 // pred_region
          %412 = dma.done %s405, 128
        $region60: #{tpu_custom_call.1} parent=51 // pred_fallthru
          _
        // Predicated region
        $region61: #{tpu_custom_call.1} parent=51 // pred_check
          %p413 = pneg %p104
        $region62: #{tpu_custom_call.1} parent=51 // pred_check_branch
          %415 = sbr.rel (%p413) target = $region64
        $region63: #{tpu_custom_call.1} parent=51 // pred_region
          %416 = dma.done [#allocation6], 1024
        $region64: #{tpu_custom_call.1} parent=51 // pred_fallthru
          _
        // Predicated region
        $region65: #{tpu_custom_call.1} parent=51 // pred_check
          %p417 = pneg %p125
        $region66: #{tpu_custom_call.1} parent=51 // pred_check_branch
          %419 = sbr.rel (%p417) target = $region68
        $region67: #{tpu_custom_call.1} parent=51 // pred_region
          %420 = dma.done [#allocation9], 32
        $region68: #{tpu_custom_call.1} parent=51 // pred_fallthru
          _
        // Predicated region
        $region69: #{tpu_custom_call.1} parent=51 // pred_check
          %p421 = pneg %p146
        $region70: #{tpu_custom_call.1} parent=51 // pred_check_branch
          %423 = sbr.rel (%p421) target = $region72
        $region71: #{tpu_custom_call.1} parent=51 // pred_region
          %424 = dma.done [#allocation9], 8192
        $region72: #{tpu_custom_call.1} parent=51 // pred_fallthru
          _
        // Predicated region
        $region73: #{tpu_custom_call.1} parent=51 // pred_check
          %p425 = pneg %p167
        $region74: #{tpu_custom_call.1} parent=51 // pred_check_branch
          %427 = sbr.rel (%p425) target = $region76
        $region75: #{tpu_custom_call.1} parent=51 // pred_region
          %428 = dma.done [#allocation12], 64
        $region76: #{tpu_custom_call.1} parent=51 // pred_fallthru
          _
        // Predicated region
        $region77: #{tpu_custom_call.1} parent=51 // pred_check
          %p429 = pneg %p188
        $region78: #{tpu_custom_call.1} parent=51 // pred_check_branch
          %431 = sbr.rel (%p429) target = $region80
        $region79: #{tpu_custom_call.1} parent=51 // pred_region
          %432 = dma.done [#allocation12], 77824
        $region80: #{tpu_custom_call.1} parent=51 // pred_fallthru
          _
        // Predicated region
        $region81: #{tpu_custom_call.1} parent=51 // pred_check
          %p433 = pneg %p209
        $region82: #{tpu_custom_call.1} parent=51 // pred_check_branch
          %435 = sbr.rel (%p433) target = $region84
        $region83: #{tpu_custom_call.1} parent=51 // pred_region
          %436 = dma.done [#allocation15], 304
        $region84: #{tpu_custom_call.1} parent=51 // pred_fallthru
          _
        %s437 = sand.u32 %s44, 1
        %s438 = scalar_lea.sflag [#allocation3], %s437
        %s439 = sand.u32 %s44, 1
        %s440 = smul.addr %s439, 8
        %s441 = scalar_lea.vmem [#allocation2], %s440
        %p442 = pneg %p57
        %p443 = pneg %p54
        %s444 = sand.u32 %s36, 1
        %s445 = scalar_lea.sflag [#allocation6], %s444
        %s446 = sand.u32 %s70, 1
        %s447 = smul.addr %s446, 8
        %s448 = scalar_lea.vmem [#allocation5], %s447
        %p449 = pneg %p83
        %p450 = pneg %p80
        %p451 = pneg %p104
        %p452 = pneg %p101
        %p453 = pneg %p125
        %p454 = pneg %p122
        %p455 = pneg %p146
        %p456 = pneg %p143
        %p457 = pneg %p167
        %p458 = pneg %p164
        %p459 = pneg %p188
        %p460 = pneg %p185
        %p461 = pneg %p209
        %p462 = pneg %p206
        %p463 = pneg %p235
        %p464 = pneg %p232
        %s465 = sand.u32 %s222, 1
        %s466 = scalar_lea.sflag [#allocation4], %s465
        %s467 = sand.u32 %s222, 1
        %s468 = smul.addr %s467, 152
        %s469 = scalar_lea.vmem [#allocation16], %s468
        %p470 = pneg %p261
        %p471 = pneg %p258
        %s472 = sand.u32 %s248, 1
        %s473 = scalar_lea.sflag [#allocation18], %s472
        %s474 = sand.u32 %s248, 1
        %s475 = smul.addr %s474, 8
        %s476 = scalar_lea.vmem [#allocation17], %s475
        %v478 = vld [vmem:[%s399] sm:$0xff]
        %v479 = vld [vmem:[%s408] sm:$0xff]
        %v480 = vlaneseq
        %v481 = vand.u32 %v480, 127
        %vm482 = vcmp.ge.s32.totalorder %v481, 0
        %vm483 = vcmp.lt.s32.totalorder %v481, 20
        %vm484 = vmand %vm482, %vm483
        %vm485 = vcmp.ge.s32.totalorder %v481, 20
        %vm486 = vcmp.lt.s32.totalorder %v481, 40
        %vm487 = vmand %vm485, %vm486
        %vm488 = vcmp.ge.s32.totalorder %v481, 40
        %vm489 = vcmp.lt.s32.totalorder %v481, 60
        %vm490 = vmand %vm488, %vm489
        %v491 = vadd.f32 %v478, %v479
        %v492 = vsel %vm484, %v491, -1e+30
        %vm493 = vcmask 490496
        %v494 = vsel %vm493, %v492, -inf
        %495 = vmax.xlane.f32.xlu0 %v494
        %v496 = vpop.xlane.xlu0 %495
        %v497 = vsel %vm487, %v491, -1e+30
        %v498 = vsel %vm493, %v497, -inf
        %499 = vmax.xlane.f32.xlu0 %v498
        %v500 = vpop.xlane.xlu0 %499
        %v501 = vsel %vm487, %v500, %v496
        %v502 = vsel %vm490, %v491, -1e+30
        %v503 = vsel %vm493, %v502, -inf
        %504 = vmax.xlane.f32.xlu0 %v503
        %v505 = vpop.xlane.xlu0 %504
        %v506 = vsel %vm490, %v505, %v501
        %v507 = vsub.f32 %v491, %v506
        %v508 = vmul.f32 %v507, 1.442695
        %v509 = vpow.pop %v508
        %v510 = vsel %vm484, %v509, 0.0
        %v511 = vsel %vm493, %v510, 0.0
        %512 = vadd.xlane.f32.xlu0 %v511
        %v513 = vpop.xlane.xlu0 %512
        %v514 = vsel %vm487, %v509, 0.0
        %v515 = vsel %vm493, %v514, 0.0
        %516 = vadd.xlane.f32.xlu0 %v515
        %v517 = vpop.xlane.xlu0 %516
        %v518 = vsel %vm487, %v517, %v513
        %v519 = vsel %vm490, %v509, 0.0
        %v520 = vsel %vm493, %v519, 0.0
        %521 = vadd.xlane.f32.xlu0 %v520
        %v522 = vpop.xlane.xlu0 %521
        %v523 = vsel %vm490, %v522, %v518
        %v524 = vrcp.pop %v523
        %v525 = vmul.f32 %v509, %v524
        %v526 = vsel %vm484, %v478, -1e+30
        %v527 = vsel %vm493, %v526, -inf
        %528 = vmax.xlane.f32.xlu0 %v527
        %v529 = vpop.xlane.xlu0 %528
        %v530 = vsel %vm487, %v478, -1e+30
        %v531 = vsel %vm493, %v530, -inf
        %532 = vmax.xlane.f32.xlu0 %v531
        %v533 = vpop.xlane.xlu0 %532
        %v534 = vsel %vm487, %v533, %v529
        %v535 = vsel %vm490, %v478, -1e+30
        %v536 = vsel %vm493, %v535, -inf
        %537 = vmax.xlane.f32.xlu0 %v536
        %v538 = vpop.xlane.xlu0 %537
        %v539 = vsel %vm490, %v538, %v534
        %v540 = vsub.f32 %v478, %v539
        %v541 = vmul.f32 %v540, 1.442695
        %v542 = vpow.pop %v541
        %v543 = vsel %vm484, %v542, 0.0
        %v544 = vsel %vm493, %v543, 0.0
        %545 = vadd.xlane.f32.xlu0 %v544
        %v546 = vpop.xlane.xlu0 %545
        %v547 = vsel %vm487, %v542, 0.0
        %v548 = vsel %vm493, %v547, 0.0
        %549 = vadd.xlane.f32.xlu0 %v548
        %v550 = vpop.xlane.xlu0 %549
        %v551 = vsel %vm487, %v550, %v546
        %v552 = vsel %vm490, %v542, 0.0
        %v553 = vsel %vm493, %v552, 0.0
        %554 = vadd.xlane.f32.xlu0 %v553
        %v555 = vpop.xlane.xlu0 %554
        %v556 = vsel %vm490, %v555, %v551
        %v557 = vrcp.pop %v556
        %v558 = vmul.f32 %v542, %v557
        %559 = vst.msk [vmem:[%s476] sm:$0xff] %vm493, %v558
        %v560 = vpack.c.bf16 %v525, %v525
        %v561 = vld [vmem:[#allocation7] sm:$0xff]
        %v562 = vld [vmem:[#allocation7 + $0x8] sm:$0xff]
        %v563 = vld [vmem:[#allocation7 + $0x10] sm:$0xff]
        %v564 = vld [vmem:[#allocation7 + $0x18] sm:$0xff]
        %v565 = vld [vmem:[#allocation7 + $0x20] sm:$0xff]
        %v566 = vld [vmem:[#allocation7 + $0x28] sm:$0xff]
        %v567 = vld [vmem:[#allocation7 + $0x30] sm:$0xff]
        %v568 = vld [vmem:[#allocation7 + $0x38] sm:$0x33]
        %v569 = vld [vmem:[#allocation8] sm:$0x3]
        %v571 = vlaneseq
        %v572 = vshrl.u32 %v571, 7
        %v573 = vsub.s32 0, %v572
        %v574 = vrot.slane %v569, %v573
        %v575 = vlaneseq
        %v576 = vshrl.u32 %v575, 7
        %v577 = vsub.s32 1, %v576
        %v578 = vrot.slane %v569, %v577
        %v589 = vunpack.c.l.b16 %v561
        %v590 = vunpack.c.h.b16 %v561
        %v591 = vunpack.c.l.b16 %v562
        %v592 = vunpack.c.h.b16 %v562
        %v593 = vunpack.c.l.b16 %v563
        %v594 = vunpack.c.h.b16 %v563
        %v595 = vunpack.c.l.b16 %v564
        %v596 = vunpack.c.h.b16 %v564
        %v597 = vunpack.c.l.b16 %v565
        %v598 = vunpack.c.h.b16 %v565
        %v599 = vunpack.c.l.b16 %v566
        %v600 = vunpack.c.h.b16 %v566
        %v601 = vunpack.c.l.b16 %v567
        %v602 = vunpack.c.h.b16 %v567
        %v603 = vunpack.c.l.b16 %v568
        %v604 = vunpack.c.h.b16 %v568
        %v605 = vpack.c.b16 %v591, %v589
        %v606 = vpack.c.b16 %v592, %v590
        %v607 = vpack.c.b16 %v595, %v593
        %v608 = vpack.c.b16 %v596, %v594
        %v609 = vpack.c.b16 %v599, %v597
        %v610 = vpack.c.b16 %v600, %v598
        %v611 = vpack.c.b16 %v603, %v601
        %v612 = vpack.c.b16 %v604, %v602
        %v620 = vsel %vm493, %v560, 0
        %vm622 = vcmask 1045504
        %v624 = vsel %vm622, %v611, 0
        %v627 = vsel %vm622, %v612, 0
        %629 = vmatprep.subr.bf16.mxu0 %v606
        %630 = vmatpush1.bf16.msra.mxu0 %v605
        %631 = vmatprep.subr.bf16.mxu0 %v608
        %632 = vmatpush1.bf16.msra.mxu0 %v607
        %633 = vmatprep.subr.bf16.mxu0 %v610
        %634 = vmatpush1.bf16.msra.mxu0 %v609
        %635 = vmatprep.subr.bf16.mxu0 %v627
        %636 = vmatpush1.bf16.msra.mxu0 %v624
        %637 = vmatprep.subr.bf16.mxu0 0
        %638 = vmatpush1.bf16.msra.mxu0 0
        %639 = vmatprep.subr.bf16.mxu0 0
        %640 = vmatpush1.bf16.msra.mxu0 0
        %641 = vmatprep.subr.bf16.mxu0 0
        %642 = vmatpush1.bf16.msra.mxu0 0
        %643 = vmatprep.subr.bf16.mxu0 0
        %644 = vmatpush1.bf16.msra.mxu0 0
        %645 = vmatprep.subr.bf16.mxu0 0
        %646 = vmatpush1.bf16.msra.mxu0 0
        %647 = vmatprep.subr.bf16.mxu0 0
        %648 = vmatpush1.bf16.msra.mxu0 0
        %649 = vmatprep.subr.bf16.mxu0 0
        %650 = vmatpush1.bf16.msra.mxu0 0
        %651 = vmatprep.subr.bf16.mxu0 0
        %652 = vmatpush1.bf16.msra.mxu0 0
        %653 = vmatprep.subr.bf16.mxu0 0
        %654 = vmatpush1.bf16.msra.mxu0 0
        %655 = vmatprep.subr.bf16.mxu0 0
        %656 = vmatpush1.bf16.msra.mxu0 0
        %657 = vmatprep.subr.bf16.mxu0 0
        %658 = vmatpush1.bf16.msra.mxu0 0
        %659 = vmatprep.subr.bf16.mxu0 0
        %660 = vmatpush1.bf16.msra.mxu0 0
        %661 = vmatprep.mubr.bf16.mxu0 0
        %662 = vmatmul.mubr.bf16.gmra.mrb[0].mxu0 %v620
        %v663 = vpop.f32.mrb[0].mxu0
        %v664 = vadd.f32 %v574, %v663
        %v665 = vpop.f32.mrb[0].mxu0
        %v666 = vadd.f32 %v578, %v665
        %v667 = vpop.f32.mrb[0].mxu0
        %v668 = vpop.f32.mrb[0].mxu0
        %669 = vdwg.mxu0
        %v670 = vmax.f32 %v664, 0.0
        %v671 = vmax.f32 %v666, 0.0
        %v672 = vpack.c.bf16 %v670, %v670
        %v673 = vpack.c.bf16 %v671, %v671
        %v674 = vld [vmem:[#allocation10] sm:$0xff]
        %v675 = vld [vmem:[#allocation10 + $0x8] sm:$0xff]
        %v676 = vld [vmem:[#allocation10 + $0x10] sm:$0xff]
        %v677 = vld [vmem:[#allocation10 + $0x18] sm:$0xff]
        %v678 = vld [vmem:[#allocation10 + $0x20] sm:$0xff]
        %v679 = vld [vmem:[#allocation10 + $0x28] sm:$0xff]
        %v680 = vld [vmem:[#allocation10 + $0x30] sm:$0xff]
        %v681 = vld [vmem:[#allocation10 + $0x38] sm:$0xff]
        %v682 = vld [vmem:[#allocation10 + $0x40] sm:$0xff]
        %v683 = vld [vmem:[#allocation10 + $0x48] sm:$0xff]
        %v684 = vld [vmem:[#allocation10 + $0x50] sm:$0xff]
        %v685 = vld [vmem:[#allocation10 + $0x58] sm:$0xff]
        %v686 = vld [vmem:[#allocation10 + $0x60] sm:$0xff]
        %v687 = vld [vmem:[#allocation10 + $0x68] sm:$0xff]
        %v688 = vld [vmem:[#allocation10 + $0x70] sm:$0xff]
        %v689 = vld [vmem:[#allocation10 + $0x78] sm:$0xff]
        %v690 = vld [vmem:[#allocation10 + $0x80] sm:$0xff]
        %v691 = vld [vmem:[#allocation10 + $0x88] sm:$0xff]
        %v692 = vld [vmem:[#allocation10 + $0x90] sm:$0xff]
        %v693 = vld [vmem:[#allocation10 + $0x98] sm:$0xff]
        %v694 = vld [vmem:[#allocation10 + $0xa0] sm:$0xff]
        %v695 = vld [vmem:[#allocation10 + $0xa8] sm:$0xff]
        %v696 = vld [vmem:[#allocation10 + $0xb0] sm:$0xff]
        %v697 = vld [vmem:[#allocation10 + $0xb8] sm:$0xff]
        %v698 = vld [vmem:[#allocation10 + $0xc0] sm:$0xff]
        %v699 = vld [vmem:[#allocation10 + $0xc8] sm:$0xff]
        %v700 = vld [vmem:[#allocation10 + $0xd0] sm:$0xff]
        %v701 = vld [vmem:[#allocation10 + $0xd8] sm:$0xff]
        %v702 = vld [vmem:[#allocation10 + $0xe0] sm:$0xff]
        %v703 = vld [vmem:[#allocation10 + $0xe8] sm:$0xff]
        %v704 = vld [vmem:[#allocation10 + $0xf0] sm:$0xff]
        %v705 = vld [vmem:[#allocation10 + $0xf8] sm:$0xff]
        %v706 = vld [vmem:[#allocation10 + $0x100] sm:$0xff]
        %v707 = vld [vmem:[#allocation10 + $0x108] sm:$0xff]
        %v708 = vld [vmem:[#allocation10 + $0x110] sm:$0xff]
        %v709 = vld [vmem:[#allocation10 + $0x118] sm:$0xff]
        %v710 = vld [vmem:[#allocation10 + $0x120] sm:$0xff]
        %v711 = vld [vmem:[#allocation10 + $0x128] sm:$0xff]
        %v712 = vld [vmem:[#allocation10 + $0x130] sm:$0xff]
        %v713 = vld [vmem:[#allocation10 + $0x138] sm:$0xff]
        %v714 = vld [vmem:[#allocation10 + $0x140] sm:$0xff]
        %v715 = vld [vmem:[#allocation10 + $0x148] sm:$0xff]
        %v716 = vld [vmem:[#allocation10 + $0x150] sm:$0xff]
        %v717 = vld [vmem:[#allocation10 + $0x158] sm:$0xff]
        %v718 = vld [vmem:[#allocation10 + $0x160] sm:$0xff]
        %v719 = vld [vmem:[#allocation10 + $0x168] sm:$0xff]
        %v720 = vld [vmem:[#allocation10 + $0x170] sm:$0xff]
        %v721 = vld [vmem:[#allocation10 + $0x178] sm:$0xff]
        %v722 = vld [vmem:[#allocation10 + $0x180] sm:$0xff]
        %v723 = vld [vmem:[#allocation10 + $0x188] sm:$0xff]
        %v724 = vld [vmem:[#allocation10 + $0x190] sm:$0xff]
        %v725 = vld [vmem:[#allocation10 + $0x198] sm:$0xff]
        %v726 = vld [vmem:[#allocation10 + $0x1a0] sm:$0xff]
        %v727 = vld [vmem:[#allocation10 + $0x1a8] sm:$0xff]
        %v728 = vld [vmem:[#allocation10 + $0x1b0] sm:$0xff]
        %v729 = vld [vmem:[#allocation10 + $0x1b8] sm:$0xff]
        %v730 = vld [vmem:[#allocation10 + $0x1c0] sm:$0xff]
        %v731 = vld [vmem:[#allocation10 + $0x1c8] sm:$0xff]
        %v732 = vld [vmem:[#allocation10 + $0x1d0] sm:$0xff]
        %v733 = vld [vmem:[#allocation10 + $0x1d8] sm:$0xff]
        %v734 = vld [vmem:[#allocation10 + $0x1e0] sm:$0xff]
        %v735 = vld [vmem:[#allocation10 + $0x1e8] sm:$0xff]
        %v736 = vld [vmem:[#allocation10 + $0x1f0] sm:$0xff]
        %v737 = vld [vmem:[#allocation10 + $0x1f8] sm:$0xff]
        %v738 = vld [vmem:[#allocation11] sm:$0xf]
        %v740 = vlaneseq
        %v741 = vshrl.u32 %v740, 7
        %v742 = vsub.s32 0, %v741
        %v743 = vrot.slane %v738, %v742
        %v744 = vlaneseq
        %v745 = vshrl.u32 %v744, 7
        %v746 = vsub.s32 1, %v745
        %v747 = vrot.slane %v738, %v746
        %v748 = vlaneseq
        %v749 = vshrl.u32 %v748, 7
        %v750 = vsub.s32 2, %v749
        %v751 = vrot.slane %v738, %v750
        %v752 = vlaneseq
        %v753 = vshrl.u32 %v752, 7
        %v754 = vsub.s32 3, %v753
        %v755 = vrot.slane %v738, %v754
        %v824 = vunpack.c.l.b16 %v674
        %v825 = vunpack.c.h.b16 %v674
        %v826 = vunpack.c.l.b16 %v675
        %v827 = vunpack.c.h.b16 %v675
        %v828 = vunpack.c.l.b16 %v676
        %v829 = vunpack.c.h.b16 %v676
        %v830 = vunpack.c.l.b16 %v677
        %v831 = vunpack.c.h.b16 %v677
        %v832 = vunpack.c.l.b16 %v678
        %v833 = vunpack.c.h.b16 %v678
        %v834 = vunpack.c.l.b16 %v679
        %v835 = vunpack.c.h.b16 %v679
        %v836 = vunpack.c.l.b16 %v680
        %v837 = vunpack.c.h.b16 %v680
        %v838 = vunpack.c.l.b16 %v681
        %v839 = vunpack.c.h.b16 %v681
        %v840 = vunpack.c.l.b16 %v682
        %v841 = vunpack.c.h.b16 %v682
        %v842 = vunpack.c.l.b16 %v683
        %v843 = vunpack.c.h.b16 %v683
        %v844 = vunpack.c.l.b16 %v684
        %v845 = vunpack.c.h.b16 %v684
        %v846 = vunpack.c.l.b16 %v685
        %v847 = vunpack.c.h.b16 %v685
        %v848 = vunpack.c.l.b16 %v686
        %v849 = vunpack.c.h.b16 %v686
        %v850 = vunpack.c.l.b16 %v687
        %v851 = vunpack.c.h.b16 %v687
        %v852 = vunpack.c.l.b16 %v688
        %v853 = vunpack.c.h.b16 %v688
        %v854 = vunpack.c.l.b16 %v689
        %v855 = vunpack.c.h.b16 %v689
        %v856 = vunpack.c.l.b16 %v690
        %v857 = vunpack.c.h.b16 %v690
        %v858 = vunpack.c.l.b16 %v691
        %v859 = vunpack.c.h.b16 %v691
        %v860 = vunpack.c.l.b16 %v692
        %v861 = vunpack.c.h.b16 %v692
        %v862 = vunpack.c.l.b16 %v693
        %v863 = vunpack.c.h.b16 %v693
        %v864 = vunpack.c.l.b16 %v694
        %v865 = vunpack.c.h.b16 %v694
        %v866 = vunpack.c.l.b16 %v695
        %v867 = vunpack.c.h.b16 %v695
        %v868 = vunpack.c.l.b16 %v696
        %v869 = vunpack.c.h.b16 %v696
        %v870 = vunpack.c.l.b16 %v697
        %v871 = vunpack.c.h.b16 %v697
        %v872 = vunpack.c.l.b16 %v698
        %v873 = vunpack.c.h.b16 %v698
        %v874 = vunpack.c.l.b16 %v699
        %v875 = vunpack.c.h.b16 %v699
        %v876 = vunpack.c.l.b16 %v700
        %v877 = vunpack.c.h.b16 %v700
        %v878 = vunpack.c.l.b16 %v701
        %v879 = vunpack.c.h.b16 %v701
        %v880 = vunpack.c.l.b16 %v702
        %v881 = vunpack.c.h.b16 %v702
        %v882 = vunpack.c.l.b16 %v703
        %v883 = vunpack.c.h.b16 %v703
        %v884 = vunpack.c.l.b16 %v704
        %v885 = vunpack.c.h.b16 %v704
        %v886 = vunpack.c.l.b16 %v705
        %v887 = vunpack.c.h.b16 %v705
        %v888 = vunpack.c.l.b16 %v706
        %v889 = vunpack.c.h.b16 %v706
        %v890 = vunpack.c.l.b16 %v707
        %v891 = vunpack.c.h.b16 %v707
        %v892 = vunpack.c.l.b16 %v708
        %v893 = vunpack.c.h.b16 %v708
        %v894 = vunpack.c.l.b16 %v709
        %v895 = vunpack.c.h.b16 %v709
        %v896 = vunpack.c.l.b16 %v710
        %v897 = vunpack.c.h.b16 %v710
        %v898 = vunpack.c.l.b16 %v711
        %v899 = vunpack.c.h.b16 %v711
        %v900 = vunpack.c.l.b16 %v712
        %v901 = vunpack.c.h.b16 %v712
        %v902 = vunpack.c.l.b16 %v713
        %v903 = vunpack.c.h.b16 %v713
        %v904 = vunpack.c.l.b16 %v714
        %v905 = vunpack.c.h.b16 %v714
        %v906 = vunpack.c.l.b16 %v715
        %v907 = vunpack.c.h.b16 %v715
        %v908 = vunpack.c.l.b16 %v716
        %v909 = vunpack.c.h.b16 %v716
        %v910 = vunpack.c.l.b16 %v717
        %v911 = vunpack.c.h.b16 %v717
        %v912 = vunpack.c.l.b16 %v718
        %v913 = vunpack.c.h.b16 %v718
        %v914 = vunpack.c.l.b16 %v719
        %v915 = vunpack.c.h.b16 %v719
        %v916 = vunpack.c.l.b16 %v720
        %v917 = vunpack.c.h.b16 %v720
        %v918 = vunpack.c.l.b16 %v721
        %v919 = vunpack.c.h.b16 %v721
        %v920 = vunpack.c.l.b16 %v722
        %v921 = vunpack.c.h.b16 %v722
        %v922 = vunpack.c.l.b16 %v723
        %v923 = vunpack.c.h.b16 %v723
        %v924 = vunpack.c.l.b16 %v724
        %v925 = vunpack.c.h.b16 %v724
        %v926 = vunpack.c.l.b16 %v725
        %v927 = vunpack.c.h.b16 %v725
        %v928 = vunpack.c.l.b16 %v726
        %v929 = vunpack.c.h.b16 %v726
        %v930 = vunpack.c.l.b16 %v727
        %v931 = vunpack.c.h.b16 %v727
        %v932 = vunpack.c.l.b16 %v728
        %v933 = vunpack.c.h.b16 %v728
        %v934 = vunpack.c.l.b16 %v729
        %v935 = vunpack.c.h.b16 %v729
        %v936 = vunpack.c.l.b16 %v730
        %v937 = vunpack.c.h.b16 %v730
        %v938 = vunpack.c.l.b16 %v731
        %v939 = vunpack.c.h.b16 %v731
        %v940 = vunpack.c.l.b16 %v732
        %v941 = vunpack.c.h.b16 %v732
        %v942 = vunpack.c.l.b16 %v733
        %v943 = vunpack.c.h.b16 %v733
        %v944 = vunpack.c.l.b16 %v734
        %v945 = vunpack.c.h.b16 %v734
        %v946 = vunpack.c.l.b16 %v735
        %v947 = vunpack.c.h.b16 %v735
        %v948 = vunpack.c.l.b16 %v736
        %v949 = vunpack.c.h.b16 %v736
        %v950 = vunpack.c.l.b16 %v737
        %v951 = vunpack.c.h.b16 %v737
        %v952 = vpack.c.b16 %v828, %v824
        %v953 = vpack.c.b16 %v829, %v825
        %v954 = vpack.c.b16 %v830, %v826
        %v955 = vpack.c.b16 %v831, %v827
        %v956 = vpack.c.b16 %v836, %v832
        %v957 = vpack.c.b16 %v837, %v833
        %v958 = vpack.c.b16 %v838, %v834
        %v959 = vpack.c.b16 %v839, %v835
        %v960 = vpack.c.b16 %v844, %v840
        %v961 = vpack.c.b16 %v845, %v841
        %v962 = vpack.c.b16 %v846, %v842
        %v963 = vpack.c.b16 %v847, %v843
        %v964 = vpack.c.b16 %v852, %v848
        %v965 = vpack.c.b16 %v853, %v849
        %v966 = vpack.c.b16 %v854, %v850
        %v967 = vpack.c.b16 %v855, %v851
        %v968 = vpack.c.b16 %v860, %v856
        %v969 = vpack.c.b16 %v861, %v857
        %v970 = vpack.c.b16 %v862, %v858
        %v971 = vpack.c.b16 %v863, %v859
        %v972 = vpack.c.b16 %v868, %v864
        %v973 = vpack.c.b16 %v869, %v865
        %v974 = vpack.c.b16 %v870, %v866
        %v975 = vpack.c.b16 %v871, %v867
        %v976 = vpack.c.b16 %v876, %v872
        %v977 = vpack.c.b16 %v877, %v873
        %v978 = vpack.c.b16 %v878, %v874
        %v979 = vpack.c.b16 %v879, %v875
        %v980 = vpack.c.b16 %v884, %v880
        %v981 = vpack.c.b16 %v885, %v881
        %v982 = vpack.c.b16 %v886, %v882
        %v983 = vpack.c.b16 %v887, %v883
        %v984 = vpack.c.b16 %v892, %v888
        %v985 = vpack.c.b16 %v893, %v889
        %v986 = vpack.c.b16 %v894, %v890
        %v987 = vpack.c.b16 %v895, %v891
        %v988 = vpack.c.b16 %v900, %v896
        %v989 = vpack.c.b16 %v901, %v897
        %v990 = vpack.c.b16 %v902, %v898
        %v991 = vpack.c.b16 %v903, %v899
        %v992 = vpack.c.b16 %v908, %v904
        %v993 = vpack.c.b16 %v909, %v905
        %v994 = vpack.c.b16 %v910, %v906
        %v995 = vpack.c.b16 %v911, %v907
        %v996 = vpack.c.b16 %v916, %v912
        %v997 = vpack.c.b16 %v917, %v913
        %v998 = vpack.c.b16 %v918, %v914
        %v999 = vpack.c.b16 %v919, %v915
        %v1000 = vpack.c.b16 %v924, %v920
        %v1001 = vpack.c.b16 %v925, %v921
        %v1002 = vpack.c.b16 %v926, %v922
        %v1003 = vpack.c.b16 %v927, %v923
        %v1004 = vpack.c.b16 %v932, %v928
        %v1005 = vpack.c.b16 %v933, %v929
        %v1006 = vpack.c.b16 %v934, %v930
        %v1007 = vpack.c.b16 %v935, %v931
        %v1008 = vpack.c.b16 %v940, %v936
        %v1009 = vpack.c.b16 %v941, %v937
        %v1010 = vpack.c.b16 %v942, %v938
        %v1011 = vpack.c.b16 %v943, %v939
        %v1012 = vpack.c.b16 %v948, %v944
        %v1013 = vpack.c.b16 %v949, %v945
        %v1014 = vpack.c.b16 %v950, %v946
        %v1015 = vpack.c.b16 %v951, %v947
        %1080 = vmatprep.subr.bf16.mxu0 %v953
        %1081 = vmatpush1.bf16.msra.mxu0 %v952
        %1082 = vmatprep.subr.bf16.mxu0 %v957
        %1083 = vmatpush1.bf16.msra.mxu0 %v956
        %1084 = vmatprep.subr.bf16.mxu0 %v961
        %1085 = vmatpush1.bf16.msra.mxu0 %v960
        %1086 = vmatprep.subr.bf16.mxu0 %v965
        %1087 = vmatpush1.bf16.msra.mxu0 %v964
        %1088 = vmatprep.subr.bf16.mxu0 %v969
        %1089 = vmatpush1.bf16.msra.mxu0 %v968
        %1090 = vmatprep.subr.bf16.mxu0 %v973
        %1091 = vmatpush1.bf16.msra.mxu0 %v972
        %1092 = vmatprep.subr.bf16.mxu0 %v977
        %1093 = vmatpush1.bf16.msra.mxu0 %v976
        %1094 = vmatprep.subr.bf16.mxu0 %v981
        %1095 = vmatpush1.bf16.msra.mxu0 %v980
        %1096 = vmatprep.subr.bf16.mxu0 %v985
        %1097 = vmatpush1.bf16.msra.mxu0 %v984
        %1098 = vmatprep.subr.bf16.mxu0 %v989
        %1099 = vmatpush1.bf16.msra.mxu0 %v988
        %1100 = vmatprep.subr.bf16.mxu0 %v993
        %1101 = vmatpush1.bf16.msra.mxu0 %v992
        %1102 = vmatprep.subr.bf16.mxu0 %v997
        %1103 = vmatpush1.bf16.msra.mxu0 %v996
        %1104 = vmatprep.subr.bf16.mxu0 %v1001
        %1105 = vmatpush1.bf16.msra.mxu0 %v1000
        %1106 = vmatprep.subr.bf16.mxu0 %v1005
        %1107 = vmatpush1.bf16.msra.mxu0 %v1004
        %1108 = vmatprep.subr.bf16.mxu0 %v1009
        %1109 = vmatpush1.bf16.msra.mxu0 %v1008
        %1110 = vmatprep.subr.bf16.mxu0 %v1013
        %1111 = vmatpush1.bf16.msra.mxu0 %v1012
        %1112 = vmatprep.mubr.bf16.mxu0 %v673
        %1113 = vmatmul.mubr.bf16.gmra.mrb[0].mxu0 %v672
        %v1114 = vpop.f32.mrb[0].mxu0
        %v1115 = vadd.f32 %v743, %v1114
        %v1116 = vpop.f32.mrb[0].mxu0
        %v1117 = vadd.f32 %v747, %v1116
        %v1118 = vpop.f32.mrb[0].mxu0
        %v1119 = vpop.f32.mrb[0].mxu0
        %1120 = vdwg.mxu0
        %1121 = vmatprep.subr.bf16.mxu0 %v955
        %1122 = vmatpush1.bf16.msra.mxu0 %v954
        %1123 = vmatprep.subr.bf16.mxu0 %v959
        %1124 = vmatpush1.bf16.msra.mxu0 %v958
        %1125 = vmatprep.subr.bf16.mxu0 %v963
        %1126 = vmatpush1.bf16.msra.mxu0 %v962
        %1127 = vmatprep.subr.bf16.mxu0 %v967
        %1128 = vmatpush1.bf16.msra.mxu0 %v966
        %1129 = vmatprep.subr.bf16.mxu0 %v971
        %1130 = vmatpush1.bf16.msra.mxu0 %v970
        %1131 = vmatprep.subr.bf16.mxu0 %v975
        %1132 = vmatpush1.bf16.msra.mxu0 %v974
        %1133 = vmatprep.subr.bf16.mxu0 %v979
        %1134 = vmatpush1.bf16.msra.mxu0 %v978
        %1135 = vmatprep.subr.bf16.mxu0 %v983
        %1136 = vmatpush1.bf16.msra.mxu0 %v982
        %1137 = vmatprep.subr.bf16.mxu0 %v987
        %1138 = vmatpush1.bf16.msra.mxu0 %v986
        %1139 = vmatprep.subr.bf16.mxu0 %v991
        %1140 = vmatpush1.bf16.msra.mxu0 %v990
        %1141 = vmatprep.subr.bf16.mxu0 %v995
        %1142 = vmatpush1.bf16.msra.mxu0 %v994
        %1143 = vmatprep.subr.bf16.mxu0 %v999
        %1144 = vmatpush1.bf16.msra.mxu0 %v998
        %1145 = vmatprep.subr.bf16.mxu0 %v1003
        %1146 = vmatpush1.bf16.msra.mxu0 %v1002
        %1147 = vmatprep.subr.bf16.mxu0 %v1007
        %1148 = vmatpush1.bf16.msra.mxu0 %v1006
        %1149 = vmatprep.subr.bf16.mxu0 %v1011
        %1150 = vmatpush1.bf16.msra.mxu0 %v1010
        %1151 = vmatprep.subr.bf16.mxu0 %v1015
        %1152 = vmatpush1.bf16.msra.mxu0 %v1014
        %1153 = vmatprep.mubr.bf16.mxu0 %v673
        %1154 = vmatmul.mubr.bf16.gmra.mrb[0].mxu0 %v672
        %v1155 = vpop.f32.mrb[0].mxu0
        %v1156 = vadd.f32 %v751, %v1155
        %v1157 = vpop.f32.mrb[0].mxu0
        %v1158 = vadd.f32 %v755, %v1157
        %v1159 = vpop.f32.mrb[0].mxu0
        %v1160 = vpop.f32.mrb[0].mxu0
        %1161 = vdwg.mxu0
        %v1162 = vmax.f32 %v1115, 0.0
        %v1163 = vmax.f32 %v1117, 0.0
        %v1164 = vmax.f32 %v1156, 0.0
        %v1165 = vmax.f32 %v1158, 0.0
        %v1166 = vpack.c.bf16 %v1162, %v1162
        %v1167 = vpack.c.bf16 %v1163, %v1163
        %v1168 = vpack.c.bf16 %v1164, %v1164
        %v1169 = vpack.c.bf16 %v1165, %v1165
        %v1170 = vld [vmem:[#allocation13] sm:$0xff]
        %v1171 = vld [vmem:[#allocation13 + $0x8] sm:$0xff]
        %v1172 = vld [vmem:[#allocation13 + $0x10] sm:$0xff]
        %v1173 = vld [vmem:[#allocation13 + $0x18] sm:$0xff]
        %v1174 = vld [vmem:[#allocation13 + $0x20] sm:$0xff]
        %v1175 = vld [vmem:[#allocation13 + $0x28] sm:$0xff]
        %v1176 = vld [vmem:[#allocation13 + $0x30] sm:$0xff]
        %v1177 = vld [vmem:[#allocation13 + $0x38] sm:$0xff]
        %v1178 = vld [vmem:[#allocation13 + $0x40] sm:$0xff]
        %v1179 = vld [vmem:[#allocation13 + $0x48] sm:$0xf]
        %v1180 = vld [vmem:[#allocation13 + $0x4c] sm:$0xff]
        %v1181 = vld [vmem:[#allocation13 + $0x54] sm:$0xff]
        %v1182 = vld [vmem:[#allocation13 + $0x5c] sm:$0xff]
        %v1183 = vld [vmem:[#allocation13 + $0x64] sm:$0xff]
        %v1184 = vld [vmem:[#allocation13 + $0x6c] sm:$0xff]
        %v1185 = vld [vmem:[#allocation13 + $0x74] sm:$0xff]
        %v1186 = vld [vmem:[#allocation13 + $0x7c] sm:$0xff]
        %v1187 = vld [vmem:[#allocation13 + $0x84] sm:$0xff]
        %v1188 = vld [vmem:[#allocation13 + $0x8c] sm:$0xff]
        %v1189 = vld [vmem:[#allocation13 + $0x94] sm:$0xf]
        %v1190 = vld [vmem:[#allocation13 + $0x98] sm:$0xff]
        %v1191 = vld [vmem:[#allocation13 + $0xa0] sm:$0xff]
        %v1192 = vld [vmem:[#allocation13 + $0xa8] sm:$0xff]
        %v1193 = vld [vmem:[#allocation13 + $0xb0] sm:$0xff]
        %v1194 = vld [vmem:[#allocation13 + $0xb8] sm:$0xff]
        %v1195 = vld [vmem:[#allocation13 + $0xc0] sm:$0xff]
        %v1196 = vld [vmem:[#allocation13 + $0xc8] sm:$0xff]
        %v1197 = vld [vmem:[#allocation13 + $0xd0] sm:$0xff]
        %v1198 = vld [vmem:[#allocation13 + $0xd8] sm:$0xff]
        %v1199 = vld [vmem:[#allocation13 + $0xe0] sm:$0xf]
        %v1200 = vld [vmem:[#allocation13 + $0xe4] sm:$0xff]
        %v1201 = vld [vmem:[#allocation13 + $0xec] sm:$0xff]
        %v1202 = vld [vmem:[#allocation13 + $0xf4] sm:$0xff]
        %v1203 = vld [vmem:[#allocation13 + $0xfc] sm:$0xff]
        %v1204 = vld [vmem:[#allocation13 + $0x104] sm:$0xff]
        %v1205 = vld [vmem:[#allocation13 + $0x10c] sm:$0xff]
        %v1206 = vld [vmem:[#allocation13 + $0x114] sm:$0xff]
        %v1207 = vld [vmem:[#allocation13 + $0x11c] sm:$0xff]
        %v1208 = vld [vmem:[#allocation13 + $0x124] sm:$0xff]
        %v1209 = vld [vmem:[#allocation13 + $0x12c] sm:$0xf]
        %v1210 = vld [vmem:[#allocation13 + $0x130] sm:$0xff]
        %v1211 = vld [vmem:[#allocation13 + $0x138] sm:$0xff]
        %v1212 = vld [vmem:[#allocation13 + $0x140] sm:$0xff]
        %v1213 = vld [vmem:[#allocation13 + $0x148] sm:$0xff]
        %v1214 = vld [vmem:[#allocation13 + $0x150] sm:$0xff]
        %v1215 = vld [vmem:[#allocation13 + $0x158] sm:$0xff]
        %v1216 = vld [vmem:[#allocation13 + $0x160] sm:$0xff]
        %v1217 = vld [vmem:[#allocation13 + $0x168] sm:$0xff]
        %v1218 = vld [vmem:[#allocation13 + $0x170] sm:$0xff]
        %v1219 = vld [vmem:[#allocation13 + $0x178] sm:$0xf]
        %v1220 = vld [vmem:[#allocation13 + $0x17c] sm:$0xff]
        %v1221 = vld [vmem:[#allocation13 + $0x184] sm:$0xff]
        %v1222 = vld [vmem:[#allocation13 + $0x18c] sm:$0xff]
        %v1223 = vld [vmem:[#allocation13 + $0x194] sm:$0xff]
        %v1224 = vld [vmem:[#allocation13 + $0x19c] sm:$0xff]
        %v1225 = vld [vmem:[#allocation13 + $0x1a4] sm:$0xff]
        %v1226 = vld [vmem:[#allocation13 + $0x1ac] sm:$0xff]
        %v1227 = vld [vmem:[#allocation13 + $0x1b4] sm:$0xff]
        %v1228 = vld [vmem:[#allocation13 + $0x1bc] sm:$0xff]
        %v1229 = vld [vmem:[#allocation13 + $0x1c4] sm:$0xf]
        %v1230 = vld [vmem:[#allocation13 + $0x1c8] sm:$0xff]
        %v1231 = vld [vmem:[#allocation13 + $0x1d0] sm:$0xff]
        %v1232 = vld [vmem:[#allocation13 + $0x1d8] sm:$0xff]
        %v1233 = vld [vmem:[#allocation13 + $0x1e0] sm:$0xff]
        %v1234 = vld [vmem:[#allocation13 + $0x1e8] sm:$0xff]
        %v1235 = vld [vmem:[#allocation13 + $0x1f0] sm:$0xff]
        %v1236 = vld [vmem:[#allocation13 + $0x1f8] sm:$0xff]
        %v1237 = vld [vmem:[#allocation13 + $0x200] sm:$0xff]
        %v1238 = vld [vmem:[#allocation13 + $0x208] sm:$0xff]
        %v1239 = vld [vmem:[#allocation13 + $0x210] sm:$0xf]
        %v1240 = vld [vmem:[#allocation13 + $0x214] sm:$0xff]
        %v1241 = vld [vmem:[#allocation13 + $0x21c] sm:$0xff]
        %v1242 = vld [vmem:[#allocation13 + $0x224] sm:$0xff]
        %v1243 = vld [vmem:[#allocation13 + $0x22c] sm:$0xff]
        %v1244 = vld [vmem:[#allocation13 + $0x234] sm:$0xff]
        %v1245 = vld [vmem:[#allocation13 + $0x23c] sm:$0xff]
        %v1246 = vld [vmem:[#allocation13 + $0x244] sm:$0xff]
        %v1247 = vld [vmem:[#allocation13 + $0x24c] sm:$0xff]
        %v1248 = vld [vmem:[#allocation13 + $0x254] sm:$0xff]
        %v1249 = vld [vmem:[#allocation13 + $0x25c] sm:$0xf]
        %v1250 = vld [vmem:[#allocation13 + $0x260] sm:$0xff]
        %v1251 = vld [vmem:[#allocation13 + $0x268] sm:$0xff]
        %v1252 = vld [vmem:[#allocation13 + $0x270] sm:$0xff]
        %v1253 = vld [vmem:[#allocation13 + $0x278] sm:$0xff]
        %v1254 = vld [vmem:[#allocation13 + $0x280] sm:$0xff]
        %v1255 = vld [vmem:[#allocation13 + $0x288] sm:$0xff]
        %v1256 = vld [vmem:[#allocation13 + $0x290] sm:$0xff]
        %v1257 = vld [vmem:[#allocation13 + $0x298] sm:$0xff]
        %v1258 = vld [vmem:[#allocation13 + $0x2a0] sm:$0xff]
        %v1259 = vld [vmem:[#allocation13 + $0x2a8] sm:$0xf]
        %v1260 = vld [vmem:[#allocation13 + $0x2ac] sm:$0xff]
        %v1261 = vld [vmem:[#allocation13 + $0x2b4] sm:$0xff]
        %v1262 = vld [vmem:[#allocation13 + $0x2bc] sm:$0xff]
        %v1263 = vld [vmem:[#allocation13 + $0x2c4] sm:$0xff]
        %v1264 = vld [vmem:[#allocation13 + $0x2cc] sm:$0xff]
        %v1265 = vld [vmem:[#allocation13 + $0x2d4] sm:$0xff]
        %v1266 = vld [vmem:[#allocation13 + $0x2dc] sm:$0xff]
        %v1267 = vld [vmem:[#allocation13 + $0x2e4] sm:$0xff]
        %v1268 = vld [vmem:[#allocation13 + $0x2ec] sm:$0xff]
        %v1269 = vld [vmem:[#allocation13 + $0x2f4] sm:$0xf]
        %v1270 = vld [vmem:[#allocation13 + $0x2f8] sm:$0xff]
        %v1271 = vld [vmem:[#allocation13 + $0x300] sm:$0xff]
        %v1272 = vld [vmem:[#allocation13 + $0x308] sm:$0xff]
        %v1273 = vld [vmem:[#allocation13 + $0x310] sm:$0xff]
        %v1274 = vld [vmem:[#allocation13 + $0x318] sm:$0xff]
        %v1275 = vld [vmem:[#allocation13 + $0x320] sm:$0xff]
        %v1276 = vld [vmem:[#allocation13 + $0x328] sm:$0xff]
        %v1277 = vld [vmem:[#allocation13 + $0x330] sm:$0xff]
        %v1278 = vld [vmem:[#allocation13 + $0x338] sm:$0xff]
        %v1279 = vld [vmem:[#allocation13 + $0x340] sm:$0xf]
        %v1280 = vld [vmem:[#allocation13 + $0x344] sm:$0xff]
        %v1281 = vld [vmem:[#allocation13 + $0x34c] sm:$0xff]
        %v1282 = vld [vmem:[#allocation13 + $0x354] sm:$0xff]
        %v1283 = vld [vmem:[#allocation13 + $0x35c] sm:$0xff]
        %v1284 = vld [vmem:[#allocation13 + $0x364] sm:$0xff]
        %v1285 = vld [vmem:[#allocation13 + $0x36c] sm:$0xff]
        %v1286 = vld [vmem:[#allocation13 + $0x374] sm:$0xff]
        %v1287 = vld [vmem:[#allocation13 + $0x37c] sm:$0xff]
        %v1288 = vld [vmem:[#allocation13 + $0x384] sm:$0xff]
        %v1289 = vld [vmem:[#allocation13 + $0x38c] sm:$0xf]
        %v1290 = vld [vmem:[#allocation13 + $0x390] sm:$0xff]
        %v1291 = vld [vmem:[#allocation13 + $0x398] sm:$0xff]
        %v1292 = vld [vmem:[#allocation13 + $0x3a0] sm:$0xff]
        %v1293 = vld [vmem:[#allocation13 + $0x3a8] sm:$0xff]
        %v1294 = vld [vmem:[#allocation13 + $0x3b0] sm:$0xff]
        %v1295 = vld [vmem:[#allocation13 + $0x3b8] sm:$0xff]
        %v1296 = vld [vmem:[#allocation13 + $0x3c0] sm:$0xff]
        %v1297 = vld [vmem:[#allocation13 + $0x3c8] sm:$0xff]
        %v1298 = vld [vmem:[#allocation13 + $0x3d0] sm:$0xff]
        %v1299 = vld [vmem:[#allocation13 + $0x3d8] sm:$0xf]
        %v1300 = vld [vmem:[#allocation13 + $0x3dc] sm:$0xff]
        %v1301 = vld [vmem:[#allocation13 + $0x3e4] sm:$0xff]
        %v1302 = vld [vmem:[#allocation13 + $0x3ec] sm:$0xff]
        %v1303 = vld [vmem:[#allocation13 + $0x3f4] sm:$0xff]
        %v1304 = vld [vmem:[#allocation13 + $0x3fc] sm:$0xff]
        %v1305 = vld [vmem:[#allocation13 + $0x404] sm:$0xff]
        %v1306 = vld [vmem:[#allocation13 + $0x40c] sm:$0xff]
        %v1307 = vld [vmem:[#allocation13 + $0x414] sm:$0xff]
        %v1308 = vld [vmem:[#allocation13 + $0x41c] sm:$0xff]
        %v1309 = vld [vmem:[#allocation13 + $0x424] sm:$0xf]
        %v1310 = vld [vmem:[#allocation13 + $0x428] sm:$0xff]
        %v1311 = vld [vmem:[#allocation13 + $0x430] sm:$0xff]
        %v1312 = vld [vmem:[#allocation13 + $0x438] sm:$0xff]
        %v1313 = vld [vmem:[#allocation13 + $0x440] sm:$0xff]
        %v1314 = vld [vmem:[#allocation13 + $0x448] sm:$0xff]
        %v1315 = vld [vmem:[#allocation13 + $0x450] sm:$0xff]
        %v1316 = vld [vmem:[#allocation13 + $0x458] sm:$0xff]
        %v1317 = vld [vmem:[#allocation13 + $0x460] sm:$0xff]
        %v1318 = vld [vmem:[#allocation13 + $0x468] sm:$0xff]
        %v1319 = vld [vmem:[#allocation13 + $0x470] sm:$0xf]
        %v1320 = vld [vmem:[#allocation13 + $0x474] sm:$0xff]
        %v1321 = vld [vmem:[#allocation13 + $0x47c] sm:$0xff]
        %v1322 = vld [vmem:[#allocation13 + $0x484] sm:$0xff]
        %v1323 = vld [vmem:[#allocation13 + $0x48c] sm:$0xff]
        %v1324 = vld [vmem:[#allocation13 + $0x494] sm:$0xff]
        %v1325 = vld [vmem:[#allocation13 + $0x49c] sm:$0xff]
        %v1326 = vld [vmem:[#allocation13 + $0x4a4] sm:$0xff]
        %v1327 = vld [vmem:[#allocation13 + $0x4ac] sm:$0xff]
        %v1328 = vld [vmem:[#allocation13 + $0x4b4] sm:$0xff]
        %v1329 = vld [vmem:[#allocation13 + $0x4bc] sm:$0xf]
        %v1330 = vld [vmem:[#allocation13 + $0x4c0] sm:$0xff]
        %v1331 = vld [vmem:[#allocation13 + $0x4c8] sm:$0xff]
        %v1332 = vld [vmem:[#allocation13 + $0x4d0] sm:$0xff]
        %v1333 = vld [vmem:[#allocation13 + $0x4d8] sm:$0xff]
        %v1334 = vld [vmem:[#allocation13 + $0x4e0] sm:$0xff]
        %v1335 = vld [vmem:[#allocation13 + $0x4e8] sm:$0xff]
        %v1336 = vld [vmem:[#allocation13 + $0x4f0] sm:$0xff]
        %v1337 = vld [vmem:[#allocation13 + $0x4f8] sm:$0xff]
        %v1338 = vld [vmem:[#allocation13 + $0x500] sm:$0xff]
        %v1339 = vld [vmem:[#allocation13 + $0x508] sm:$0xf]
        %v1340 = vld [vmem:[#allocation13 + $0x50c] sm:$0xff]
        %v1341 = vld [vmem:[#allocation13 + $0x514] sm:$0xff]
        %v1342 = vld [vmem:[#allocation13 + $0x51c] sm:$0xff]
        %v1343 = vld [vmem:[#allocation13 + $0x524] sm:$0xff]
        %v1344 = vld [vmem:[#allocation13 + $0x52c] sm:$0xff]
        %v1345 = vld [vmem:[#allocation13 + $0x534] sm:$0xff]
        %v1346 = vld [vmem:[#allocation13 + $0x53c] sm:$0xff]
        %v1347 = vld [vmem:[#allocation13 + $0x544] sm:$0xff]
        %v1348 = vld [vmem:[#allocation13 + $0x54c] sm:$0xff]
        %v1349 = vld [vmem:[#allocation13 + $0x554] sm:$0xf]
        %v1350 = vld [vmem:[#allocation13 + $0x558] sm:$0xff]
        %v1351 = vld [vmem:[#allocation13 + $0x560] sm:$0xff]
        %v1352 = vld [vmem:[#allocation13 + $0x568] sm:$0xff]
        %v1353 = vld [vmem:[#allocation13 + $0x570] sm:$0xff]
        %v1354 = vld [vmem:[#allocation13 + $0x578] sm:$0xff]
        %v1355 = vld [vmem:[#allocation13 + $0x580] sm:$0xff]
        %v1356 = vld [vmem:[#allocation13 + $0x588] sm:$0xff]
        %v1357 = vld [vmem:[#allocation13 + $0x590] sm:$0xff]
        %v1358 = vld [vmem:[#allocation13 + $0x598] sm:$0xff]
        %v1359 = vld [vmem:[#allocation13 + $0x5a0] sm:$0xf]
        %v1360 = vld [vmem:[#allocation13 + $0x5a4] sm:$0xff]
        %v1361 = vld [vmem:[#allocation13 + $0x5ac] sm:$0xff]
        %v1362 = vld [vmem:[#allocation13 + $0x5b4] sm:$0xff]
        %v1363 = vld [vmem:[#allocation13 + $0x5bc] sm:$0xff]
        %v1364 = vld [vmem:[#allocation13 + $0x5c4] sm:$0xff]
        %v1365 = vld [vmem:[#allocation13 + $0x5cc] sm:$0xff]
        %v1366 = vld [vmem:[#allocation13 + $0x5d4] sm:$0xff]
        %v1367 = vld [vmem:[#allocation13 + $0x5dc] sm:$0xff]
        %v1368 = vld [vmem:[#allocation13 + $0x5e4] sm:$0xff]
        %v1369 = vld [vmem:[#allocation13 + $0x5ec] sm:$0xf]
        %v1370 = vld [vmem:[#allocation13 + $0x5f0] sm:$0xff]
        %v1371 = vld [vmem:[#allocation13 + $0x5f8] sm:$0xff]
        %v1372 = vld [vmem:[#allocation13 + $0x600] sm:$0xff]
        %v1373 = vld [vmem:[#allocation13 + $0x608] sm:$0xff]
        %v1374 = vld [vmem:[#allocation13 + $0x610] sm:$0xff]
        %v1375 = vld [vmem:[#allocation13 + $0x618] sm:$0xff]
        %v1376 = vld [vmem:[#allocation13 + $0x620] sm:$0xff]
        %v1377 = vld [vmem:[#allocation13 + $0x628] sm:$0xff]
        %v1378 = vld [vmem:[#allocation13 + $0x630] sm:$0xff]
        %v1379 = vld [vmem:[#allocation13 + $0x638] sm:$0xf]
        %v1380 = vld [vmem:[#allocation13 + $0x63c] sm:$0xff]
        %v1381 = vld [vmem:[#allocation13 + $0x644] sm:$0xff]
        %v1382 = vld [vmem:[#allocation13 + $0x64c] sm:$0xff]
        %v1383 = vld [vmem:[#allocation13 + $0x654] sm:$0xff]
        %v1384 = vld [vmem:[#allocation13 + $0x65c] sm:$0xff]
        %v1385 = vld [vmem:[#allocation13 + $0x664] sm:$0xff]
        %v1386 = vld [vmem:[#allocation13 + $0x66c] sm:$0xff]
        %v1387 = vld [vmem:[#allocation13 + $0x674] sm:$0xff]
        %v1388 = vld [vmem:[#allocation13 + $0x67c] sm:$0xff]
        %v1389 = vld [vmem:[#allocation13 + $0x684] sm:$0xf]
        %v1390 = vld [vmem:[#allocation13 + $0x688] sm:$0xff]
        %v1391 = vld [vmem:[#allocation13 + $0x690] sm:$0xff]
        %v1392 = vld [vmem:[#allocation13 + $0x698] sm:$0xff]
        %v1393 = vld [vmem:[#allocation13 + $0x6a0] sm:$0xff]
        %v1394 = vld [vmem:[#allocation13 + $0x6a8] sm:$0xff]
        %v1395 = vld [vmem:[#allocation13 + $0x6b0] sm:$0xff]
        %v1396 = vld [vmem:[#allocation13 + $0x6b8] sm:$0xff]
        %v1397 = vld [vmem:[#allocation13 + $0x6c0] sm:$0xff]
        %v1398 = vld [vmem:[#allocation13 + $0x6c8] sm:$0xff]
        %v1399 = vld [vmem:[#allocation13 + $0x6d0] sm:$0xf]
        %v1400 = vld [vmem:[#allocation13 + $0x6d4] sm:$0xff]
        %v1401 = vld [vmem:[#allocation13 + $0x6dc] sm:$0xff]
        %v1402 = vld [vmem:[#allocation13 + $0x6e4] sm:$0xff]
        %v1403 = vld [vmem:[#allocation13 + $0x6ec] sm:$0xff]
        %v1404 = vld [vmem:[#allocation13 + $0x6f4] sm:$0xff]
        %v1405 = vld [vmem:[#allocation13 + $0x6fc] sm:$0xff]
        %v1406 = vld [vmem:[#allocation13 + $0x704] sm:$0xff]
        %v1407 = vld [vmem:[#allocation13 + $0x70c] sm:$0xff]
        %v1408 = vld [vmem:[#allocation13 + $0x714] sm:$0xff]
        %v1409 = vld [vmem:[#allocation13 + $0x71c] sm:$0xf]
        %v1410 = vld [vmem:[#allocation13 + $0x720] sm:$0xff]
        %v1411 = vld [vmem:[#allocation13 + $0x728] sm:$0xff]
        %v1412 = vld [vmem:[#allocation13 + $0x730] sm:$0xff]
        %v1413 = vld [vmem:[#allocation13 + $0x738] sm:$0xff]
        %v1414 = vld [vmem:[#allocation13 + $0x740] sm:$0xff]
        %v1415 = vld [vmem:[#allocation13 + $0x748] sm:$0xff]
        %v1416 = vld [vmem:[#allocation13 + $0x750] sm:$0xff]
        %v1417 = vld [vmem:[#allocation13 + $0x758] sm:$0xff]
        %v1418 = vld [vmem:[#allocation13 + $0x760] sm:$0xff]
        %v1419 = vld [vmem:[#allocation13 + $0x768] sm:$0xf]
        %v1420 = vld [vmem:[#allocation13 + $0x76c] sm:$0xff]
        %v1421 = vld [vmem:[#allocation13 + $0x774] sm:$0xff]
        %v1422 = vld [vmem:[#allocation13 + $0x77c] sm:$0xff]
        %v1423 = vld [vmem:[#allocation13 + $0x784] sm:$0xff]
        %v1424 = vld [vmem:[#allocation13 + $0x78c] sm:$0xff]
        %v1425 = vld [vmem:[#allocation13 + $0x794] sm:$0xff]
        %v1426 = vld [vmem:[#allocation13 + $0x79c] sm:$0xff]
        %v1427 = vld [vmem:[#allocation13 + $0x7a4] sm:$0xff]
        %v1428 = vld [vmem:[#allocation13 + $0x7ac] sm:$0xff]
        %v1429 = vld [vmem:[#allocation13 + $0x7b4] sm:$0xf]
        %v1430 = vld [vmem:[#allocation13 + $0x7b8] sm:$0xff]
        %v1431 = vld [vmem:[#allocation13 + $0x7c0] sm:$0xff]
        %v1432 = vld [vmem:[#allocation13 + $0x7c8] sm:$0xff]
        %v1433 = vld [vmem:[#allocation13 + $0x7d0] sm:$0xff]
        %v1434 = vld [vmem:[#allocation13 + $0x7d8] sm:$0xff]
        %v1435 = vld [vmem:[#allocation13 + $0x7e0] sm:$0xff]
        %v1436 = vld [vmem:[#allocation13 + $0x7e8] sm:$0xff]
        %v1437 = vld [vmem:[#allocation13 + $0x7f0] sm:$0xff]
        %v1438 = vld [vmem:[#allocation13 + $0x7f8] sm:$0xff]
        %v1439 = vld [vmem:[#allocation13 + $0x800] sm:$0xf]
        %v1440 = vld [vmem:[#allocation13 + $0x804] sm:$0xff]
        %v1441 = vld [vmem:[#allocation13 + $0x80c] sm:$0xff]
        %v1442 = vld [vmem:[#allocation13 + $0x814] sm:$0xff]
        %v1443 = vld [vmem:[#allocation13 + $0x81c] sm:$0xff]
        %v1444 = vld [vmem:[#allocation13 + $0x824] sm:$0xff]
        %v1445 = vld [vmem:[#allocation13 + $0x82c] sm:$0xff]
        %v1446 = vld [vmem:[#allocation13 + $0x834] sm:$0xff]
        %v1447 = vld [vmem:[#allocation13 + $0x83c] sm:$0xff]
        %v1448 = vld [vmem:[#allocation13 + $0x844] sm:$0xff]
        %v1449 = vld [vmem:[#allocation13 + $0x84c] sm:$0xf]
        %v1450 = vld [vmem:[#allocation13 + $0x850] sm:$0xff]
        %v1451 = vld [vmem:[#allocation13 + $0x858] sm:$0xff]
        %v1452 = vld [vmem:[#allocation13 + $0x860] sm:$0xff]
        %v1453 = vld [vmem:[#allocation13 + $0x868] sm:$0xff]
        %v1454 = vld [vmem:[#allocation13 + $0x870] sm:$0xff]
        %v1455 = vld [vmem:[#allocation13 + $0x878] sm:$0xff]
        %v1456 = vld [vmem:[#allocation13 + $0x880] sm:$0xff]
        %v1457 = vld [vmem:[#allocation13 + $0x888] sm:$0xff]
        %v1458 = vld [vmem:[#allocation13 + $0x890] sm:$0xff]
        %v1459 = vld [vmem:[#allocation13 + $0x898] sm:$0xf]
        %v1460 = vld [vmem:[#allocation13 + $0x89c] sm:$0xff]
        %v1461 = vld [vmem:[#allocation13 + $0x8a4] sm:$0xff]
        %v1462 = vld [vmem:[#allocation13 + $0x8ac] sm:$0xff]
        %v1463 = vld [vmem:[#allocation13 + $0x8b4] sm:$0xff]
        %v1464 = vld [vmem:[#allocation13 + $0x8bc] sm:$0xff]
        %v1465 = vld [vmem:[#allocation13 + $0x8c4] sm:$0xff]
        %v1466 = vld [vmem:[#allocation13 + $0x8cc] sm:$0xff]
        %v1467 = vld [vmem:[#allocation13 + $0x8d4] sm:$0xff]
        %v1468 = vld [vmem:[#allocation13 + $0x8dc] sm:$0xff]
        %v1469 = vld [vmem:[#allocation13 + $0x8e4] sm:$0xf]
        %v1470 = vld [vmem:[#allocation13 + $0x8e8] sm:$0xff]
        %v1471 = vld [vmem:[#allocation13 + $0x8f0] sm:$0xff]
        %v1472 = vld [vmem:[#allocation13 + $0x8f8] sm:$0xff]
        %v1473 = vld [vmem:[#allocation13 + $0x900] sm:$0xff]
        %v1474 = vld [vmem:[#allocation13 + $0x908] sm:$0xff]
        %v1475 = vld [vmem:[#allocation13 + $0x910] sm:$0xff]
        %v1476 = vld [vmem:[#allocation13 + $0x918] sm:$0xff]
        %v1477 = vld [vmem:[#allocation13 + $0x920] sm:$0xff]
        %v1478 = vld [vmem:[#allocation13 + $0x928] sm:$0xff]
        %v1479 = vld [vmem:[#allocation13 + $0x930] sm:$0xf]
        %v1480 = vld [vmem:[#allocation13 + $0x934] sm:$0xff]
        %v1481 = vld [vmem:[#allocation13 + $0x93c] sm:$0xff]
        %v1482 = vld [vmem:[#allocation13 + $0x944] sm:$0xff]
        %v1483 = vld [vmem:[#allocation13 + $0x94c] sm:$0xff]
        %v1484 = vld [vmem:[#allocation13 + $0x954] sm:$0xff]
        %v1485 = vld [vmem:[#allocation13 + $0x95c] sm:$0xff]
        %v1486 = vld [vmem:[#allocation13 + $0x964] sm:$0xff]
        %v1487 = vld [vmem:[#allocation13 + $0x96c] sm:$0xff]
        %v1488 = vld [vmem:[#allocation13 + $0x974] sm:$0xff]
        %v1489 = vld [vmem:[#allocation13 + $0x97c] sm:$0xf]
        %v1490 = vld [vmem:[#allocation13 + $0x980] sm:$0xff]
        %v1491 = vld [vmem:[#allocation13 + $0x988] sm:$0xff]
        %v1492 = vld [vmem:[#allocation13 + $0x990] sm:$0xff]
        %v1493 = vld [vmem:[#allocation13 + $0x998] sm:$0xff]
        %v1494 = vld [vmem:[#allocation13 + $0x9a0] sm:$0xff]
        %v1495 = vld [vmem:[#allocation13 + $0x9a8] sm:$0xff]
        %v1496 = vld [vmem:[#allocation13 + $0x9b0] sm:$0xff]
        %v1497 = vld [vmem:[#allocation13 + $0x9b8] sm:$0xff]
        %v1498 = vld [vmem:[#allocation13 + $0x9c0] sm:$0xff]
        %v1499 = vld [vmem:[#allocation13 + $0x9c8] sm:$0xf]
        %v1500 = vld [vmem:[#allocation13 + $0x9cc] sm:$0xff]
        %v1501 = vld [vmem:[#allocation13 + $0x9d4] sm:$0xff]
        %v1502 = vld [vmem:[#allocation13 + $0x9dc] sm:$0xff]
        %v1503 = vld [vmem:[#allocation13 + $0x9e4] sm:$0xff]
        %v1504 = vld [vmem:[#allocation13 + $0x9ec] sm:$0xff]
        %v1505 = vld [vmem:[#allocation13 + $0x9f4] sm:$0xff]
        %v1506 = vld [vmem:[#allocation13 + $0x9fc] sm:$0xff]
        %v1507 = vld [vmem:[#allocation13 + $0xa04] sm:$0xff]
        %v1508 = vld [vmem:[#allocation13 + $0xa0c] sm:$0xff]
        %v1509 = vld [vmem:[#allocation13 + $0xa14] sm:$0xf]
        %v1510 = vld [vmem:[#allocation13 + $0xa18] sm:$0xff]
        %v1511 = vld [vmem:[#allocation13 + $0xa20] sm:$0xff]
        %v1512 = vld [vmem:[#allocation13 + $0xa28] sm:$0xff]
        %v1513 = vld [vmem:[#allocation13 + $0xa30] sm:$0xff]
        %v1514 = vld [vmem:[#allocation13 + $0xa38] sm:$0xff]
        %v1515 = vld [vmem:[#allocation13 + $0xa40] sm:$0xff]
        %v1516 = vld [vmem:[#allocation13 + $0xa48] sm:$0xff]
        %v1517 = vld [vmem:[#allocation13 + $0xa50] sm:$0xff]
        %v1518 = vld [vmem:[#allocation13 + $0xa58] sm:$0xff]
        %v1519 = vld [vmem:[#allocation13 + $0xa60] sm:$0xf]
        %v1520 = vld [vmem:[#allocation13 + $0xa64] sm:$0xff]
        %v1521 = vld [vmem:[#allocation13 + $0xa6c] sm:$0xff]
        %v1522 = vld [vmem:[#allocation13 + $0xa74] sm:$0xff]
        %v1523 = vld [vmem:[#allocation13 + $0xa7c] sm:$0xff]
        %v1524 = vld [vmem:[#allocation13 + $0xa84] sm:$0xff]
        %v1525 = vld [vmem:[#allocation13 + $0xa8c] sm:$0xff]
        %v1526 = vld [vmem:[#allocation13 + $0xa94] sm:$0xff]
        %v1527 = vld [vmem:[#allocation13 + $0xa9c] sm:$0xff]
        %v1528 = vld [vmem:[#allocation13 + $0xaa4] sm:$0xff]
        %v1529 = vld [vmem:[#allocation13 + $0xaac] sm:$0xf]
        %v1530 = vld [vmem:[#allocation13 + $0xab0] sm:$0xff]
        %v1531 = vld [vmem:[#allocation13 + $0xab8] sm:$0xff]
        %v1532 = vld [vmem:[#allocation13 + $0xac0] sm:$0xff]
        %v1533 = vld [vmem:[#allocation13 + $0xac8] sm:$0xff]
        %v1534 = vld [vmem:[#allocation13 + $0xad0] sm:$0xff]
        %v1535 = vld [vmem:[#allocation13 + $0xad8] sm:$0xff]
        %v1536 = vld [vmem:[#allocation13 + $0xae0] sm:$0xff]
        %v1537 = vld [vmem:[#allocation13 + $0xae8] sm:$0xff]
        %v1538 = vld [vmem:[#allocation13 + $0xaf0] sm:$0xff]
        %v1539 = vld [vmem:[#allocation13 + $0xaf8] sm:$0xf]
        %v1540 = vld [vmem:[#allocation13 + $0xafc] sm:$0xff]
        %v1541 = vld [vmem:[#allocation13 + $0xb04] sm:$0xff]
        %v1542 = vld [vmem:[#allocation13 + $0xb0c] sm:$0xff]
        %v1543 = vld [vmem:[#allocation13 + $0xb14] sm:$0xff]
        %v1544 = vld [vmem:[#allocation13 + $0xb1c] sm:$0xff]
        %v1545 = vld [vmem:[#allocation13 + $0xb24] sm:$0xff]
        %v1546 = vld [vmem:[#allocation13 + $0xb2c] sm:$0xff]
        %v1547 = vld [vmem:[#allocation13 + $0xb34] sm:$0xff]
        %v1548 = vld [vmem:[#allocation13 + $0xb3c] sm:$0xff]
        %v1549 = vld [vmem:[#allocation13 + $0xb44] sm:$0xf]
        %v1550 = vld [vmem:[#allocation13 + $0xb48] sm:$0xff]
        %v1551 = vld [vmem:[#allocation13 + $0xb50] sm:$0xff]
        %v1552 = vld [vmem:[#allocation13 + $0xb58] sm:$0xff]
        %v1553 = vld [vmem:[#allocation13 + $0xb60] sm:$0xff]
        %v1554 = vld [vmem:[#allocation13 + $0xb68] sm:$0xff]
        %v1555 = vld [vmem:[#allocation13 + $0xb70] sm:$0xff]
        %v1556 = vld [vmem:[#allocation13 + $0xb78] sm:$0xff]
        %v1557 = vld [vmem:[#allocation13 + $0xb80] sm:$0xff]
        %v1558 = vld [vmem:[#allocation13 + $0xb88] sm:$0xff]
        %v1559 = vld [vmem:[#allocation13 + $0xb90] sm:$0xf]
        %v1560 = vld [vmem:[#allocation13 + $0xb94] sm:$0xff]
        %v1561 = vld [vmem:[#allocation13 + $0xb9c] sm:$0xff]
        %v1562 = vld [vmem:[#allocation13 + $0xba4] sm:$0xff]
        %v1563 = vld [vmem:[#allocation13 + $0xbac] sm:$0xff]
        %v1564 = vld [vmem:[#allocation13 + $0xbb4] sm:$0xff]
        %v1565 = vld [vmem:[#allocation13 + $0xbbc] sm:$0xff]
        %v1566 = vld [vmem:[#allocation13 + $0xbc4] sm:$0xff]
        %v1567 = vld [vmem:[#allocation13 + $0xbcc] sm:$0xff]
        %v1568 = vld [vmem:[#allocation13 + $0xbd4] sm:$0xff]
        %v1569 = vld [vmem:[#allocation13 + $0xbdc] sm:$0xf]
        %v1570 = vld [vmem:[#allocation13 + $0xbe0] sm:$0xff]
        %v1571 = vld [vmem:[#allocation13 + $0xbe8] sm:$0xff]
        %v1572 = vld [vmem:[#allocation13 + $0xbf0] sm:$0xff]
        %v1573 = vld [vmem:[#allocation13 + $0xbf8] sm:$0xff]
        %v1574 = vld [vmem:[#allocation13 + $0xc00] sm:$0xff]
        %v1575 = vld [vmem:[#allocation13 + $0xc08] sm:$0xff]
        %v1576 = vld [vmem:[#allocation13 + $0xc10] sm:$0xff]
        %v1577 = vld [vmem:[#allocation13 + $0xc18] sm:$0xff]
        %v1578 = vld [vmem:[#allocation13 + $0xc20] sm:$0xff]
        %v1579 = vld [vmem:[#allocation13 + $0xc28] sm:$0xf]
        %v1580 = vld [vmem:[#allocation13 + $0xc2c] sm:$0xff]
        %v1581 = vld [vmem:[#allocation13 + $0xc34] sm:$0xff]
        %v1582 = vld [vmem:[#allocation13 + $0xc3c] sm:$0xff]
        %v1583 = vld [vmem:[#allocation13 + $0xc44] sm:$0xff]
        %v1584 = vld [vmem:[#allocation13 + $0xc4c] sm:$0xff]
        %v1585 = vld [vmem:[#allocation13 + $0xc54] sm:$0xff]
        %v1586 = vld [vmem:[#allocation13 + $0xc5c] sm:$0xff]
        %v1587 = vld [vmem:[#allocation13 + $0xc64] sm:$0xff]
        %v1588 = vld [vmem:[#allocation13 + $0xc6c] sm:$0xff]
        %v1589 = vld [vmem:[#allocation13 + $0xc74] sm:$0xf]
        %v1590 = vld [vmem:[#allocation13 + $0xc78] sm:$0xff]
        %v1591 = vld [vmem:[#allocation13 + $0xc80] sm:$0xff]
        %v1592 = vld [vmem:[#allocation13 + $0xc88] sm:$0xff]
        %v1593 = vld [vmem:[#allocation13 + $0xc90] sm:$0xff]
        %v1594 = vld [vmem:[#allocation13 + $0xc98] sm:$0xff]
        %v1595 = vld [vmem:[#allocation13 + $0xca0] sm:$0xff]
        %v1596 = vld [vmem:[#allocation13 + $0xca8] sm:$0xff]
        %v1597 = vld [vmem:[#allocation13 + $0xcb0] sm:$0xff]
        %v1598 = vld [vmem:[#allocation13 + $0xcb8] sm:$0xff]
        %v1599 = vld [vmem:[#allocation13 + $0xcc0] sm:$0xf]
        %v1600 = vld [vmem:[#allocation13 + $0xcc4] sm:$0xff]
        %v1601 = vld [vmem:[#allocation13 + $0xccc] sm:$0xff]
        %v1602 = vld [vmem:[#allocation13 + $0xcd4] sm:$0xff]
        %v1603 = vld [vmem:[#allocation13 + $0xcdc] sm:$0xff]
        %v1604 = vld [vmem:[#allocation13 + $0xce4] sm:$0xff]
        %v1605 = vld [vmem:[#allocation13 + $0xcec] sm:$0xff]
        %v1606 = vld [vmem:[#allocation13 + $0xcf4] sm:$0xff]
        %v1607 = vld [vmem:[#allocation13 + $0xcfc] sm:$0xff]
        %v1608 = vld [vmem:[#allocation13 + $0xd04] sm:$0xff]
        %v1609 = vld [vmem:[#allocation13 + $0xd0c] sm:$0xf]
        %v1610 = vld [vmem:[#allocation13 + $0xd10] sm:$0xff]
        %v1611 = vld [vmem:[#allocation13 + $0xd18] sm:$0xff]
        %v1612 = vld [vmem:[#allocation13 + $0xd20] sm:$0xff]
        %v1613 = vld [vmem:[#allocation13 + $0xd28] sm:$0xff]
        %v1614 = vld [vmem:[#allocation13 + $0xd30] sm:$0xff]
        %v1615 = vld [vmem:[#allocation13 + $0xd38] sm:$0xff]
        %v1616 = vld [vmem:[#allocation13 + $0xd40] sm:$0xff]
        %v1617 = vld [vmem:[#allocation13 + $0xd48] sm:$0xff]
        %v1618 = vld [vmem:[#allocation13 + $0xd50] sm:$0xff]
        %v1619 = vld [vmem:[#allocation13 + $0xd58] sm:$0xf]
        %v1620 = vld [vmem:[#allocation13 + $0xd5c] sm:$0xff]
        %v1621 = vld [vmem:[#allocation13 + $0xd64] sm:$0xff]
        %v1622 = vld [vmem:[#allocation13 + $0xd6c] sm:$0xff]
        %v1623 = vld [vmem:[#allocation13 + $0xd74] sm:$0xff]
        %v1624 = vld [vmem:[#allocation13 + $0xd7c] sm:$0xff]
        %v1625 = vld [vmem:[#allocation13 + $0xd84] sm:$0xff]
        %v1626 = vld [vmem:[#allocation13 + $0xd8c] sm:$0xff]
        %v1627 = vld [vmem:[#allocation13 + $0xd94] sm:$0xff]
        %v1628 = vld [vmem:[#allocation13 + $0xd9c] sm:$0xff]
        %v1629 = vld [vmem:[#allocation13 + $0xda4] sm:$0xf]
        %v1630 = vld [vmem:[#allocation13 + $0xda8] sm:$0xff]
        %v1631 = vld [vmem:[#allocation13 + $0xdb0] sm:$0xff]
        %v1632 = vld [vmem:[#allocation13 + $0xdb8] sm:$0xff]
        %v1633 = vld [vmem:[#allocation13 + $0xdc0] sm:$0xff]
        %v1634 = vld [vmem:[#allocation13 + $0xdc8] sm:$0xff]
        %v1635 = vld [vmem:[#allocation13 + $0xdd0] sm:$0xff]
        %v1636 = vld [vmem:[#allocation13 + $0xdd8] sm:$0xff]
        %v1637 = vld [vmem:[#allocation13 + $0xde0] sm:$0xff]
        %v1638 = vld [vmem:[#allocation13 + $0xde8] sm:$0xff]
        %v1639 = vld [vmem:[#allocation13 + $0xdf0] sm:$0xf]
        %v1640 = vld [vmem:[#allocation13 + $0xdf4] sm:$0xff]
        %v1641 = vld [vmem:[#allocation13 + $0xdfc] sm:$0xff]
        %v1642 = vld [vmem:[#allocation13 + $0xe04] sm:$0xff]
        %v1643 = vld [vmem:[#allocation13 + $0xe0c] sm:$0xff]
        %v1644 = vld [vmem:[#allocation13 + $0xe14] sm:$0xff]
        %v1645 = vld [vmem:[#allocation13 + $0xe1c] sm:$0xff]
        %v1646 = vld [vmem:[#allocation13 + $0xe24] sm:$0xff]
        %v1647 = vld [vmem:[#allocation13 + $0xe2c] sm:$0xff]
        %v1648 = vld [vmem:[#allocation13 + $0xe34] sm:$0xff]
        %v1649 = vld [vmem:[#allocation13 + $0xe3c] sm:$0xf]
        %v1650 = vld [vmem:[#allocation13 + $0xe40] sm:$0xff]
        %v1651 = vld [vmem:[#allocation13 + $0xe48] sm:$0xff]
        %v1652 = vld [vmem:[#allocation13 + $0xe50] sm:$0xff]
        %v1653 = vld [vmem:[#allocation13 + $0xe58] sm:$0xff]
        %v1654 = vld [vmem:[#allocation13 + $0xe60] sm:$0xff]
        %v1655 = vld [vmem:[#allocation13 + $0xe68] sm:$0xff]
        %v1656 = vld [vmem:[#allocation13 + $0xe70] sm:$0xff]
        %v1657 = vld [vmem:[#allocation13 + $0xe78] sm:$0xff]
        %v1658 = vld [vmem:[#allocation13 + $0xe80] sm:$0xff]
        %v1659 = vld [vmem:[#allocation13 + $0xe88] sm:$0xf]
        %v1660 = vld [vmem:[#allocation13 + $0xe8c] sm:$0xff]
        %v1661 = vld [vmem:[#allocation13 + $0xe94] sm:$0xff]
        %v1662 = vld [vmem:[#allocation13 + $0xe9c] sm:$0xff]
        %v1663 = vld [vmem:[#allocation13 + $0xea4] sm:$0xff]
        %v1664 = vld [vmem:[#allocation13 + $0xeac] sm:$0xff]
        %v1665 = vld [vmem:[#allocation13 + $0xeb4] sm:$0xff]
        %v1666 = vld [vmem:[#allocation13 + $0xebc] sm:$0xff]
        %v1667 = vld [vmem:[#allocation13 + $0xec4] sm:$0xff]
        %v1668 = vld [vmem:[#allocation13 + $0xecc] sm:$0xff]
        %v1669 = vld [vmem:[#allocation13 + $0xed4] sm:$0xf]
        %v1670 = vld [vmem:[#allocation13 + $0xed8] sm:$0xff]
        %v1671 = vld [vmem:[#allocation13 + $0xee0] sm:$0xff]
        %v1672 = vld [vmem:[#allocation13 + $0xee8] sm:$0xff]
        %v1673 = vld [vmem:[#allocation13 + $0xef0] sm:$0xff]
        %v1674 = vld [vmem:[#allocation13 + $0xef8] sm:$0xff]
        %v1675 = vld [vmem:[#allocation13 + $0xf00] sm:$0xff]
        %v1676 = vld [vmem:[#allocation13 + $0xf08] sm:$0xff]
        %v1677 = vld [vmem:[#allocation13 + $0xf10] sm:$0xff]
        %v1678 = vld [vmem:[#allocation13 + $0xf18] sm:$0xff]
        %v1679 = vld [vmem:[#allocation13 + $0xf20] sm:$0xf]
        %v1680 = vld [vmem:[#allocation13 + $0xf24] sm:$0xff]
        %v1681 = vld [vmem:[#allocation13 + $0xf2c] sm:$0xff]
        %v1682 = vld [vmem:[#allocation13 + $0xf34] sm:$0xff]
        %v1683 = vld [vmem:[#allocation13 + $0xf3c] sm:$0xff]
        %v1684 = vld [vmem:[#allocation13 + $0xf44] sm:$0xff]
        %v1685 = vld [vmem:[#allocation13 + $0xf4c] sm:$0xff]
        %v1686 = vld [vmem:[#allocation13 + $0xf54] sm:$0xff]
        %v1687 = vld [vmem:[#allocation13 + $0xf5c] sm:$0xff]
        %v1688 = vld [vmem:[#allocation13 + $0xf64] sm:$0xff]
        %v1689 = vld [vmem:[#allocation13 + $0xf6c] sm:$0xf]
        %v1690 = vld [vmem:[#allocation13 + $0xf70] sm:$0xff]
        %v1691 = vld [vmem:[#allocation13 + $0xf78] sm:$0xff]
        %v1692 = vld [vmem:[#allocation13 + $0xf80] sm:$0xff]
        %v1693 = vld [vmem:[#allocation13 + $0xf88] sm:$0xff]
        %v1694 = vld [vmem:[#allocation13 + $0xf90] sm:$0xff]
        %v1695 = vld [vmem:[#allocation13 + $0xf98] sm:$0xff]
        %v1696 = vld [vmem:[#allocation13 + $0xfa0] sm:$0xff]
        %v1697 = vld [vmem:[#allocation13 + $0xfa8] sm:$0xff]
        %v1698 = vld [vmem:[#allocation13 + $0xfb0] sm:$0xff]
        %v1699 = vld [vmem:[#allocation13 + $0xfb8] sm:$0xf]
        %v1700 = vld [vmem:[#allocation13 + $0xfbc] sm:$0xff]
        %v1701 = vld [vmem:[#allocation13 + $0xfc4] sm:$0xff]
        %v1702 = vld [vmem:[#allocation13 + $0xfcc] sm:$0xff]
        %v1703 = vld [vmem:[#allocation13 + $0xfd4] sm:$0xff]
        %v1704 = vld [vmem:[#allocation13 + $0xfdc] sm:$0xff]
        %v1705 = vld [vmem:[#allocation13 + $0xfe4] sm:$0xff]
        %v1706 = vld [vmem:[#allocation13 + $0xfec] sm:$0xff]
        %v1707 = vld [vmem:[#allocation13 + $0xff4] sm:$0xff]
        %v1708 = vld [vmem:[#allocation13 + $0xffc] sm:$0xff]
        %v1709 = vld [vmem:[#allocation13 + $0x1004] sm:$0xf]
        %v1710 = vld [vmem:[#allocation13 + $0x1008] sm:$0xff]
        %v1711 = vld [vmem:[#allocation13 + $0x1010] sm:$0xff]
        %v1712 = vld [vmem:[#allocation13 + $0x1018] sm:$0xff]
        %v1713 = vld [vmem:[#allocation13 + $0x1020] sm:$0xff]
        %v1714 = vld [vmem:[#allocation13 + $0x1028] sm:$0xff]
        %v1715 = vld [vmem:[#allocation13 + $0x1030] sm:$0xff]
        %v1716 = vld [vmem:[#allocation13 + $0x1038] sm:$0xff]
        %v1717 = vld [vmem:[#allocation13 + $0x1040] sm:$0xff]
        %v1718 = vld [vmem:[#allocation13 + $0x1048] sm:$0xff]
        %v1719 = vld [vmem:[#allocation13 + $0x1050] sm:$0xf]
        %v1720 = vld [vmem:[#allocation13 + $0x1054] sm:$0xff]
        %v1721 = vld [vmem:[#allocation13 + $0x105c] sm:$0xff]
        %v1722 = vld [vmem:[#allocation13 + $0x1064] sm:$0xff]
        %v1723 = vld [vmem:[#allocation13 + $0x106c] sm:$0xff]
        %v1724 = vld [vmem:[#allocation13 + $0x1074] sm:$0xff]
        %v1725 = vld [vmem:[#allocation13 + $0x107c] sm:$0xff]
        %v1726 = vld [vmem:[#allocation13 + $0x1084] sm:$0xff]
        %v1727 = vld [vmem:[#allocation13 + $0x108c] sm:$0xff]
        %v1728 = vld [vmem:[#allocation13 + $0x1094] sm:$0xff]
        %v1729 = vld [vmem:[#allocation13 + $0x109c] sm:$0xf]
        %v1730 = vld [vmem:[#allocation13 + $0x10a0] sm:$0xff]
        %v1731 = vld [vmem:[#allocation13 + $0x10a8] sm:$0xff]
        %v1732 = vld [vmem:[#allocation13 + $0x10b0] sm:$0xff]
        %v1733 = vld [vmem:[#allocation13 + $0x10b8] sm:$0xff]
        %v1734 = vld [vmem:[#allocation13 + $0x10c0] sm:$0xff]
        %v1735 = vld [vmem:[#allocation13 + $0x10c8] sm:$0xff]
        %v1736 = vld [vmem:[#allocation13 + $0x10d0] sm:$0xff]
        %v1737 = vld [vmem:[#allocation13 + $0x10d8] sm:$0xff]
        %v1738 = vld [vmem:[#allocation13 + $0x10e0] sm:$0xff]
        %v1739 = vld [vmem:[#allocation13 + $0x10e8] sm:$0xf]
        %v1740 = vld [vmem:[#allocation13 + $0x10ec] sm:$0xff]
        %v1741 = vld [vmem:[#allocation13 + $0x10f4] sm:$0xff]
        %v1742 = vld [vmem:[#allocation13 + $0x10fc] sm:$0xff]
        %v1743 = vld [vmem:[#allocation13 + $0x1104] sm:$0xff]
        %v1744 = vld [vmem:[#allocation13 + $0x110c] sm:$0xff]
        %v1745 = vld [vmem:[#allocation13 + $0x1114] sm:$0xff]
        %v1746 = vld [vmem:[#allocation13 + $0x111c] sm:$0xff]
        %v1747 = vld [vmem:[#allocation13 + $0x1124] sm:$0xff]
        %v1748 = vld [vmem:[#allocation13 + $0x112c] sm:$0xff]
        %v1749 = vld [vmem:[#allocation13 + $0x1134] sm:$0xf]
        %v1750 = vld [vmem:[#allocation13 + $0x1138] sm:$0xff]
        %v1751 = vld [vmem:[#allocation13 + $0x1140] sm:$0xff]
        %v1752 = vld [vmem:[#allocation13 + $0x1148] sm:$0xff]
        %v1753 = vld [vmem:[#allocation13 + $0x1150] sm:$0xff]
        %v1754 = vld [vmem:[#allocation13 + $0x1158] sm:$0xff]
        %v1755 = vld [vmem:[#allocation13 + $0x1160] sm:$0xff]
        %v1756 = vld [vmem:[#allocation13 + $0x1168] sm:$0xff]
        %v1757 = vld [vmem:[#allocation13 + $0x1170] sm:$0xff]
        %v1758 = vld [vmem:[#allocation13 + $0x1178] sm:$0xff]
        %v1759 = vld [vmem:[#allocation13 + $0x1180] sm:$0xf]
        %v1760 = vld [vmem:[#allocation13 + $0x1184] sm:$0xff]
        %v1761 = vld [vmem:[#allocation13 + $0x118c] sm:$0xff]
        %v1762 = vld [vmem:[#allocation13 + $0x1194] sm:$0xff]
        %v1763 = vld [vmem:[#allocation13 + $0x119c] sm:$0xff]
        %v1764 = vld [vmem:[#allocation13 + $0x11a4] sm:$0xff]
        %v1765 = vld [vmem:[#allocation13 + $0x11ac] sm:$0xff]
        %v1766 = vld [vmem:[#allocation13 + $0x11b4] sm:$0xff]
        %v1767 = vld [vmem:[#allocation13 + $0x11bc] sm:$0xff]
        %v1768 = vld [vmem:[#allocation13 + $0x11c4] sm:$0xff]
        %v1769 = vld [vmem:[#allocation13 + $0x11cc] sm:$0xf]
        %v1770 = vld [vmem:[#allocation13 + $0x11d0] sm:$0xff]
        %v1771 = vld [vmem:[#allocation13 + $0x11d8] sm:$0xff]
        %v1772 = vld [vmem:[#allocation13 + $0x11e0] sm:$0xff]
        %v1773 = vld [vmem:[#allocation13 + $0x11e8] sm:$0xff]
        %v1774 = vld [vmem:[#allocation13 + $0x11f0] sm:$0xff]
        %v1775 = vld [vmem:[#allocation13 + $0x11f8] sm:$0xff]
        %v1776 = vld [vmem:[#allocation13 + $0x1200] sm:$0xff]
        %v1777 = vld [vmem:[#allocation13 + $0x1208] sm:$0xff]
        %v1778 = vld [vmem:[#allocation13 + $0x1210] sm:$0xff]
        %v1779 = vld [vmem:[#allocation13 + $0x1218] sm:$0xf]
        %v1780 = vld [vmem:[#allocation13 + $0x121c] sm:$0xff]
        %v1781 = vld [vmem:[#allocation13 + $0x1224] sm:$0xff]
        %v1782 = vld [vmem:[#allocation13 + $0x122c] sm:$0xff]
        %v1783 = vld [vmem:[#allocation13 + $0x1234] sm:$0xff]
        %v1784 = vld [vmem:[#allocation13 + $0x123c] sm:$0xff]
        %v1785 = vld [vmem:[#allocation13 + $0x1244] sm:$0xff]
        %v1786 = vld [vmem:[#allocation13 + $0x124c] sm:$0xff]
        %v1787 = vld [vmem:[#allocation13 + $0x1254] sm:$0xff]
        %v1788 = vld [vmem:[#allocation13 + $0x125c] sm:$0xff]
        %v1789 = vld [vmem:[#allocation13 + $0x1264] sm:$0xf]
        %v1790 = vld [vmem:[#allocation13 + $0x1268] sm:$0xff]
        %v1791 = vld [vmem:[#allocation13 + $0x1270] sm:$0xff]
        %v1792 = vld [vmem:[#allocation13 + $0x1278] sm:$0xff]
        %v1793 = vld [vmem:[#allocation13 + $0x1280] sm:$0xff]
        %v1794 = vld [vmem:[#allocation13 + $0x1288] sm:$0xff]
        %v1795 = vld [vmem:[#allocation13 + $0x1290] sm:$0xff]
        %v1796 = vld [vmem:[#allocation13 + $0x1298] sm:$0xff]
        %v1797 = vld [vmem:[#allocation13 + $0x12a0] sm:$0xff]
        %v1798 = vld [vmem:[#allocation13 + $0x12a8] sm:$0xff]
        %v1799 = vld [vmem:[#allocation13 + $0x12b0] sm:$0xf]
        %v1800 = vld [vmem:[#allocation13 + $0x12b4] sm:$0xff]
        %v1801 = vld [vmem:[#allocation13 + $0x12bc] sm:$0xff]
        %v1802 = vld [vmem:[#allocation13 + $0x12c4] sm:$0xff]
        %v1803 = vld [vmem:[#allocation13 + $0x12cc] sm:$0xff]
        %v1804 = vld [vmem:[#allocation13 + $0x12d4] sm:$0xff]
        %v1805 = vld [vmem:[#allocation13 + $0x12dc] sm:$0xff]
        %v1806 = vld [vmem:[#allocation13 + $0x12e4] sm:$0xff]
        %v1807 = vld [vmem:[#allocation13 + $0x12ec] sm:$0xff]
        %v1808 = vld [vmem:[#allocation13 + $0x12f4] sm:$0xff]
        %v1809 = vld [vmem:[#allocation13 + $0x12fc] sm:$0xf]
        %v1810 = vld [vmem:[#allocation14] sm:$0xff]
        %v1811 = vld [vmem:[#allocation14 + $0x8] sm:$0xff]
        %v1812 = vld [vmem:[#allocation14 + $0x10] sm:$0x7]
        %v1816 = vlaneseq
        %v1817 = vshrl.u32 %v1816, 7
        %v1818 = vsub.s32 0, %v1817
        %v1819 = vrot.slane %v1810, %v1818
        %v1820 = vlaneseq
        %v1821 = vshrl.u32 %v1820, 7
        %v1822 = vsub.s32 1, %v1821
        %v1823 = vrot.slane %v1810, %v1822
        %v1824 = vlaneseq
        %v1825 = vshrl.u32 %v1824, 7
        %v1826 = vsub.s32 2, %v1825
        %v1827 = vrot.slane %v1810, %v1826
        %v1828 = vlaneseq
        %v1829 = vshrl.u32 %v1828, 7
        %v1830 = vsub.s32 3, %v1829
        %v1831 = vrot.slane %v1810, %v1830
        %v1832 = vlaneseq
        %v1833 = vshrl.u32 %v1832, 7
        %v1834 = vsub.s32 4, %v1833
        %v1835 = vrot.slane %v1810, %v1834
        %v1836 = vlaneseq
        %v1837 = vshrl.u32 %v1836, 7
        %v1838 = vsub.s32 5, %v1837
        %v1839 = vrot.slane %v1810, %v1838
        %v1840 = vlaneseq
        %v1841 = vshrl.u32 %v1840, 7
        %v1842 = vsub.s32 6, %v1841
        %v1843 = vrot.slane %v1810, %v1842
        %v1844 = vlaneseq
        %v1845 = vshrl.u32 %v1844, 7
        %v1846 = vsub.s32 7, %v1845
        %v1847 = vrot.slane %v1810, %v1846
        %v1848 = vlaneseq
        %v1849 = vshrl.u32 %v1848, 7
        %v1850 = vsub.s32 0, %v1849
        %v1851 = vrot.slane %v1811, %v1850
        %v1852 = vlaneseq
        %v1853 = vshrl.u32 %v1852, 7
        %v1854 = vsub.s32 1, %v1853
        %v1855 = vrot.slane %v1811, %v1854
        %v1856 = vlaneseq
        %v1857 = vshrl.u32 %v1856, 7
        %v1858 = vsub.s32 2, %v1857
        %v1859 = vrot.slane %v1811, %v1858
        %v1860 = vlaneseq
        %v1861 = vshrl.u32 %v1860, 7
        %v1862 = vsub.s32 3, %v1861
        %v1863 = vrot.slane %v1811, %v1862
        %v1864 = vlaneseq
        %v1865 = vshrl.u32 %v1864, 7
        %v1866 = vsub.s32 4, %v1865
        %v1867 = vrot.slane %v1811, %v1866
        %v1868 = vlaneseq
        %v1869 = vshrl.u32 %v1868, 7
        %v1870 = vsub.s32 5, %v1869
        %v1871 = vrot.slane %v1811, %v1870
        %v1872 = vlaneseq
        %v1873 = vshrl.u32 %v1872, 7
        %v1874 = vsub.s32 6, %v1873
        %v1875 = vrot.slane %v1811, %v1874
        %v1876 = vlaneseq
        %v1877 = vshrl.u32 %v1876, 7
        %v1878 = vsub.s32 7, %v1877
        %v1879 = vrot.slane %v1811, %v1878
        %v1880 = vlaneseq
        %v1881 = vshrl.u32 %v1880, 7
        %v1882 = vsub.s32 0, %v1881
        %v1883 = vrot.slane %v1812, %v1882
        %v1884 = vlaneseq
        %v1885 = vshrl.u32 %v1884, 7
        %v1886 = vsub.s32 1, %v1885
        %v1887 = vrot.slane %v1812, %v1886
        %v1888 = vlaneseq
        %v1889 = vshrl.u32 %v1888, 7
        %v1890 = vsub.s32 2, %v1889
        %v1891 = vrot.slane %v1812, %v1890
        %v2551 = vunpack.c.l.b16 %v1170
        %v2552 = vunpack.c.h.b16 %v1170
        %v2553 = vunpack.c.l.b16 %v1171
        %v2554 = vunpack.c.h.b16 %v1171
        %v2555 = vunpack.c.l.b16 %v1172
        %v2556 = vunpack.c.h.b16 %v1172
        %v2557 = vunpack.c.l.b16 %v1173
        %v2558 = vunpack.c.h.b16 %v1173
        %v2559 = vunpack.c.l.b16 %v1174
        %v2560 = vunpack.c.h.b16 %v1174
        %v2561 = vunpack.c.l.b16 %v1175
        %v2562 = vunpack.c.h.b16 %v1175
        %v2563 = vunpack.c.l.b16 %v1176
        %v2564 = vunpack.c.h.b16 %v1176
        %v2565 = vunpack.c.l.b16 %v1177
        %v2566 = vunpack.c.h.b16 %v1177
        %v2567 = vunpack.c.l.b16 %v1178
        %v2568 = vunpack.c.h.b16 %v1178
        %v2569 = vunpack.c.l.b16 %v1179
        %v2570 = vunpack.c.l.b16 %v1180
        %v2571 = vunpack.c.h.b16 %v1180
        %v2572 = vunpack.c.l.b16 %v1181
        %v2573 = vunpack.c.h.b16 %v1181
        %v2574 = vunpack.c.l.b16 %v1182
        %v2575 = vunpack.c.h.b16 %v1182
        %v2576 = vunpack.c.l.b16 %v1183
        %v2577 = vunpack.c.h.b16 %v1183
        %v2578 = vunpack.c.l.b16 %v1184
        %v2579 = vunpack.c.h.b16 %v1184
        %v2580 = vunpack.c.l.b16 %v1185
        %v2581 = vunpack.c.h.b16 %v1185
        %v2582 = vunpack.c.l.b16 %v1186
        %v2583 = vunpack.c.h.b16 %v1186
        %v2584 = vunpack.c.l.b16 %v1187
        %v2585 = vunpack.c.h.b16 %v1187
        %v2586 = vunpack.c.l.b16 %v1188
        %v2587 = vunpack.c.h.b16 %v1188
        %v2588 = vunpack.c.l.b16 %v1189
        %v2589 = vunpack.c.l.b16 %v1190
        %v2590 = vunpack.c.h.b16 %v1190
        %v2591 = vunpack.c.l.b16 %v1191
        %v2592 = vunpack.c.h.b16 %v1191
        %v2593 = vunpack.c.l.b16 %v1192
        %v2594 = vunpack.c.h.b16 %v1192
        %v2595 = vunpack.c.l.b16 %v1193
        %v2596 = vunpack.c.h.b16 %v1193
        %v2597 = vunpack.c.l.b16 %v1194
        %v2598 = vunpack.c.h.b16 %v1194
        %v2599 = vunpack.c.l.b16 %v1195
        %v2600 = vunpack.c.h.b16 %v1195
        %v2601 = vunpack.c.l.b16 %v1196
        %v2602 = vunpack.c.h.b16 %v1196
        %v2603 = vunpack.c.l.b16 %v1197
        %v2604 = vunpack.c.h.b16 %v1197
        %v2605 = vunpack.c.l.b16 %v1198
        %v2606 = vunpack.c.h.b16 %v1198
        %v2607 = vunpack.c.l.b16 %v1199
        %v2608 = vunpack.c.l.b16 %v1200
        %v2609 = vunpack.c.h.b16 %v1200
        %v2610 = vunpack.c.l.b16 %v1201
        %v2611 = vunpack.c.h.b16 %v1201
        %v2612 = vunpack.c.l.b16 %v1202
        %v2613 = vunpack.c.h.b16 %v1202
        %v2614 = vunpack.c.l.b16 %v1203
        %v2615 = vunpack.c.h.b16 %v1203
        %v2616 = vunpack.c.l.b16 %v1204
        %v2617 = vunpack.c.h.b16 %v1204
        %v2618 = vunpack.c.l.b16 %v1205
        %v2619 = vunpack.c.h.b16 %v1205
        %v2620 = vunpack.c.l.b16 %v1206
        %v2621 = vunpack.c.h.b16 %v1206
        %v2622 = vunpack.c.l.b16 %v1207
        %v2623 = vunpack.c.h.b16 %v1207
        %v2624 = vunpack.c.l.b16 %v1208
        %v2625 = vunpack.c.h.b16 %v1208
        %v2626 = vunpack.c.l.b16 %v1209
        %v2627 = vunpack.c.l.b16 %v1210
        %v2628 = vunpack.c.h.b16 %v1210
        %v2629 = vunpack.c.l.b16 %v1211
        %v2630 = vunpack.c.h.b16 %v1211
        %v2631 = vunpack.c.l.b16 %v1212
        %v2632 = vunpack.c.h.b16 %v1212
        %v2633 = vunpack.c.l.b16 %v1213
        %v2634 = vunpack.c.h.b16 %v1213
        %v2635 = vunpack.c.l.b16 %v1214
        %v2636 = vunpack.c.h.b16 %v1214
        %v2637 = vunpack.c.l.b16 %v1215
        %v2638 = vunpack.c.h.b16 %v1215
        %v2639 = vunpack.c.l.b16 %v1216
        %v2640 = vunpack.c.h.b16 %v1216
        %v2641 = vunpack.c.l.b16 %v1217
        %v2642 = vunpack.c.h.b16 %v1217
        %v2643 = vunpack.c.l.b16 %v1218
        %v2644 = vunpack.c.h.b16 %v1218
        %v2645 = vunpack.c.l.b16 %v1219
        %v2646 = vunpack.c.l.b16 %v1220
        %v2647 = vunpack.c.h.b16 %v1220
        %v2648 = vunpack.c.l.b16 %v1221
        %v2649 = vunpack.c.h.b16 %v1221
        %v2650 = vunpack.c.l.b16 %v1222
        %v2651 = vunpack.c.h.b16 %v1222
        %v2652 = vunpack.c.l.b16 %v1223
        %v2653 = vunpack.c.h.b16 %v1223
        %v2654 = vunpack.c.l.b16 %v1224
        %v2655 = vunpack.c.h.b16 %v1224
        %v2656 = vunpack.c.l.b16 %v1225
        %v2657 = vunpack.c.h.b16 %v1225
        %v2658 = vunpack.c.l.b16 %v1226
        %v2659 = vunpack.c.h.b16 %v1226
        %v2660 = vunpack.c.l.b16 %v1227
        %v2661 = vunpack.c.h.b16 %v1227
        %v2662 = vunpack.c.l.b16 %v1228
        %v2663 = vunpack.c.h.b16 %v1228
        %v2664 = vunpack.c.l.b16 %v1229
        %v2665 = vunpack.c.l.b16 %v1230
        %v2666 = vunpack.c.h.b16 %v1230
        %v2667 = vunpack.c.l.b16 %v1231
        %v2668 = vunpack.c.h.b16 %v1231
        %v2669 = vunpack.c.l.b16 %v1232
        %v2670 = vunpack.c.h.b16 %v1232
        %v2671 = vunpack.c.l.b16 %v1233
        %v2672 = vunpack.c.h.b16 %v1233
        %v2673 = vunpack.c.l.b16 %v1234
        %v2674 = vunpack.c.h.b16 %v1234
        %v2675 = vunpack.c.l.b16 %v1235
        %v2676 = vunpack.c.h.b16 %v1235
        %v2677 = vunpack.c.l.b16 %v1236
        %v2678 = vunpack.c.h.b16 %v1236
        %v2679 = vunpack.c.l.b16 %v1237
        %v2680 = vunpack.c.h.b16 %v1237
        %v2681 = vunpack.c.l.b16 %v1238
        %v2682 = vunpack.c.h.b16 %v1238
        %v2683 = vunpack.c.l.b16 %v1239
        %v2684 = vunpack.c.l.b16 %v1240
        %v2685 = vunpack.c.h.b16 %v1240
        %v2686 = vunpack.c.l.b16 %v1241
        %v2687 = vunpack.c.h.b16 %v1241
        %v2688 = vunpack.c.l.b16 %v1242
        %v2689 = vunpack.c.h.b16 %v1242
        %v2690 = vunpack.c.l.b16 %v1243
        %v2691 = vunpack.c.h.b16 %v1243
        %v2692 = vunpack.c.l.b16 %v1244
        %v2693 = vunpack.c.h.b16 %v1244
        %v2694 = vunpack.c.l.b16 %v1245
        %v2695 = vunpack.c.h.b16 %v1245
        %v2696 = vunpack.c.l.b16 %v1246
        %v2697 = vunpack.c.h.b16 %v1246
        %v2698 = vunpack.c.l.b16 %v1247
        %v2699 = vunpack.c.h.b16 %v1247
        %v2700 = vunpack.c.l.b16 %v1248
        %v2701 = vunpack.c.h.b16 %v1248
        %v2702 = vunpack.c.l.b16 %v1249
        %v2703 = vunpack.c.l.b16 %v1250
        %v2704 = vunpack.c.h.b16 %v1250
        %v2705 = vunpack.c.l.b16 %v1251
        %v2706 = vunpack.c.h.b16 %v1251
        %v2707 = vunpack.c.l.b16 %v1252
        %v2708 = vunpack.c.h.b16 %v1252
        %v2709 = vunpack.c.l.b16 %v1253
        %v2710 = vunpack.c.h.b16 %v1253
        %v2711 = vunpack.c.l.b16 %v1254
        %v2712 = vunpack.c.h.b16 %v1254
        %v2713 = vunpack.c.l.b16 %v1255
        %v2714 = vunpack.c.h.b16 %v1255
        %v2715 = vunpack.c.l.b16 %v1256
        %v2716 = vunpack.c.h.b16 %v1256
        %v2717 = vunpack.c.l.b16 %v1257
        %v2718 = vunpack.c.h.b16 %v1257
        %v2719 = vunpack.c.l.b16 %v1258
        %v2720 = vunpack.c.h.b16 %v1258
        %v2721 = vunpack.c.l.b16 %v1259
        %v2722 = vunpack.c.l.b16 %v1260
        %v2723 = vunpack.c.h.b16 %v1260
        %v2724 = vunpack.c.l.b16 %v1261
        %v2725 = vunpack.c.h.b16 %v1261
        %v2726 = vunpack.c.l.b16 %v1262
        %v2727 = vunpack.c.h.b16 %v1262
        %v2728 = vunpack.c.l.b16 %v1263
        %v2729 = vunpack.c.h.b16 %v1263
        %v2730 = vunpack.c.l.b16 %v1264
        %v2731 = vunpack.c.h.b16 %v1264
        %v2732 = vunpack.c.l.b16 %v1265
        %v2733 = vunpack.c.h.b16 %v1265
        %v2734 = vunpack.c.l.b16 %v1266
        %v2735 = vunpack.c.h.b16 %v1266
        %v2736 = vunpack.c.l.b16 %v1267
        %v2737 = vunpack.c.h.b16 %v1267
        %v2738 = vunpack.c.l.b16 %v1268
        %v2739 = vunpack.c.h.b16 %v1268
        %v2740 = vunpack.c.l.b16 %v1269
        %v2741 = vunpack.c.l.b16 %v1270
        %v2742 = vunpack.c.h.b16 %v1270
        %v2743 = vunpack.c.l.b16 %v1271
        %v2744 = vunpack.c.h.b16 %v1271
        %v2745 = vunpack.c.l.b16 %v1272
        %v2746 = vunpack.c.h.b16 %v1272
        %v2747 = vunpack.c.l.b16 %v1273
        %v2748 = vunpack.c.h.b16 %v1273
        %v2749 = vunpack.c.l.b16 %v1274
        %v2750 = vunpack.c.h.b16 %v1274
        %v2751 = vunpack.c.l.b16 %v1275
        %v2752 = vunpack.c.h.b16 %v1275
        %v2753 = vunpack.c.l.b16 %v1276
        %v2754 = vunpack.c.h.b16 %v1276
        %v2755 = vunpack.c.l.b16 %v1277
        %v2756 = vunpack.c.h.b16 %v1277
        %v2757 = vunpack.c.l.b16 %v1278
        %v2758 = vunpack.c.h.b16 %v1278
        %v2759 = vunpack.c.l.b16 %v1279
        %v2760 = vunpack.c.l.b16 %v1280
        %v2761 = vunpack.c.h.b16 %v1280
        %v2762 = vunpack.c.l.b16 %v1281
        %v2763 = vunpack.c.h.b16 %v1281
        %v2764 = vunpack.c.l.b16 %v1282
        %v2765 = vunpack.c.h.b16 %v1282
        %v2766 = vunpack.c.l.b16 %v1283
        %v2767 = vunpack.c.h.b16 %v1283
        %v2768 = vunpack.c.l.b16 %v1284
        %v2769 = vunpack.c.h.b16 %v1284
        %v2770 = vunpack.c.l.b16 %v1285
        %v2771 = vunpack.c.h.b16 %v1285
        %v2772 = vunpack.c.l.b16 %v1286
        %v2773 = vunpack.c.h.b16 %v1286
        %v2774 = vunpack.c.l.b16 %v1287
        %v2775 = vunpack.c.h.b16 %v1287
        %v2776 = vunpack.c.l.b16 %v1288
        %v2777 = vunpack.c.h.b16 %v1288
        %v2778 = vunpack.c.l.b16 %v1289
        %v2779 = vunpack.c.l.b16 %v1290
        %v2780 = vunpack.c.h.b16 %v1290
        %v2781 = vunpack.c.l.b16 %v1291
        %v2782 = vunpack.c.h.b16 %v1291
        %v2783 = vunpack.c.l.b16 %v1292
        %v2784 = vunpack.c.h.b16 %v1292
        %v2785 = vunpack.c.l.b16 %v1293
        %v2786 = vunpack.c.h.b16 %v1293
        %v2787 = vunpack.c.l.b16 %v1294
        %v2788 = vunpack.c.h.b16 %v1294
        %v2789 = vunpack.c.l.b16 %v1295
        %v2790 = vunpack.c.h.b16 %v1295
        %v2791 = vunpack.c.l.b16 %v1296
        %v2792 = vunpack.c.h.b16 %v1296
        %v2793 = vunpack.c.l.b16 %v1297
        %v2794 = vunpack.c.h.b16 %v1297
        %v2795 = vunpack.c.l.b16 %v1298
        %v2796 = vunpack.c.h.b16 %v1298
        %v2797 = vunpack.c.l.b16 %v1299
        %v2798 = vunpack.c.l.b16 %v1300
        %v2799 = vunpack.c.h.b16 %v1300
        %v2800 = vunpack.c.l.b16 %v1301
        %v2801 = vunpack.c.h.b16 %v1301
        %v2802 = vunpack.c.l.b16 %v1302
        %v2803 = vunpack.c.h.b16 %v1302
        %v2804 = vunpack.c.l.b16 %v1303
        %v2805 = vunpack.c.h.b16 %v1303
        %v2806 = vunpack.c.l.b16 %v1304
        %v2807 = vunpack.c.h.b16 %v1304
        %v2808 = vunpack.c.l.b16 %v1305
        %v2809 = vunpack.c.h.b16 %v1305
        %v2810 = vunpack.c.l.b16 %v1306
        %v2811 = vunpack.c.h.b16 %v1306
        %v2812 = vunpack.c.l.b16 %v1307
        %v2813 = vunpack.c.h.b16 %v1307
        %v2814 = vunpack.c.l.b16 %v1308
        %v2815 = vunpack.c.h.b16 %v1308
        %v2816 = vunpack.c.l.b16 %v1309
        %v2817 = vunpack.c.l.b16 %v1310
        %v2818 = vunpack.c.h.b16 %v1310
        %v2819 = vunpack.c.l.b16 %v1311
        %v2820 = vunpack.c.h.b16 %v1311
        %v2821 = vunpack.c.l.b16 %v1312
        %v2822 = vunpack.c.h.b16 %v1312
        %v2823 = vunpack.c.l.b16 %v1313
        %v2824 = vunpack.c.h.b16 %v1313
        %v2825 = vunpack.c.l.b16 %v1314
        %v2826 = vunpack.c.h.b16 %v1314
        %v2827 = vunpack.c.l.b16 %v1315
        %v2828 = vunpack.c.h.b16 %v1315
        %v2829 = vunpack.c.l.b16 %v1316
        %v2830 = vunpack.c.h.b16 %v1316
        %v2831 = vunpack.c.l.b16 %v1317
        %v2832 = vunpack.c.h.b16 %v1317
        %v2833 = vunpack.c.l.b16 %v1318
        %v2834 = vunpack.c.h.b16 %v1318
        %v2835 = vunpack.c.l.b16 %v1319
        %v2836 = vunpack.c.l.b16 %v1320
        %v2837 = vunpack.c.h.b16 %v1320
        %v2838 = vunpack.c.l.b16 %v1321
        %v2839 = vunpack.c.h.b16 %v1321
        %v2840 = vunpack.c.l.b16 %v1322
        %v2841 = vunpack.c.h.b16 %v1322
        %v2842 = vunpack.c.l.b16 %v1323
        %v2843 = vunpack.c.h.b16 %v1323
        %v2844 = vunpack.c.l.b16 %v1324
        %v2845 = vunpack.c.h.b16 %v1324
        %v2846 = vunpack.c.l.b16 %v1325
        %v2847 = vunpack.c.h.b16 %v1325
        %v2848 = vunpack.c.l.b16 %v1326
        %v2849 = vunpack.c.h.b16 %v1326
        %v2850 = vunpack.c.l.b16 %v1327
        %v2851 = vunpack.c.h.b16 %v1327
        %v2852 = vunpack.c.l.b16 %v1328
        %v2853 = vunpack.c.h.b16 %v1328
        %v2854 = vunpack.c.l.b16 %v1329
        %v2855 = vunpack.c.l.b16 %v1330
        %v2856 = vunpack.c.h.b16 %v1330
        %v2857 = vunpack.c.l.b16 %v1331
        %v2858 = vunpack.c.h.b16 %v1331
        %v2859 = vunpack.c.l.b16 %v1332
        %v2860 = vunpack.c.h.b16 %v1332
        %v2861 = vunpack.c.l.b16 %v1333
        %v2862 = vunpack.c.h.b16 %v1333
        %v2863 = vunpack.c.l.b16 %v1334
        %v2864 = vunpack.c.h.b16 %v1334
        %v2865 = vunpack.c.l.b16 %v1335
        %v2866 = vunpack.c.h.b16 %v1335
        %v2867 = vunpack.c.l.b16 %v1336
        %v2868 = vunpack.c.h.b16 %v1336
        %v2869 = vunpack.c.l.b16 %v1337
        %v2870 = vunpack.c.h.b16 %v1337
        %v2871 = vunpack.c.l.b16 %v1338
        %v2872 = vunpack.c.h.b16 %v1338
        %v2873 = vunpack.c.l.b16 %v1339
        %v2874 = vunpack.c.l.b16 %v1340
        %v2875 = vunpack.c.h.b16 %v1340
        %v2876 = vunpack.c.l.b16 %v1341
        %v2877 = vunpack.c.h.b16 %v1341
        %v2878 = vunpack.c.l.b16 %v1342
        %v2879 = vunpack.c.h.b16 %v1342
        %v2880 = vunpack.c.l.b16 %v1343
        %v2881 = vunpack.c.h.b16 %v1343
        %v2882 = vunpack.c.l.b16 %v1344
        %v2883 = vunpack.c.h.b16 %v1344
        %v2884 = vunpack.c.l.b16 %v1345
        %v2885 = vunpack.c.h.b16 %v1345
        %v2886 = vunpack.c.l.b16 %v1346
        %v2887 = vunpack.c.h.b16 %v1346
        %v2888 = vunpack.c.l.b16 %v1347
        %v2889 = vunpack.c.h.b16 %v1347
        %v2890 = vunpack.c.l.b16 %v1348
        %v2891 = vunpack.c.h.b16 %v1348
        %v2892 = vunpack.c.l.b16 %v1349
        %v2893 = vunpack.c.l.b16 %v1350
        %v2894 = vunpack.c.h.b16 %v1350
        %v2895 = vunpack.c.l.b16 %v1351
        %v2896 = vunpack.c.h.b16 %v1351
        %v2897 = vunpack.c.l.b16 %v1352
        %v2898 = vunpack.c.h.b16 %v1352
        %v2899 = vunpack.c.l.b16 %v1353
        %v2900 = vunpack.c.h.b16 %v1353
        %v2901 = vunpack.c.l.b16 %v1354
        %v2902 = vunpack.c.h.b16 %v1354
        %v2903 = vunpack.c.l.b16 %v1355
        %v2904 = vunpack.c.h.b16 %v1355
        %v2905 = vunpack.c.l.b16 %v1356
        %v2906 = vunpack.c.h.b16 %v1356
        %v2907 = vunpack.c.l.b16 %v1357
        %v2908 = vunpack.c.h.b16 %v1357
        %v2909 = vunpack.c.l.b16 %v1358
        %v2910 = vunpack.c.h.b16 %v1358
        %v2911 = vunpack.c.l.b16 %v1359
        %v2912 = vunpack.c.l.b16 %v1360
        %v2913 = vunpack.c.h.b16 %v1360
        %v2914 = vunpack.c.l.b16 %v1361
        %v2915 = vunpack.c.h.b16 %v1361
        %v2916 = vunpack.c.l.b16 %v1362
        %v2917 = vunpack.c.h.b16 %v1362
        %v2918 = vunpack.c.l.b16 %v1363
        %v2919 = vunpack.c.h.b16 %v1363
        %v2920 = vunpack.c.l.b16 %v1364
        %v2921 = vunpack.c.h.b16 %v1364
        %v2922 = vunpack.c.l.b16 %v1365
        %v2923 = vunpack.c.h.b16 %v1365
        %v2924 = vunpack.c.l.b16 %v1366
        %v2925 = vunpack.c.h.b16 %v1366
        %v2926 = vunpack.c.l.b16 %v1367
        %v2927 = vunpack.c.h.b16 %v1367
        %v2928 = vunpack.c.l.b16 %v1368
        %v2929 = vunpack.c.h.b16 %v1368
        %v2930 = vunpack.c.l.b16 %v1369
        %v2931 = vunpack.c.l.b16 %v1370
        %v2932 = vunpack.c.h.b16 %v1370
        %v2933 = vunpack.c.l.b16 %v1371
        %v2934 = vunpack.c.h.b16 %v1371
        %v2935 = vunpack.c.l.b16 %v1372
        %v2936 = vunpack.c.h.b16 %v1372
        %v2937 = vunpack.c.l.b16 %v1373
        %v2938 = vunpack.c.h.b16 %v1373
        %v2939 = vunpack.c.l.b16 %v1374
        %v2940 = vunpack.c.h.b16 %v1374
        %v2941 = vunpack.c.l.b16 %v1375
        %v2942 = vunpack.c.h.b16 %v1375
        %v2943 = vunpack.c.l.b16 %v1376
        %v2944 = vunpack.c.h.b16 %v1376
        %v2945 = vunpack.c.l.b16 %v1377
        %v2946 = vunpack.c.h.b16 %v1377
        %v2947 = vunpack.c.l.b16 %v1378
        %v2948 = vunpack.c.h.b16 %v1378
        %v2949 = vunpack.c.l.b16 %v1379
        %v2950 = vunpack.c.l.b16 %v1380
        %v2951 = vunpack.c.h.b16 %v1380
        %v2952 = vunpack.c.l.b16 %v1381
        %v2953 = vunpack.c.h.b16 %v1381
        %v2954 = vunpack.c.l.b16 %v1382
        %v2955 = vunpack.c.h.b16 %v1382
        %v2956 = vunpack.c.l.b16 %v1383
        %v2957 = vunpack.c.h.b16 %v1383
        %v2958 = vunpack.c.l.b16 %v1384
        %v2959 = vunpack.c.h.b16 %v1384
        %v2960 = vunpack.c.l.b16 %v1385
        %v2961 = vunpack.c.h.b16 %v1385
        %v2962 = vunpack.c.l.b16 %v1386
        %v2963 = vunpack.c.h.b16 %v1386
        %v2964 = vunpack.c.l.b16 %v1387
        %v2965 = vunpack.c.h.b16 %v1387
        %v2966 = vunpack.c.l.b16 %v1388
        %v2967 = vunpack.c.h.b16 %v1388
        %v2968 = vunpack.c.l.b16 %v1389
        %v2969 = vunpack.c.l.b16 %v1390
        %v2970 = vunpack.c.h.b16 %v1390
        %v2971 = vunpack.c.l.b16 %v1391
        %v2972 = vunpack.c.h.b16 %v1391
        %v2973 = vunpack.c.l.b16 %v1392
        %v2974 = vunpack.c.h.b16 %v1392
        %v2975 = vunpack.c.l.b16 %v1393
        %v2976 = vunpack.c.h.b16 %v1393
        %v2977 = vunpack.c.l.b16 %v1394
        %v2978 = vunpack.c.h.b16 %v1394
        %v2979 = vunpack.c.l.b16 %v1395
        %v2980 = vunpack.c.h.b16 %v1395
        %v2981 = vunpack.c.l.b16 %v1396
        %v2982 = vunpack.c.h.b16 %v1396
        %v2983 = vunpack.c.l.b16 %v1397
        %v2984 = vunpack.c.h.b16 %v1397
        %v2985 = vunpack.c.l.b16 %v1398
        %v2986 = vunpack.c.h.b16 %v1398
        %v2987 = vunpack.c.l.b16 %v1399
        %v2988 = vunpack.c.l.b16 %v1400
        %v2989 = vunpack.c.h.b16 %v1400
        %v2990 = vunpack.c.l.b16 %v1401
        %v2991 = vunpack.c.h.b16 %v1401
        %v2992 = vunpack.c.l.b16 %v1402
        %v2993 = vunpack.c.h.b16 %v1402
        %v2994 = vunpack.c.l.b16 %v1403
        %v2995 = vunpack.c.h.b16 %v1403
        %v2996 = vunpack.c.l.b16 %v1404
        %v2997 = vunpack.c.h.b16 %v1404
        %v2998 = vunpack.c.l.b16 %v1405
        %v2999 = vunpack.c.h.b16 %v1405
        %v3000 = vunpack.c.l.b16 %v1406
        %v3001 = vunpack.c.h.b16 %v1406
        %v3002 = vunpack.c.l.b16 %v1407
        %v3003 = vunpack.c.h.b16 %v1407
        %v3004 = vunpack.c.l.b16 %v1408
        %v3005 = vunpack.c.h.b16 %v1408
        %v3006 = vunpack.c.l.b16 %v1409
        %v3007 = vunpack.c.l.b16 %v1410
        %v3008 = vunpack.c.h.b16 %v1410
        %v3009 = vunpack.c.l.b16 %v1411
        %v3010 = vunpack.c.h.b16 %v1411
        %v3011 = vunpack.c.l.b16 %v1412
        %v3012 = vunpack.c.h.b16 %v1412
        %v3013 = vunpack.c.l.b16 %v1413
        %v3014 = vunpack.c.h.b16 %v1413
        %v3015 = vunpack.c.l.b16 %v1414
        %v3016 = vunpack.c.h.b16 %v1414
        %v3017 = vunpack.c.l.b16 %v1415
        %v3018 = vunpack.c.h.b16 %v1415
        %v3019 = vunpack.c.l.b16 %v1416
        %v3020 = vunpack.c.h.b16 %v1416
        %v3021 = vunpack.c.l.b16 %v1417
        %v3022 = vunpack.c.h.b16 %v1417
        %v3023 = vunpack.c.l.b16 %v1418
        %v3024 = vunpack.c.h.b16 %v1418
        %v3025 = vunpack.c.l.b16 %v1419
        %v3026 = vunpack.c.l.b16 %v1420
        %v3027 = vunpack.c.h.b16 %v1420
        %v3028 = vunpack.c.l.b16 %v1421
        %v3029 = vunpack.c.h.b16 %v1421
        %v3030 = vunpack.c.l.b16 %v1422
        %v3031 = vunpack.c.h.b16 %v1422
        %v3032 = vunpack.c.l.b16 %v1423
        %v3033 = vunpack.c.h.b16 %v1423
        %v3034 = vunpack.c.l.b16 %v1424
        %v3035 = vunpack.c.h.b16 %v1424
        %v3036 = vunpack.c.l.b16 %v1425
        %v3037 = vunpack.c.h.b16 %v1425
        %v3038 = vunpack.c.l.b16 %v1426
        %v3039 = vunpack.c.h.b16 %v1426
        %v3040 = vunpack.c.l.b16 %v1427
        %v3041 = vunpack.c.h.b16 %v1427
        %v3042 = vunpack.c.l.b16 %v1428
        %v3043 = vunpack.c.h.b16 %v1428
        %v3044 = vunpack.c.l.b16 %v1429
        %v3045 = vunpack.c.l.b16 %v1430
        %v3046 = vunpack.c.h.b16 %v1430
        %v3047 = vunpack.c.l.b16 %v1431
        %v3048 = vunpack.c.h.b16 %v1431
        %v3049 = vunpack.c.l.b16 %v1432
        %v3050 = vunpack.c.h.b16 %v1432
        %v3051 = vunpack.c.l.b16 %v1433
        %v3052 = vunpack.c.h.b16 %v1433
        %v3053 = vunpack.c.l.b16 %v1434
        %v3054 = vunpack.c.h.b16 %v1434
        %v3055 = vunpack.c.l.b16 %v1435
        %v3056 = vunpack.c.h.b16 %v1435
        %v3057 = vunpack.c.l.b16 %v1436
        %v3058 = vunpack.c.h.b16 %v1436
        %v3059 = vunpack.c.l.b16 %v1437
        %v3060 = vunpack.c.h.b16 %v1437
        %v3061 = vunpack.c.l.b16 %v1438
        %v3062 = vunpack.c.h.b16 %v1438
        %v3063 = vunpack.c.l.b16 %v1439
        %v3064 = vunpack.c.l.b16 %v1440
        %v3065 = vunpack.c.h.b16 %v1440
        %v3066 = vunpack.c.l.b16 %v1441
        %v3067 = vunpack.c.h.b16 %v1441
        %v3068 = vunpack.c.l.b16 %v1442
        %v3069 = vunpack.c.h.b16 %v1442
        %v3070 = vunpack.c.l.b16 %v1443
        %v3071 = vunpack.c.h.b16 %v1443
        %v3072 = vunpack.c.l.b16 %v1444
        %v3073 = vunpack.c.h.b16 %v1444
        %v3074 = vunpack.c.l.b16 %v1445
        %v3075 = vunpack.c.h.b16 %v1445
        %v3076 = vunpack.c.l.b16 %v1446
        %v3077 = vunpack.c.h.b16 %v1446
        %v3078 = vunpack.c.l.b16 %v1447
        %v3079 = vunpack.c.h.b16 %v1447
        %v3080 = vunpack.c.l.b16 %v1448
        %v3081 = vunpack.c.h.b16 %v1448
        %v3082 = vunpack.c.l.b16 %v1449
        %v3083 = vunpack.c.l.b16 %v1450
        %v3084 = vunpack.c.h.b16 %v1450
        %v3085 = vunpack.c.l.b16 %v1451
        %v3086 = vunpack.c.h.b16 %v1451
        %v3087 = vunpack.c.l.b16 %v1452
        %v3088 = vunpack.c.h.b16 %v1452
        %v3089 = vunpack.c.l.b16 %v1453
        %v3090 = vunpack.c.h.b16 %v1453
        %v3091 = vunpack.c.l.b16 %v1454
        %v3092 = vunpack.c.h.b16 %v1454
        %v3093 = vunpack.c.l.b16 %v1455
        %v3094 = vunpack.c.h.b16 %v1455
        %v3095 = vunpack.c.l.b16 %v1456
        %v3096 = vunpack.c.h.b16 %v1456
        %v3097 = vunpack.c.l.b16 %v1457
        %v3098 = vunpack.c.h.b16 %v1457
        %v3099 = vunpack.c.l.b16 %v1458
        %v3100 = vunpack.c.h.b16 %v1458
        %v3101 = vunpack.c.l.b16 %v1459
        %v3102 = vunpack.c.l.b16 %v1460
        %v3103 = vunpack.c.h.b16 %v1460
        %v3104 = vunpack.c.l.b16 %v1461
        %v3105 = vunpack.c.h.b16 %v1461
        %v3106 = vunpack.c.l.b16 %v1462
        %v3107 = vunpack.c.h.b16 %v1462
        %v3108 = vunpack.c.l.b16 %v1463
        %v3109 = vunpack.c.h.b16 %v1463
        %v3110 = vunpack.c.l.b16 %v1464
        %v3111 = vunpack.c.h.b16 %v1464
        %v3112 = vunpack.c.l.b16 %v1465
        %v3113 = vunpack.c.h.b16 %v1465
        %v3114 = vunpack.c.l.b16 %v1466
        %v3115 = vunpack.c.h.b16 %v1466
        %v3116 = vunpack.c.l.b16 %v1467
        %v3117 = vunpack.c.h.b16 %v1467
        %v3118 = vunpack.c.l.b16 %v1468
        %v3119 = vunpack.c.h.b16 %v1468
        %v3120 = vunpack.c.l.b16 %v1469
        %v3121 = vunpack.c.l.b16 %v1470
        %v3122 = vunpack.c.h.b16 %v1470
        %v3123 = vunpack.c.l.b16 %v1471
        %v3124 = vunpack.c.h.b16 %v1471
        %v3125 = vunpack.c.l.b16 %v1472
        %v3126 = vunpack.c.h.b16 %v1472
        %v3127 = vunpack.c.l.b16 %v1473
        %v3128 = vunpack.c.h.b16 %v1473
        %v3129 = vunpack.c.l.b16 %v1474
        %v3130 = vunpack.c.h.b16 %v1474
        %v3131 = vunpack.c.l.b16 %v1475
        %v3132 = vunpack.c.h.b16 %v1475
        %v3133 = vunpack.c.l.b16 %v1476
        %v3134 = vunpack.c.h.b16 %v1476
        %v3135 = vunpack.c.l.b16 %v1477
        %v3136 = vunpack.c.h.b16 %v1477
        %v3137 = vunpack.c.l.b16 %v1478
        %v3138 = vunpack.c.h.b16 %v1478
        %v3139 = vunpack.c.l.b16 %v1479
        %v3140 = vunpack.c.l.b16 %v1480
        %v3141 = vunpack.c.h.b16 %v1480
        %v3142 = vunpack.c.l.b16 %v1481
        %v3143 = vunpack.c.h.b16 %v1481
        %v3144 = vunpack.c.l.b16 %v1482
        %v3145 = vunpack.c.h.b16 %v1482
        %v3146 = vunpack.c.l.b16 %v1483
        %v3147 = vunpack.c.h.b16 %v1483
        %v3148 = vunpack.c.l.b16 %v1484
        %v3149 = vunpack.c.h.b16 %v1484
        %v3150 = vunpack.c.l.b16 %v1485
        %v3151 = vunpack.c.h.b16 %v1485
        %v3152 = vunpack.c.l.b16 %v1486
        %v3153 = vunpack.c.h.b16 %v1486
        %v3154 = vunpack.c.l.b16 %v1487
        %v3155 = vunpack.c.h.b16 %v1487
        %v3156 = vunpack.c.l.b16 %v1488
        %v3157 = vunpack.c.h.b16 %v1488
        %v3158 = vunpack.c.l.b16 %v1489
        %v3159 = vunpack.c.l.b16 %v1490
        %v3160 = vunpack.c.h.b16 %v1490
        %v3161 = vunpack.c.l.b16 %v1491
        %v3162 = vunpack.c.h.b16 %v1491
        %v3163 = vunpack.c.l.b16 %v1492
        %v3164 = vunpack.c.h.b16 %v1492
        %v3165 = vunpack.c.l.b16 %v1493
        %v3166 = vunpack.c.h.b16 %v1493
        %v3167 = vunpack.c.l.b16 %v1494
        %v3168 = vunpack.c.h.b16 %v1494
        %v3169 = vunpack.c.l.b16 %v1495
        %v3170 = vunpack.c.h.b16 %v1495
        %v3171 = vunpack.c.l.b16 %v1496
        %v3172 = vunpack.c.h.b16 %v1496
        %v3173 = vunpack.c.l.b16 %v1497
        %v3174 = vunpack.c.h.b16 %v1497
        %v3175 = vunpack.c.l.b16 %v1498
        %v3176 = vunpack.c.h.b16 %v1498
        %v3177 = vunpack.c.l.b16 %v1499
        %v3178 = vunpack.c.l.b16 %v1500
        %v3179 = vunpack.c.h.b16 %v1500
        %v3180 = vunpack.c.l.b16 %v1501
        %v3181 = vunpack.c.h.b16 %v1501
        %v3182 = vunpack.c.l.b16 %v1502
        %v3183 = vunpack.c.h.b16 %v1502
        %v3184 = vunpack.c.l.b16 %v1503
        %v3185 = vunpack.c.h.b16 %v1503
        %v3186 = vunpack.c.l.b16 %v1504
        %v3187 = vunpack.c.h.b16 %v1504
        %v3188 = vunpack.c.l.b16 %v1505
        %v3189 = vunpack.c.h.b16 %v1505
        %v3190 = vunpack.c.l.b16 %v1506
        %v3191 = vunpack.c.h.b16 %v1506
        %v3192 = vunpack.c.l.b16 %v1507
        %v3193 = vunpack.c.h.b16 %v1507
        %v3194 = vunpack.c.l.b16 %v1508
        %v3195 = vunpack.c.h.b16 %v1508
        %v3196 = vunpack.c.l.b16 %v1509
        %v3197 = vunpack.c.l.b16 %v1510
        %v3198 = vunpack.c.h.b16 %v1510
        %v3199 = vunpack.c.l.b16 %v1511
        %v3200 = vunpack.c.h.b16 %v1511
        %v3201 = vunpack.c.l.b16 %v1512
        %v3202 = vunpack.c.h.b16 %v1512
        %v3203 = vunpack.c.l.b16 %v1513
        %v3204 = vunpack.c.h.b16 %v1513
        %v3205 = vunpack.c.l.b16 %v1514
        %v3206 = vunpack.c.h.b16 %v1514
        %v3207 = vunpack.c.l.b16 %v1515
        %v3208 = vunpack.c.h.b16 %v1515
        %v3209 = vunpack.c.l.b16 %v1516
        %v3210 = vunpack.c.h.b16 %v1516
        %v3211 = vunpack.c.l.b16 %v1517
        %v3212 = vunpack.c.h.b16 %v1517
        %v3213 = vunpack.c.l.b16 %v1518
        %v3214 = vunpack.c.h.b16 %v1518
        %v3215 = vunpack.c.l.b16 %v1519
        %v3216 = vunpack.c.l.b16 %v1520
        %v3217 = vunpack.c.h.b16 %v1520
        %v3218 = vunpack.c.l.b16 %v1521
        %v3219 = vunpack.c.h.b16 %v1521
        %v3220 = vunpack.c.l.b16 %v1522
        %v3221 = vunpack.c.h.b16 %v1522
        %v3222 = vunpack.c.l.b16 %v1523
        %v3223 = vunpack.c.h.b16 %v1523
        %v3224 = vunpack.c.l.b16 %v1524
        %v3225 = vunpack.c.h.b16 %v1524
        %v3226 = vunpack.c.l.b16 %v1525
        %v3227 = vunpack.c.h.b16 %v1525
        %v3228 = vunpack.c.l.b16 %v1526
        %v3229 = vunpack.c.h.b16 %v1526
        %v3230 = vunpack.c.l.b16 %v1527
        %v3231 = vunpack.c.h.b16 %v1527
        %v3232 = vunpack.c.l.b16 %v1528
        %v3233 = vunpack.c.h.b16 %v1528
        %v3234 = vunpack.c.l.b16 %v1529
        %v3235 = vunpack.c.l.b16 %v1530
        %v3236 = vunpack.c.h.b16 %v1530
        %v3237 = vunpack.c.l.b16 %v1531
        %v3238 = vunpack.c.h.b16 %v1531
        %v3239 = vunpack.c.l.b16 %v1532
        %v3240 = vunpack.c.h.b16 %v1532
        %v3241 = vunpack.c.l.b16 %v1533
        %v3242 = vunpack.c.h.b16 %v1533
        %v3243 = vunpack.c.l.b16 %v1534
        %v3244 = vunpack.c.h.b16 %v1534
        %v3245 = vunpack.c.l.b16 %v1535
        %v3246 = vunpack.c.h.b16 %v1535
        %v3247 = vunpack.c.l.b16 %v1536
        %v3248 = vunpack.c.h.b16 %v1536
        %v3249 = vunpack.c.l.b16 %v1537
        %v3250 = vunpack.c.h.b16 %v1537
        %v3251 = vunpack.c.l.b16 %v1538
        %v3252 = vunpack.c.h.b16 %v1538
        %v3253 = vunpack.c.l.b16 %v1539
        %v3254 = vunpack.c.l.b16 %v1540
        %v3255 = vunpack.c.h.b16 %v1540
        %v3256 = vunpack.c.l.b16 %v1541
        %v3257 = vunpack.c.h.b16 %v1541
        %v3258 = vunpack.c.l.b16 %v1542
        %v3259 = vunpack.c.h.b16 %v1542
        %v3260 = vunpack.c.l.b16 %v1543
        %v3261 = vunpack.c.h.b16 %v1543
        %v3262 = vunpack.c.l.b16 %v1544
        %v3263 = vunpack.c.h.b16 %v1544
        %v3264 = vunpack.c.l.b16 %v1545
        %v3265 = vunpack.c.h.b16 %v1545
        %v3266 = vunpack.c.l.b16 %v1546
        %v3267 = vunpack.c.h.b16 %v1546
        %v3268 = vunpack.c.l.b16 %v1547
        %v3269 = vunpack.c.h.b16 %v1547
        %v3270 = vunpack.c.l.b16 %v1548
        %v3271 = vunpack.c.h.b16 %v1548
        %v3272 = vunpack.c.l.b16 %v1549
        %v3273 = vunpack.c.l.b16 %v1550
        %v3274 = vunpack.c.h.b16 %v1550
        %v3275 = vunpack.c.l.b16 %v1551
        %v3276 = vunpack.c.h.b16 %v1551
        %v3277 = vunpack.c.l.b16 %v1552
        %v3278 = vunpack.c.h.b16 %v1552
        %v3279 = vunpack.c.l.b16 %v1553
        %v3280 = vunpack.c.h.b16 %v1553
        %v3281 = vunpack.c.l.b16 %v1554
        %v3282 = vunpack.c.h.b16 %v1554
        %v3283 = vunpack.c.l.b16 %v1555
        %v3284 = vunpack.c.h.b16 %v1555
        %v3285 = vunpack.c.l.b16 %v1556
        %v3286 = vunpack.c.h.b16 %v1556
        %v3287 = vunpack.c.l.b16 %v1557
        %v3288 = vunpack.c.h.b16 %v1557
        %v3289 = vunpack.c.l.b16 %v1558
        %v3290 = vunpack.c.h.b16 %v1558
        %v3291 = vunpack.c.l.b16 %v1559
        %v3292 = vunpack.c.l.b16 %v1560
        %v3293 = vunpack.c.h.b16 %v1560
        %v3294 = vunpack.c.l.b16 %v1561
        %v3295 = vunpack.c.h.b16 %v1561
        %v3296 = vunpack.c.l.b16 %v1562
        %v3297 = vunpack.c.h.b16 %v1562
        %v3298 = vunpack.c.l.b16 %v1563
        %v3299 = vunpack.c.h.b16 %v1563
        %v3300 = vunpack.c.l.b16 %v1564
        %v3301 = vunpack.c.h.b16 %v1564
        %v3302 = vunpack.c.l.b16 %v1565
        %v3303 = vunpack.c.h.b16 %v1565
        %v3304 = vunpack.c.l.b16 %v1566
        %v3305 = vunpack.c.h.b16 %v1566
        %v3306 = vunpack.c.l.b16 %v1567
        %v3307 = vunpack.c.h.b16 %v1567
        %v3308 = vunpack.c.l.b16 %v1568
        %v3309 = vunpack.c.h.b16 %v1568
        %v3310 = vunpack.c.l.b16 %v1569
        %v3311 = vunpack.c.l.b16 %v1570
        %v3312 = vunpack.c.h.b16 %v1570
        %v3313 = vunpack.c.l.b16 %v1571
        %v3314 = vunpack.c.h.b16 %v1571
        %v3315 = vunpack.c.l.b16 %v1572
        %v3316 = vunpack.c.h.b16 %v1572
        %v3317 = vunpack.c.l.b16 %v1573
        %v3318 = vunpack.c.h.b16 %v1573
        %v3319 = vunpack.c.l.b16 %v1574
        %v3320 = vunpack.c.h.b16 %v1574
        %v3321 = vunpack.c.l.b16 %v1575
        %v3322 = vunpack.c.h.b16 %v1575
        %v3323 = vunpack.c.l.b16 %v1576
        %v3324 = vunpack.c.h.b16 %v1576
        %v3325 = vunpack.c.l.b16 %v1577
        %v3326 = vunpack.c.h.b16 %v1577
        %v3327 = vunpack.c.l.b16 %v1578
        %v3328 = vunpack.c.h.b16 %v1578
        %v3329 = vunpack.c.l.b16 %v1579
        %v3330 = vunpack.c.l.b16 %v1580
        %v3331 = vunpack.c.h.b16 %v1580
        %v3332 = vunpack.c.l.b16 %v1581
        %v3333 = vunpack.c.h.b16 %v1581
        %v3334 = vunpack.c.l.b16 %v1582
        %v3335 = vunpack.c.h.b16 %v1582
        %v3336 = vunpack.c.l.b16 %v1583
        %v3337 = vunpack.c.h.b16 %v1583
        %v3338 = vunpack.c.l.b16 %v1584
        %v3339 = vunpack.c.h.b16 %v1584
        %v3340 = vunpack.c.l.b16 %v1585
        %v3341 = vunpack.c.h.b16 %v1585
        %v3342 = vunpack.c.l.b16 %v1586
        %v3343 = vunpack.c.h.b16 %v1586
        %v3344 = vunpack.c.l.b16 %v1587
        %v3345 = vunpack.c.h.b16 %v1587
        %v3346 = vunpack.c.l.b16 %v1588
        %v3347 = vunpack.c.h.b16 %v1588
        %v3348 = vunpack.c.l.b16 %v1589
        %v3349 = vunpack.c.l.b16 %v1590
        %v3350 = vunpack.c.h.b16 %v1590
        %v3351 = vunpack.c.l.b16 %v1591
        %v3352 = vunpack.c.h.b16 %v1591
        %v3353 = vunpack.c.l.b16 %v1592
        %v3354 = vunpack.c.h.b16 %v1592
        %v3355 = vunpack.c.l.b16 %v1593
        %v3356 = vunpack.c.h.b16 %v1593
        %v3357 = vunpack.c.l.b16 %v1594
        %v3358 = vunpack.c.h.b16 %v1594
        %v3359 = vunpack.c.l.b16 %v1595
        %v3360 = vunpack.c.h.b16 %v1595
        %v3361 = vunpack.c.l.b16 %v1596
        %v3362 = vunpack.c.h.b16 %v1596
        %v3363 = vunpack.c.l.b16 %v1597
        %v3364 = vunpack.c.h.b16 %v1597
        %v3365 = vunpack.c.l.b16 %v1598
        %v3366 = vunpack.c.h.b16 %v1598
        %v3367 = vunpack.c.l.b16 %v1599
        %v3368 = vunpack.c.l.b16 %v1600
        %v3369 = vunpack.c.h.b16 %v1600
        %v3370 = vunpack.c.l.b16 %v1601
        %v3371 = vunpack.c.h.b16 %v1601
        %v3372 = vunpack.c.l.b16 %v1602
        %v3373 = vunpack.c.h.b16 %v1602
        %v3374 = vunpack.c.l.b16 %v1603
        %v3375 = vunpack.c.h.b16 %v1603
        %v3376 = vunpack.c.l.b16 %v1604
        %v3377 = vunpack.c.h.b16 %v1604
        %v3378 = vunpack.c.l.b16 %v1605
        %v3379 = vunpack.c.h.b16 %v1605
        %v3380 = vunpack.c.l.b16 %v1606
        %v3381 = vunpack.c.h.b16 %v1606
        %v3382 = vunpack.c.l.b16 %v1607
        %v3383 = vunpack.c.h.b16 %v1607
        %v3384 = vunpack.c.l.b16 %v1608
        %v3385 = vunpack.c.h.b16 %v1608
        %v3386 = vunpack.c.l.b16 %v1609
        %v3387 = vunpack.c.l.b16 %v1610
        %v3388 = vunpack.c.h.b16 %v1610
        %v3389 = vunpack.c.l.b16 %v1611
        %v3390 = vunpack.c.h.b16 %v1611
        %v3391 = vunpack.c.l.b16 %v1612
        %v3392 = vunpack.c.h.b16 %v1612
        %v3393 = vunpack.c.l.b16 %v1613
        %v3394 = vunpack.c.h.b16 %v1613
        %v3395 = vunpack.c.l.b16 %v1614
        %v3396 = vunpack.c.h.b16 %v1614
        %v3397 = vunpack.c.l.b16 %v1615
        %v3398 = vunpack.c.h.b16 %v1615
        %v3399 = vunpack.c.l.b16 %v1616
        %v3400 = vunpack.c.h.b16 %v1616
        %v3401 = vunpack.c.l.b16 %v1617
        %v3402 = vunpack.c.h.b16 %v1617
        %v3403 = vunpack.c.l.b16 %v1618
        %v3404 = vunpack.c.h.b16 %v1618
        %v3405 = vunpack.c.l.b16 %v1619
        %v3406 = vunpack.c.l.b16 %v1620
        %v3407 = vunpack.c.h.b16 %v1620
        %v3408 = vunpack.c.l.b16 %v1621
        %v3409 = vunpack.c.h.b16 %v1621
        %v3410 = vunpack.c.l.b16 %v1622
        %v3411 = vunpack.c.h.b16 %v1622
        %v3412 = vunpack.c.l.b16 %v1623
        %v3413 = vunpack.c.h.b16 %v1623
        %v3414 = vunpack.c.l.b16 %v1624
        %v3415 = vunpack.c.h.b16 %v1624
        %v3416 = vunpack.c.l.b16 %v1625
        %v3417 = vunpack.c.h.b16 %v1625
        %v3418 = vunpack.c.l.b16 %v1626
        %v3419 = vunpack.c.h.b16 %v1626
        %v3420 = vunpack.c.l.b16 %v1627
        %v3421 = vunpack.c.h.b16 %v1627
        %v3422 = vunpack.c.l.b16 %v1628
        %v3423 = vunpack.c.h.b16 %v1628
        %v3424 = vunpack.c.l.b16 %v1629
        %v3425 = vunpack.c.l.b16 %v1630
        %v3426 = vunpack.c.h.b16 %v1630
        %v3427 = vunpack.c.l.b16 %v1631
        %v3428 = vunpack.c.h.b16 %v1631
        %v3429 = vunpack.c.l.b16 %v1632
        %v3430 = vunpack.c.h.b16 %v1632
        %v3431 = vunpack.c.l.b16 %v1633
        %v3432 = vunpack.c.h.b16 %v1633
        %v3433 = vunpack.c.l.b16 %v1634
        %v3434 = vunpack.c.h.b16 %v1634
        %v3435 = vunpack.c.l.b16 %v1635
        %v3436 = vunpack.c.h.b16 %v1635
        %v3437 = vunpack.c.l.b16 %v1636
        %v3438 = vunpack.c.h.b16 %v1636
        %v3439 = vunpack.c.l.b16 %v1637
        %v3440 = vunpack.c.h.b16 %v1637
        %v3441 = vunpack.c.l.b16 %v1638
        %v3442 = vunpack.c.h.b16 %v1638
        %v3443 = vunpack.c.l.b16 %v1639
        %v3444 = vunpack.c.l.b16 %v1640
        %v3445 = vunpack.c.h.b16 %v1640
        %v3446 = vunpack.c.l.b16 %v1641
        %v3447 = vunpack.c.h.b16 %v1641
        %v3448 = vunpack.c.l.b16 %v1642
        %v3449 = vunpack.c.h.b16 %v1642
        %v3450 = vunpack.c.l.b16 %v1643
        %v3451 = vunpack.c.h.b16 %v1643
        %v3452 = vunpack.c.l.b16 %v1644
        %v3453 = vunpack.c.h.b16 %v1644
        %v3454 = vunpack.c.l.b16 %v1645
        %v3455 = vunpack.c.h.b16 %v1645
        %v3456 = vunpack.c.l.b16 %v1646
        %v3457 = vunpack.c.h.b16 %v1646
        %v3458 = vunpack.c.l.b16 %v1647
        %v3459 = vunpack.c.h.b16 %v1647
        %v3460 = vunpack.c.l.b16 %v1648
        %v3461 = vunpack.c.h.b16 %v1648
        %v3462 = vunpack.c.l.b16 %v1649
        %v3463 = vunpack.c.l.b16 %v1650
        %v3464 = vunpack.c.h.b16 %v1650
        %v3465 = vunpack.c.l.b16 %v1651
        %v3466 = vunpack.c.h.b16 %v1651
        %v3467 = vunpack.c.l.b16 %v1652
        %v3468 = vunpack.c.h.b16 %v1652
        %v3469 = vunpack.c.l.b16 %v1653
        %v3470 = vunpack.c.h.b16 %v1653
        %v3471 = vunpack.c.l.b16 %v1654
        %v3472 = vunpack.c.h.b16 %v1654
        %v3473 = vunpack.c.l.b16 %v1655
        %v3474 = vunpack.c.h.b16 %v1655
        %v3475 = vunpack.c.l.b16 %v1656
        %v3476 = vunpack.c.h.b16 %v1656
        %v3477 = vunpack.c.l.b16 %v1657
        %v3478 = vunpack.c.h.b16 %v1657
        %v3479 = vunpack.c.l.b16 %v1658
        %v3480 = vunpack.c.h.b16 %v1658
        %v3481 = vunpack.c.l.b16 %v1659
        %v3482 = vunpack.c.l.b16 %v1660
        %v3483 = vunpack.c.h.b16 %v1660
        %v3484 = vunpack.c.l.b16 %v1661
        %v3485 = vunpack.c.h.b16 %v1661
        %v3486 = vunpack.c.l.b16 %v1662
        %v3487 = vunpack.c.h.b16 %v1662
        %v3488 = vunpack.c.l.b16 %v1663
        %v3489 = vunpack.c.h.b16 %v1663
        %v3490 = vunpack.c.l.b16 %v1664
        %v3491 = vunpack.c.h.b16 %v1664
        %v3492 = vunpack.c.l.b16 %v1665
        %v3493 = vunpack.c.h.b16 %v1665
        %v3494 = vunpack.c.l.b16 %v1666
        %v3495 = vunpack.c.h.b16 %v1666
        %v3496 = vunpack.c.l.b16 %v1667
        %v3497 = vunpack.c.h.b16 %v1667
        %v3498 = vunpack.c.l.b16 %v1668
        %v3499 = vunpack.c.h.b16 %v1668
        %v3500 = vunpack.c.l.b16 %v1669
        %v3501 = vunpack.c.l.b16 %v1670
        %v3502 = vunpack.c.h.b16 %v1670
        %v3503 = vunpack.c.l.b16 %v1671
        %v3504 = vunpack.c.h.b16 %v1671
        %v3505 = vunpack.c.l.b16 %v1672
        %v3506 = vunpack.c.h.b16 %v1672
        %v3507 = vunpack.c.l.b16 %v1673
        %v3508 = vunpack.c.h.b16 %v1673
        %v3509 = vunpack.c.l.b16 %v1674
        %v3510 = vunpack.c.h.b16 %v1674
        %v3511 = vunpack.c.l.b16 %v1675
        %v3512 = vunpack.c.h.b16 %v1675
        %v3513 = vunpack.c.l.b16 %v1676
        %v3514 = vunpack.c.h.b16 %v1676
        %v3515 = vunpack.c.l.b16 %v1677
        %v3516 = vunpack.c.h.b16 %v1677
        %v3517 = vunpack.c.l.b16 %v1678
        %v3518 = vunpack.c.h.b16 %v1678
        %v3519 = vunpack.c.l.b16 %v1679
        %v3520 = vunpack.c.l.b16 %v1680
        %v3521 = vunpack.c.h.b16 %v1680
        %v3522 = vunpack.c.l.b16 %v1681
        %v3523 = vunpack.c.h.b16 %v1681
        %v3524 = vunpack.c.l.b16 %v1682
        %v3525 = vunpack.c.h.b16 %v1682
        %v3526 = vunpack.c.l.b16 %v1683
        %v3527 = vunpack.c.h.b16 %v1683
        %v3528 = vunpack.c.l.b16 %v1684
        %v3529 = vunpack.c.h.b16 %v1684
        %v3530 = vunpack.c.l.b16 %v1685
        %v3531 = vunpack.c.h.b16 %v1685
        %v3532 = vunpack.c.l.b16 %v1686
        %v3533 = vunpack.c.h.b16 %v1686
        %v3534 = vunpack.c.l.b16 %v1687
        %v3535 = vunpack.c.h.b16 %v1687
        %v3536 = vunpack.c.l.b16 %v1688
        %v3537 = vunpack.c.h.b16 %v1688
        %v3538 = vunpack.c.l.b16 %v1689
        %v3539 = vunpack.c.l.b16 %v1690
        %v3540 = vunpack.c.h.b16 %v1690
        %v3541 = vunpack.c.l.b16 %v1691
        %v3542 = vunpack.c.h.b16 %v1691
        %v3543 = vunpack.c.l.b16 %v1692
        %v3544 = vunpack.c.h.b16 %v1692
        %v3545 = vunpack.c.l.b16 %v1693
        %v3546 = vunpack.c.h.b16 %v1693
        %v3547 = vunpack.c.l.b16 %v1694
        %v3548 = vunpack.c.h.b16 %v1694
        %v3549 = vunpack.c.l.b16 %v1695
        %v3550 = vunpack.c.h.b16 %v1695
        %v3551 = vunpack.c.l.b16 %v1696
        %v3552 = vunpack.c.h.b16 %v1696
        %v3553 = vunpack.c.l.b16 %v1697
        %v3554 = vunpack.c.h.b16 %v1697
        %v3555 = vunpack.c.l.b16 %v1698
        %v3556 = vunpack.c.h.b16 %v1698
        %v3557 = vunpack.c.l.b16 %v1699
        %v3558 = vunpack.c.l.b16 %v1700
        %v3559 = vunpack.c.h.b16 %v1700
        %v3560 = vunpack.c.l.b16 %v1701
        %v3561 = vunpack.c.h.b16 %v1701
        %v3562 = vunpack.c.l.b16 %v1702
        %v3563 = vunpack.c.h.b16 %v1702
        %v3564 = vunpack.c.l.b16 %v1703
        %v3565 = vunpack.c.h.b16 %v1703
        %v3566 = vunpack.c.l.b16 %v1704
        %v3567 = vunpack.c.h.b16 %v1704
        %v3568 = vunpack.c.l.b16 %v1705
        %v3569 = vunpack.c.h.b16 %v1705
        %v3570 = vunpack.c.l.b16 %v1706
        %v3571 = vunpack.c.h.b16 %v1706
        %v3572 = vunpack.c.l.b16 %v1707
        %v3573 = vunpack.c.h.b16 %v1707
        %v3574 = vunpack.c.l.b16 %v1708
        %v3575 = vunpack.c.h.b16 %v1708
        %v3576 = vunpack.c.l.b16 %v1709
        %v3577 = vunpack.c.l.b16 %v1710
        %v3578 = vunpack.c.h.b16 %v1710
        %v3579 = vunpack.c.l.b16 %v1711
        %v3580 = vunpack.c.h.b16 %v1711
        %v3581 = vunpack.c.l.b16 %v1712
        %v3582 = vunpack.c.h.b16 %v1712
        %v3583 = vunpack.c.l.b16 %v1713
        %v3584 = vunpack.c.h.b16 %v1713
        %v3585 = vunpack.c.l.b16 %v1714
        %v3586 = vunpack.c.h.b16 %v1714
        %v3587 = vunpack.c.l.b16 %v1715
        %v3588 = vunpack.c.h.b16 %v1715
        %v3589 = vunpack.c.l.b16 %v1716
        %v3590 = vunpack.c.h.b16 %v1716
        %v3591 = vunpack.c.l.b16 %v1717
        %v3592 = vunpack.c.h.b16 %v1717
        %v3593 = vunpack.c.l.b16 %v1718
        %v3594 = vunpack.c.h.b16 %v1718
        %v3595 = vunpack.c.l.b16 %v1719
        %v3596 = vunpack.c.l.b16 %v1720
        %v3597 = vunpack.c.h.b16 %v1720
        %v3598 = vunpack.c.l.b16 %v1721
        %v3599 = vunpack.c.h.b16 %v1721
        %v3600 = vunpack.c.l.b16 %v1722
        %v3601 = vunpack.c.h.b16 %v1722
        %v3602 = vunpack.c.l.b16 %v1723
        %v3603 = vunpack.c.h.b16 %v1723
        %v3604 = vunpack.c.l.b16 %v1724
        %v3605 = vunpack.c.h.b16 %v1724
        %v3606 = vunpack.c.l.b16 %v1725
        %v3607 = vunpack.c.h.b16 %v1725
        %v3608 = vunpack.c.l.b16 %v1726
        %v3609 = vunpack.c.h.b16 %v1726
        %v3610 = vunpack.c.l.b16 %v1727
        %v3611 = vunpack.c.h.b16 %v1727
        %v3612 = vunpack.c.l.b16 %v1728
        %v3613 = vunpack.c.h.b16 %v1728
        %v3614 = vunpack.c.l.b16 %v1729
        %v3615 = vunpack.c.l.b16 %v1730
        %v3616 = vunpack.c.h.b16 %v1730
        %v3617 = vunpack.c.l.b16 %v1731
        %v3618 = vunpack.c.h.b16 %v1731
        %v3619 = vunpack.c.l.b16 %v1732
        %v3620 = vunpack.c.h.b16 %v1732
        %v3621 = vunpack.c.l.b16 %v1733
        %v3622 = vunpack.c.h.b16 %v1733
        %v3623 = vunpack.c.l.b16 %v1734
        %v3624 = vunpack.c.h.b16 %v1734
        %v3625 = vunpack.c.l.b16 %v1735
        %v3626 = vunpack.c.h.b16 %v1735
        %v3627 = vunpack.c.l.b16 %v1736
        %v3628 = vunpack.c.h.b16 %v1736
        %v3629 = vunpack.c.l.b16 %v1737
        %v3630 = vunpack.c.h.b16 %v1737
        %v3631 = vunpack.c.l.b16 %v1738
        %v3632 = vunpack.c.h.b16 %v1738
        %v3633 = vunpack.c.l.b16 %v1739
        %v3634 = vunpack.c.l.b16 %v1740
        %v3635 = vunpack.c.h.b16 %v1740
        %v3636 = vunpack.c.l.b16 %v1741
        %v3637 = vunpack.c.h.b16 %v1741
        %v3638 = vunpack.c.l.b16 %v1742
        %v3639 = vunpack.c.h.b16 %v1742
        %v3640 = vunpack.c.l.b16 %v1743
        %v3641 = vunpack.c.h.b16 %v1743
        %v3642 = vunpack.c.l.b16 %v1744
        %v3643 = vunpack.c.h.b16 %v1744
        %v3644 = vunpack.c.l.b16 %v1745
        %v3645 = vunpack.c.h.b16 %v1745
        %v3646 = vunpack.c.l.b16 %v1746
        %v3647 = vunpack.c.h.b16 %v1746
        %v3648 = vunpack.c.l.b16 %v1747
        %v3649 = vunpack.c.h.b16 %v1747
        %v3650 = vunpack.c.l.b16 %v1748
        %v3651 = vunpack.c.h.b16 %v1748
        %v3652 = vunpack.c.l.b16 %v1749
        %v3653 = vunpack.c.l.b16 %v1750
        %v3654 = vunpack.c.h.b16 %v1750
        %v3655 = vunpack.c.l.b16 %v1751
        %v3656 = vunpack.c.h.b16 %v1751
        %v3657 = vunpack.c.l.b16 %v1752
        %v3658 = vunpack.c.h.b16 %v1752
        %v3659 = vunpack.c.l.b16 %v1753
        %v3660 = vunpack.c.h.b16 %v1753
        %v3661 = vunpack.c.l.b16 %v1754
        %v3662 = vunpack.c.h.b16 %v1754
        %v3663 = vunpack.c.l.b16 %v1755
        %v3664 = vunpack.c.h.b16 %v1755
        %v3665 = vunpack.c.l.b16 %v1756
        %v3666 = vunpack.c.h.b16 %v1756
        %v3667 = vunpack.c.l.b16 %v1757
        %v3668 = vunpack.c.h.b16 %v1757
        %v3669 = vunpack.c.l.b16 %v1758
        %v3670 = vunpack.c.h.b16 %v1758
        %v3671 = vunpack.c.l.b16 %v1759
        %v3672 = vunpack.c.l.b16 %v1760
        %v3673 = vunpack.c.h.b16 %v1760
        %v3674 = vunpack.c.l.b16 %v1761
        %v3675 = vunpack.c.h.b16 %v1761
        %v3676 = vunpack.c.l.b16 %v1762
        %v3677 = vunpack.c.h.b16 %v1762
        %v3678 = vunpack.c.l.b16 %v1763
        %v3679 = vunpack.c.h.b16 %v1763
        %v3680 = vunpack.c.l.b16 %v1764
        %v3681 = vunpack.c.h.b16 %v1764
        %v3682 = vunpack.c.l.b16 %v1765
        %v3683 = vunpack.c.h.b16 %v1765
        %v3684 = vunpack.c.l.b16 %v1766
        %v3685 = vunpack.c.h.b16 %v1766
        %v3686 = vunpack.c.l.b16 %v1767
        %v3687 = vunpack.c.h.b16 %v1767
        %v3688 = vunpack.c.l.b16 %v1768
        %v3689 = vunpack.c.h.b16 %v1768
        %v3690 = vunpack.c.l.b16 %v1769
        %v3691 = vunpack.c.l.b16 %v1770
        %v3692 = vunpack.c.h.b16 %v1770
        %v3693 = vunpack.c.l.b16 %v1771
        %v3694 = vunpack.c.h.b16 %v1771
        %v3695 = vunpack.c.l.b16 %v1772
        %v3696 = vunpack.c.h.b16 %v1772
        %v3697 = vunpack.c.l.b16 %v1773
        %v3698 = vunpack.c.h.b16 %v1773
        %v3699 = vunpack.c.l.b16 %v1774
        %v3700 = vunpack.c.h.b16 %v1774
        %v3701 = vunpack.c.l.b16 %v1775
        %v3702 = vunpack.c.h.b16 %v1775
        %v3703 = vunpack.c.l.b16 %v1776
        %v3704 = vunpack.c.h.b16 %v1776
        %v3705 = vunpack.c.l.b16 %v1777
        %v3706 = vunpack.c.h.b16 %v1777
        %v3707 = vunpack.c.l.b16 %v1778
        %v3708 = vunpack.c.h.b16 %v1778
        %v3709 = vunpack.c.l.b16 %v1779
        %v3710 = vunpack.c.l.b16 %v1780
        %v3711 = vunpack.c.h.b16 %v1780
        %v3712 = vunpack.c.l.b16 %v1781
        %v3713 = vunpack.c.h.b16 %v1781
        %v3714 = vunpack.c.l.b16 %v1782
        %v3715 = vunpack.c.h.b16 %v1782
        %v3716 = vunpack.c.l.b16 %v1783
        %v3717 = vunpack.c.h.b16 %v1783
        %v3718 = vunpack.c.l.b16 %v1784
        %v3719 = vunpack.c.h.b16 %v1784
        %v3720 = vunpack.c.l.b16 %v1785
        %v3721 = vunpack.c.h.b16 %v1785
        %v3722 = vunpack.c.l.b16 %v1786
        %v3723 = vunpack.c.h.b16 %v1786
        %v3724 = vunpack.c.l.b16 %v1787
        %v3725 = vunpack.c.h.b16 %v1787
        %v3726 = vunpack.c.l.b16 %v1788
        %v3727 = vunpack.c.h.b16 %v1788
        %v3728 = vunpack.c.l.b16 %v1789
        %v3729 = vunpack.c.l.b16 %v1790
        %v3730 = vunpack.c.h.b16 %v1790
        %v3731 = vunpack.c.l.b16 %v1791
        %v3732 = vunpack.c.h.b16 %v1791
        %v3733 = vunpack.c.l.b16 %v1792
        %v3734 = vunpack.c.h.b16 %v1792
        %v3735 = vunpack.c.l.b16 %v1793
        %v3736 = vunpack.c.h.b16 %v1793
        %v3737 = vunpack.c.l.b16 %v1794
        %v3738 = vunpack.c.h.b16 %v1794
        %v3739 = vunpack.c.l.b16 %v1795
        %v3740 = vunpack.c.h.b16 %v1795
        %v3741 = vunpack.c.l.b16 %v1796
        %v3742 = vunpack.c.h.b16 %v1796
        %v3743 = vunpack.c.l.b16 %v1797
        %v3744 = vunpack.c.h.b16 %v1797
        %v3745 = vunpack.c.l.b16 %v1798
        %v3746 = vunpack.c.h.b16 %v1798
        %v3747 = vunpack.c.l.b16 %v1799
        %v3748 = vunpack.c.l.b16 %v1800
        %v3749 = vunpack.c.h.b16 %v1800
        %v3750 = vunpack.c.l.b16 %v1801
        %v3751 = vunpack.c.h.b16 %v1801
        %v3752 = vunpack.c.l.b16 %v1802
        %v3753 = vunpack.c.h.b16 %v1802
        %v3754 = vunpack.c.l.b16 %v1803
        %v3755 = vunpack.c.h.b16 %v1803
        %v3756 = vunpack.c.l.b16 %v1804
        %v3757 = vunpack.c.h.b16 %v1804
        %v3758 = vunpack.c.l.b16 %v1805
        %v3759 = vunpack.c.h.b16 %v1805
        %v3760 = vunpack.c.l.b16 %v1806
        %v3761 = vunpack.c.h.b16 %v1806
        %v3762 = vunpack.c.l.b16 %v1807
        %v3763 = vunpack.c.h.b16 %v1807
        %v3764 = vunpack.c.l.b16 %v1808
        %v3765 = vunpack.c.h.b16 %v1808
        %v3766 = vunpack.c.l.b16 %v1809
        %v3767 = vpack.c.b16 %v2570, %v2551
        %v3768 = vpack.c.b16 %v2571, %v2552
        %v3769 = vpack.c.b16 %v2572, %v2553
        %v3770 = vpack.c.b16 %v2573, %v2554
        %v3771 = vpack.c.b16 %v2574, %v2555
        %v3772 = vpack.c.b16 %v2575, %v2556
        %v3773 = vpack.c.b16 %v2576, %v2557
        %v3774 = vpack.c.b16 %v2577, %v2558
        %v3775 = vpack.c.b16 %v2578, %v2559
        %v3776 = vpack.c.b16 %v2579, %v2560
        %v3777 = vpack.c.b16 %v2580, %v2561
        %v3778 = vpack.c.b16 %v2581, %v2562
        %v3779 = vpack.c.b16 %v2582, %v2563
        %v3780 = vpack.c.b16 %v2583, %v2564
        %v3781 = vpack.c.b16 %v2584, %v2565
        %v3782 = vpack.c.b16 %v2585, %v2566
        %v3783 = vpack.c.b16 %v2586, %v2567
        %v3784 = vpack.c.b16 %v2587, %v2568
        %v3785 = vpack.c.b16 %v2588, %v2569
        %v3786 = vpack.c.b16 %v2608, %v2589
        %v3787 = vpack.c.b16 %v2609, %v2590
        %v3788 = vpack.c.b16 %v2610, %v2591
        %v3789 = vpack.c.b16 %v2611, %v2592
        %v3790 = vpack.c.b16 %v2612, %v2593
        %v3791 = vpack.c.b16 %v2613, %v2594
        %v3792 = vpack.c.b16 %v2614, %v2595
        %v3793 = vpack.c.b16 %v2615, %v2596
        %v3794 = vpack.c.b16 %v2616, %v2597
        %v3795 = vpack.c.b16 %v2617, %v2598
        %v3796 = vpack.c.b16 %v2618, %v2599
        %v3797 = vpack.c.b16 %v2619, %v2600
        %v3798 = vpack.c.b16 %v2620, %v2601
        %v3799 = vpack.c.b16 %v2621, %v2602
        %v3800 = vpack.c.b16 %v2622, %v2603
        %v3801 = vpack.c.b16 %v2623, %v2604
        %v3802 = vpack.c.b16 %v2624, %v2605
        %v3803 = vpack.c.b16 %v2625, %v2606
        %v3804 = vpack.c.b16 %v2626, %v2607
        %v3805 = vpack.c.b16 %v2646, %v2627
        %v3806 = vpack.c.b16 %v2647, %v2628
        %v3807 = vpack.c.b16 %v2648, %v2629
        %v3808 = vpack.c.b16 %v2649, %v2630
        %v3809 = vpack.c.b16 %v2650, %v2631
        %v3810 = vpack.c.b16 %v2651, %v2632
        %v3811 = vpack.c.b16 %v2652, %v2633
        %v3812 = vpack.c.b16 %v2653, %v2634
        %v3813 = vpack.c.b16 %v2654, %v2635
        %v3814 = vpack.c.b16 %v2655, %v2636
        %v3815 = vpack.c.b16 %v2656, %v2637
        %v3816 = vpack.c.b16 %v2657, %v2638
        %v3817 = vpack.c.b16 %v2658, %v2639
        %v3818 = vpack.c.b16 %v2659, %v2640
        %v3819 = vpack.c.b16 %v2660, %v2641
        %v3820 = vpack.c.b16 %v2661, %v2642
        %v3821 = vpack.c.b16 %v2662, %v2643
        %v3822 = vpack.c.b16 %v2663, %v2644
        %v3823 = vpack.c.b16 %v2664, %v2645
        %v3824 = vpack.c.b16 %v2684, %v2665
        %v3825 = vpack.c.b16 %v2685, %v2666
        %v3826 = vpack.c.b16 %v2686, %v2667
        %v3827 = vpack.c.b16 %v2687, %v2668
        %v3828 = vpack.c.b16 %v2688, %v2669
        %v3829 = vpack.c.b16 %v2689, %v2670
        %v3830 = vpack.c.b16 %v2690, %v2671
        %v3831 = vpack.c.b16 %v2691, %v2672
        %v3832 = vpack.c.b16 %v2692, %v2673
        %v3833 = vpack.c.b16 %v2693, %v2674
        %v3834 = vpack.c.b16 %v2694, %v2675
        %v3835 = vpack.c.b16 %v2695, %v2676
        %v3836 = vpack.c.b16 %v2696, %v2677
        %v3837 = vpack.c.b16 %v2697, %v2678
        %v3838 = vpack.c.b16 %v2698, %v2679
        %v3839 = vpack.c.b16 %v2699, %v2680
        %v3840 = vpack.c.b16 %v2700, %v2681
        %v3841 = vpack.c.b16 %v2701, %v2682
        %v3842 = vpack.c.b16 %v2702, %v2683
        %v3843 = vpack.c.b16 %v2722, %v2703
        %v3844 = vpack.c.b16 %v2723, %v2704
        %v3845 = vpack.c.b16 %v2724, %v2705
        %v3846 = vpack.c.b16 %v2725, %v2706
        %v3847 = vpack.c.b16 %v2726, %v2707
        %v3848 = vpack.c.b16 %v2727, %v2708
        %v3849 = vpack.c.b16 %v2728, %v2709
        %v3850 = vpack.c.b16 %v2729, %v2710
        %v3851 = vpack.c.b16 %v2730, %v2711
        %v3852 = vpack.c.b16 %v2731, %v2712
        %v3853 = vpack.c.b16 %v2732, %v2713
        %v3854 = vpack.c.b16 %v2733, %v2714
        %v3855 = vpack.c.b16 %v2734, %v2715
        %v3856 = vpack.c.b16 %v2735, %v2716
        %v3857 = vpack.c.b16 %v2736, %v2717
        %v3858 = vpack.c.b16 %v2737, %v2718
        %v3859 = vpack.c.b16 %v2738, %v2719
        %v3860 = vpack.c.b16 %v2739, %v2720
        %v3861 = vpack.c.b16 %v2740, %v2721
        %v3862 = vpack.c.b16 %v2760, %v2741
        %v3863 = vpack.c.b16 %v2761, %v2742
        %v3864 = vpack.c.b16 %v2762, %v2743
        %v3865 = vpack.c.b16 %v2763, %v2744
        %v3866 = vpack.c.b16 %v2764, %v2745
        %v3867 = vpack.c.b16 %v2765, %v2746
        %v3868 = vpack.c.b16 %v2766, %v2747
        %v3869 = vpack.c.b16 %v2767, %v2748
        %v3870 = vpack.c.b16 %v2768, %v2749
        %v3871 = vpack.c.b16 %v2769, %v2750
        %v3872 = vpack.c.b16 %v2770, %v2751
        %v3873 = vpack.c.b16 %v2771, %v2752
        %v3874 = vpack.c.b16 %v2772, %v2753
        %v3875 = vpack.c.b16 %v2773, %v2754
        %v3876 = vpack.c.b16 %v2774, %v2755
        %v3877 = vpack.c.b16 %v2775, %v2756
        %v3878 = vpack.c.b16 %v2776, %v2757
        %v3879 = vpack.c.b16 %v2777, %v2758
        %v3880 = vpack.c.b16 %v2778, %v2759
        %v3881 = vpack.c.b16 %v2798, %v2779
        %v3882 = vpack.c.b16 %v2799, %v2780
        %v3883 = vpack.c.b16 %v2800, %v2781
        %v3884 = vpack.c.b16 %v2801, %v2782
        %v3885 = vpack.c.b16 %v2802, %v2783
        %v3886 = vpack.c.b16 %v2803, %v2784
        %v3887 = vpack.c.b16 %v2804, %v2785
        %v3888 = vpack.c.b16 %v2805, %v2786
        %v3889 = vpack.c.b16 %v2806, %v2787
        %v3890 = vpack.c.b16 %v2807, %v2788
        %v3891 = vpack.c.b16 %v2808, %v2789
        %v3892 = vpack.c.b16 %v2809, %v2790
        %v3893 = vpack.c.b16 %v2810, %v2791
        %v3894 = vpack.c.b16 %v2811, %v2792
        %v3895 = vpack.c.b16 %v2812, %v2793
        %v3896 = vpack.c.b16 %v2813, %v2794
        %v3897 = vpack.c.b16 %v2814, %v2795
        %v3898 = vpack.c.b16 %v2815, %v2796
        %v3899 = vpack.c.b16 %v2816, %v2797
        %v3900 = vpack.c.b16 %v2836, %v2817
        %v3901 = vpack.c.b16 %v2837, %v2818
        %v3902 = vpack.c.b16 %v2838, %v2819
        %v3903 = vpack.c.b16 %v2839, %v2820
        %v3904 = vpack.c.b16 %v2840, %v2821
        %v3905 = vpack.c.b16 %v2841, %v2822
        %v3906 = vpack.c.b16 %v2842, %v2823
        %v3907 = vpack.c.b16 %v2843, %v2824
        %v3908 = vpack.c.b16 %v2844, %v2825
        %v3909 = vpack.c.b16 %v2845, %v2826
        %v3910 = vpack.c.b16 %v2846, %v2827
        %v3911 = vpack.c.b16 %v2847, %v2828
        %v3912 = vpack.c.b16 %v2848, %v2829
        %v3913 = vpack.c.b16 %v2849, %v2830
        %v3914 = vpack.c.b16 %v2850, %v2831
        %v3915 = vpack.c.b16 %v2851, %v2832
        %v3916 = vpack.c.b16 %v2852, %v2833
        %v3917 = vpack.c.b16 %v2853, %v2834
        %v3918 = vpack.c.b16 %v2854, %v2835
        %v3919 = vpack.c.b16 %v2874, %v2855
        %v3920 = vpack.c.b16 %v2875, %v2856
        %v3921 = vpack.c.b16 %v2876, %v2857
        %v3922 = vpack.c.b16 %v2877, %v2858
        %v3923 = vpack.c.b16 %v2878, %v2859
        %v3924 = vpack.c.b16 %v2879, %v2860
        %v3925 = vpack.c.b16 %v2880, %v2861
        %v3926 = vpack.c.b16 %v2881, %v2862
        %v3927 = vpack.c.b16 %v2882, %v2863
        %v3928 = vpack.c.b16 %v2883, %v2864
        %v3929 = vpack.c.b16 %v2884, %v2865
        %v3930 = vpack.c.b16 %v2885, %v2866
        %v3931 = vpack.c.b16 %v2886, %v2867
        %v3932 = vpack.c.b16 %v2887, %v2868
        %v3933 = vpack.c.b16 %v2888, %v2869
        %v3934 = vpack.c.b16 %v2889, %v2870
        %v3935 = vpack.c.b16 %v2890, %v2871
        %v3936 = vpack.c.b16 %v2891, %v2872
        %v3937 = vpack.c.b16 %v2892, %v2873
        %v3938 = vpack.c.b16 %v2912, %v2893
        %v3939 = vpack.c.b16 %v2913, %v2894
        %v3940 = vpack.c.b16 %v2914, %v2895
        %v3941 = vpack.c.b16 %v2915, %v2896
        %v3942 = vpack.c.b16 %v2916, %v2897
        %v3943 = vpack.c.b16 %v2917, %v2898
        %v3944 = vpack.c.b16 %v2918, %v2899
        %v3945 = vpack.c.b16 %v2919, %v2900
        %v3946 = vpack.c.b16 %v2920, %v2901
        %v3947 = vpack.c.b16 %v2921, %v2902
        %v3948 = vpack.c.b16 %v2922, %v2903
        %v3949 = vpack.c.b16 %v2923, %v2904
        %v3950 = vpack.c.b16 %v2924, %v2905
        %v3951 = vpack.c.b16 %v2925, %v2906
        %v3952 = vpack.c.b16 %v2926, %v2907
        %v3953 = vpack.c.b16 %v2927, %v2908
        %v3954 = vpack.c.b16 %v2928, %v2909
        %v3955 = vpack.c.b16 %v2929, %v2910
        %v3956 = vpack.c.b16 %v2930, %v2911
        %v3957 = vpack.c.b16 %v2950, %v2931
        %v3958 = vpack.c.b16 %v2951, %v2932
        %v3959 = vpack.c.b16 %v2952, %v2933
        %v3960 = vpack.c.b16 %v2953, %v2934
        %v3961 = vpack.c.b16 %v2954, %v2935
        %v3962 = vpack.c.b16 %v2955, %v2936
        %v3963 = vpack.c.b16 %v2956, %v2937
        %v3964 = vpack.c.b16 %v2957, %v2938
        %v3965 = vpack.c.b16 %v2958, %v2939
        %v3966 = vpack.c.b16 %v2959, %v2940
        %v3967 = vpack.c.b16 %v2960, %v2941
        %v3968 = vpack.c.b16 %v2961, %v2942
        %v3969 = vpack.c.b16 %v2962, %v2943
        %v3970 = vpack.c.b16 %v2963, %v2944
        %v3971 = vpack.c.b16 %v2964, %v2945
        %v3972 = vpack.c.b16 %v2965, %v2946
        %v3973 = vpack.c.b16 %v2966, %v2947
        %v3974 = vpack.c.b16 %v2967, %v2948
        %v3975 = vpack.c.b16 %v2968, %v2949
        %v3976 = vpack.c.b16 %v2988, %v2969
        %v3977 = vpack.c.b16 %v2989, %v2970
        %v3978 = vpack.c.b16 %v2990, %v2971
        %v3979 = vpack.c.b16 %v2991, %v2972
        %v3980 = vpack.c.b16 %v2992, %v2973
        %v3981 = vpack.c.b16 %v2993, %v2974
        %v3982 = vpack.c.b16 %v2994, %v2975
        %v3983 = vpack.c.b16 %v2995, %v2976
        %v3984 = vpack.c.b16 %v2996, %v2977
        %v3985 = vpack.c.b16 %v2997, %v2978
        %v3986 = vpack.c.b16 %v2998, %v2979
        %v3987 = vpack.c.b16 %v2999, %v2980
        %v3988 = vpack.c.b16 %v3000, %v2981
        %v3989 = vpack.c.b16 %v3001, %v2982
        %v3990 = vpack.c.b16 %v3002, %v2983
        %v3991 = vpack.c.b16 %v3003, %v2984
        %v3992 = vpack.c.b16 %v3004, %v2985
        %v3993 = vpack.c.b16 %v3005, %v2986
        %v3994 = vpack.c.b16 %v3006, %v2987
        %v3995 = vpack.c.b16 %v3026, %v3007
        %v3996 = vpack.c.b16 %v3027, %v3008
        %v3997 = vpack.c.b16 %v3028, %v3009
        %v3998 = vpack.c.b16 %v3029, %v3010
        %v3999 = vpack.c.b16 %v3030, %v3011
        %v4000 = vpack.c.b16 %v3031, %v3012
        %v4001 = vpack.c.b16 %v3032, %v3013
        %v4002 = vpack.c.b16 %v3033, %v3014
        %v4003 = vpack.c.b16 %v3034, %v3015
        %v4004 = vpack.c.b16 %v3035, %v3016
        %v4005 = vpack.c.b16 %v3036, %v3017
        %v4006 = vpack.c.b16 %v3037, %v3018
        %v4007 = vpack.c.b16 %v3038, %v3019
        %v4008 = vpack.c.b16 %v3039, %v3020
        %v4009 = vpack.c.b16 %v3040, %v3021
        %v4010 = vpack.c.b16 %v3041, %v3022
        %v4011 = vpack.c.b16 %v3042, %v3023
        %v4012 = vpack.c.b16 %v3043, %v3024
        %v4013 = vpack.c.b16 %v3044, %v3025
        %v4014 = vpack.c.b16 %v3064, %v3045
        %v4015 = vpack.c.b16 %v3065, %v3046
        %v4016 = vpack.c.b16 %v3066, %v3047
        %v4017 = vpack.c.b16 %v3067, %v3048
        %v4018 = vpack.c.b16 %v3068, %v3049
        %v4019 = vpack.c.b16 %v3069, %v3050
        %v4020 = vpack.c.b16 %v3070, %v3051
        %v4021 = vpack.c.b16 %v3071, %v3052
        %v4022 = vpack.c.b16 %v3072, %v3053
        %v4023 = vpack.c.b16 %v3073, %v3054
        %v4024 = vpack.c.b16 %v3074, %v3055
        %v4025 = vpack.c.b16 %v3075, %v3056
        %v4026 = vpack.c.b16 %v3076, %v3057
        %v4027 = vpack.c.b16 %v3077, %v3058
        %v4028 = vpack.c.b16 %v3078, %v3059
        %v4029 = vpack.c.b16 %v3079, %v3060
        %v4030 = vpack.c.b16 %v3080, %v3061
        %v4031 = vpack.c.b16 %v3081, %v3062
        %v4032 = vpack.c.b16 %v3082, %v3063
        %v4033 = vpack.c.b16 %v3102, %v3083
        %v4034 = vpack.c.b16 %v3103, %v3084
        %v4035 = vpack.c.b16 %v3104, %v3085
        %v4036 = vpack.c.b16 %v3105, %v3086
        %v4037 = vpack.c.b16 %v3106, %v3087
        %v4038 = vpack.c.b16 %v3107, %v3088
        %v4039 = vpack.c.b16 %v3108, %v3089
        %v4040 = vpack.c.b16 %v3109, %v3090
        %v4041 = vpack.c.b16 %v3110, %v3091
        %v4042 = vpack.c.b16 %v3111, %v3092
        %v4043 = vpack.c.b16 %v3112, %v3093
        %v4044 = vpack.c.b16 %v3113, %v3094
        %v4045 = vpack.c.b16 %v3114, %v3095
        %v4046 = vpack.c.b16 %v3115, %v3096
        %v4047 = vpack.c.b16 %v3116, %v3097
        %v4048 = vpack.c.b16 %v3117, %v3098
        %v4049 = vpack.c.b16 %v3118, %v3099
        %v4050 = vpack.c.b16 %v3119, %v3100
        %v4051 = vpack.c.b16 %v3120, %v3101
        %v4052 = vpack.c.b16 %v3140, %v3121
        %v4053 = vpack.c.b16 %v3141, %v3122
        %v4054 = vpack.c.b16 %v3142, %v3123
        %v4055 = vpack.c.b16 %v3143, %v3124
        %v4056 = vpack.c.b16 %v3144, %v3125
        %v4057 = vpack.c.b16 %v3145, %v3126
        %v4058 = vpack.c.b16 %v3146, %v3127
        %v4059 = vpack.c.b16 %v3147, %v3128
        %v4060 = vpack.c.b16 %v3148, %v3129
        %v4061 = vpack.c.b16 %v3149, %v3130
        %v4062 = vpack.c.b16 %v3150, %v3131
        %v4063 = vpack.c.b16 %v3151, %v3132
        %v4064 = vpack.c.b16 %v3152, %v3133
        %v4065 = vpack.c.b16 %v3153, %v3134
        %v4066 = vpack.c.b16 %v3154, %v3135
        %v4067 = vpack.c.b16 %v3155, %v3136
        %v4068 = vpack.c.b16 %v3156, %v3137
        %v4069 = vpack.c.b16 %v3157, %v3138
        %v4070 = vpack.c.b16 %v3158, %v3139
        %v4071 = vpack.c.b16 %v3178, %v3159
        %v4072 = vpack.c.b16 %v3179, %v3160
        %v4073 = vpack.c.b16 %v3180, %v3161
        %v4074 = vpack.c.b16 %v3181, %v3162
        %v4075 = vpack.c.b16 %v3182, %v3163
        %v4076 = vpack.c.b16 %v3183, %v3164
        %v4077 = vpack.c.b16 %v3184, %v3165
        %v4078 = vpack.c.b16 %v3185, %v3166
        %v4079 = vpack.c.b16 %v3186, %v3167
        %v4080 = vpack.c.b16 %v3187, %v3168
        %v4081 = vpack.c.b16 %v3188, %v3169
        %v4082 = vpack.c.b16 %v3189, %v3170
        %v4083 = vpack.c.b16 %v3190, %v3171
        %v4084 = vpack.c.b16 %v3191, %v3172
        %v4085 = vpack.c.b16 %v3192, %v3173
        %v4086 = vpack.c.b16 %v3193, %v3174
        %v4087 = vpack.c.b16 %v3194, %v3175
        %v4088 = vpack.c.b16 %v3195, %v3176
        %v4089 = vpack.c.b16 %v3196, %v3177
        %v4090 = vpack.c.b16 %v3216, %v3197
        %v4091 = vpack.c.b16 %v3217, %v3198
        %v4092 = vpack.c.b16 %v3218, %v3199
        %v4093 = vpack.c.b16 %v3219, %v3200
        %v4094 = vpack.c.b16 %v3220, %v3201
        %v4095 = vpack.c.b16 %v3221, %v3202
        %v4096 = vpack.c.b16 %v3222, %v3203
        %v4097 = vpack.c.b16 %v3223, %v3204
        %v4098 = vpack.c.b16 %v3224, %v3205
        %v4099 = vpack.c.b16 %v3225, %v3206
        %v4100 = vpack.c.b16 %v3226, %v3207
        %v4101 = vpack.c.b16 %v3227, %v3208
        %v4102 = vpack.c.b16 %v3228, %v3209
        %v4103 = vpack.c.b16 %v3229, %v3210
        %v4104 = vpack.c.b16 %v3230, %v3211
        %v4105 = vpack.c.b16 %v3231, %v3212
        %v4106 = vpack.c.b16 %v3232, %v3213
        %v4107 = vpack.c.b16 %v3233, %v3214
        %v4108 = vpack.c.b16 %v3234, %v3215
        %v4109 = vpack.c.b16 %v3254, %v3235
        %v4110 = vpack.c.b16 %v3255, %v3236
        %v4111 = vpack.c.b16 %v3256, %v3237
        %v4112 = vpack.c.b16 %v3257, %v3238
        %v4113 = vpack.c.b16 %v3258, %v3239
        %v4114 = vpack.c.b16 %v3259, %v3240
        %v4115 = vpack.c.b16 %v3260, %v3241
        %v4116 = vpack.c.b16 %v3261, %v3242
        %v4117 = vpack.c.b16 %v3262, %v3243
        %v4118 = vpack.c.b16 %v3263, %v3244
        %v4119 = vpack.c.b16 %v3264, %v3245
        %v4120 = vpack.c.b16 %v3265, %v3246
        %v4121 = vpack.c.b16 %v3266, %v3247
        %v4122 = vpack.c.b16 %v3267, %v3248
        %v4123 = vpack.c.b16 %v3268, %v3249
        %v4124 = vpack.c.b16 %v3269, %v3250
        %v4125 = vpack.c.b16 %v3270, %v3251
        %v4126 = vpack.c.b16 %v3271, %v3252
        %v4127 = vpack.c.b16 %v3272, %v3253
        %v4128 = vpack.c.b16 %v3292, %v3273
        %v4129 = vpack.c.b16 %v3293, %v3274
        %v4130 = vpack.c.b16 %v3294, %v3275
        %v4131 = vpack.c.b16 %v3295, %v3276
        %v4132 = vpack.c.b16 %v3296, %v3277
        %v4133 = vpack.c.b16 %v3297, %v3278
        %v4134 = vpack.c.b16 %v3298, %v3279
        %v4135 = vpack.c.b16 %v3299, %v3280
        %v4136 = vpack.c.b16 %v3300, %v3281
        %v4137 = vpack.c.b16 %v3301, %v3282
        %v4138 = vpack.c.b16 %v3302, %v3283
        %v4139 = vpack.c.b16 %v3303, %v3284
        %v4140 = vpack.c.b16 %v3304, %v3285
        %v4141 = vpack.c.b16 %v3305, %v3286
        %v4142 = vpack.c.b16 %v3306, %v3287
        %v4143 = vpack.c.b16 %v3307, %v3288
        %v4144 = vpack.c.b16 %v3308, %v3289
        %v4145 = vpack.c.b16 %v3309, %v3290
        %v4146 = vpack.c.b16 %v3310, %v3291
        %v4147 = vpack.c.b16 %v3330, %v3311
        %v4148 = vpack.c.b16 %v3331, %v3312
        %v4149 = vpack.c.b16 %v3332, %v3313
        %v4150 = vpack.c.b16 %v3333, %v3314
        %v4151 = vpack.c.b16 %v3334, %v3315
        %v4152 = vpack.c.b16 %v3335, %v3316
        %v4153 = vpack.c.b16 %v3336, %v3317
        %v4154 = vpack.c.b16 %v3337, %v3318
        %v4155 = vpack.c.b16 %v3338, %v3319
        %v4156 = vpack.c.b16 %v3339, %v3320
        %v4157 = vpack.c.b16 %v3340, %v3321
        %v4158 = vpack.c.b16 %v3341, %v3322
        %v4159 = vpack.c.b16 %v3342, %v3323
        %v4160 = vpack.c.b16 %v3343, %v3324
        %v4161 = vpack.c.b16 %v3344, %v3325
        %v4162 = vpack.c.b16 %v3345, %v3326
        %v4163 = vpack.c.b16 %v3346, %v3327
        %v4164 = vpack.c.b16 %v3347, %v3328
        %v4165 = vpack.c.b16 %v3348, %v3329
        %v4166 = vpack.c.b16 %v3368, %v3349
        %v4167 = vpack.c.b16 %v3369, %v3350
        %v4168 = vpack.c.b16 %v3370, %v3351
        %v4169 = vpack.c.b16 %v3371, %v3352
        %v4170 = vpack.c.b16 %v3372, %v3353
        %v4171 = vpack.c.b16 %v3373, %v3354
        %v4172 = vpack.c.b16 %v3374, %v3355
        %v4173 = vpack.c.b16 %v3375, %v3356
        %v4174 = vpack.c.b16 %v3376, %v3357
        %v4175 = vpack.c.b16 %v3377, %v3358
        %v4176 = vpack.c.b16 %v3378, %v3359
        %v4177 = vpack.c.b16 %v3379, %v3360
        %v4178 = vpack.c.b16 %v3380, %v3361
        %v4179 = vpack.c.b16 %v3381, %v3362
        %v4180 = vpack.c.b16 %v3382, %v3363
        %v4181 = vpack.c.b16 %v3383, %v3364
        %v4182 = vpack.c.b16 %v3384, %v3365
        %v4183 = vpack.c.b16 %v3385, %v3366
        %v4184 = vpack.c.b16 %v3386, %v3367
        %v4185 = vpack.c.b16 %v3406, %v3387
        %v4186 = vpack.c.b16 %v3407, %v3388
        %v4187 = vpack.c.b16 %v3408, %v3389
        %v4188 = vpack.c.b16 %v3409, %v3390
        %v4189 = vpack.c.b16 %v3410, %v3391
        %v4190 = vpack.c.b16 %v3411, %v3392
        %v4191 = vpack.c.b16 %v3412, %v3393
        %v4192 = vpack.c.b16 %v3413, %v3394
        %v4193 = vpack.c.b16 %v3414, %v3395
        %v4194 = vpack.c.b16 %v3415, %v3396
        %v4195 = vpack.c.b16 %v3416, %v3397
        %v4196 = vpack.c.b16 %v3417, %v3398
        %v4197 = vpack.c.b16 %v3418, %v3399
        %v4198 = vpack.c.b16 %v3419, %v3400
        %v4199 = vpack.c.b16 %v3420, %v3401
        %v4200 = vpack.c.b16 %v3421, %v3402
        %v4201 = vpack.c.b16 %v3422, %v3403
        %v4202 = vpack.c.b16 %v3423, %v3404
        %v4203 = vpack.c.b16 %v3424, %v3405
        %v4204 = vpack.c.b16 %v3444, %v3425
        %v4205 = vpack.c.b16 %v3445, %v3426
        %v4206 = vpack.c.b16 %v3446, %v3427
        %v4207 = vpack.c.b16 %v3447, %v3428
        %v4208 = vpack.c.b16 %v3448, %v3429
        %v4209 = vpack.c.b16 %v3449, %v3430
        %v4210 = vpack.c.b16 %v3450, %v3431
        %v4211 = vpack.c.b16 %v3451, %v3432
        %v4212 = vpack.c.b16 %v3452, %v3433
        %v4213 = vpack.c.b16 %v3453, %v3434
        %v4214 = vpack.c.b16 %v3454, %v3435
        %v4215 = vpack.c.b16 %v3455, %v3436
        %v4216 = vpack.c.b16 %v3456, %v3437
        %v4217 = vpack.c.b16 %v3457, %v3438
        %v4218 = vpack.c.b16 %v3458, %v3439
        %v4219 = vpack.c.b16 %v3459, %v3440
        %v4220 = vpack.c.b16 %v3460, %v3441
        %v4221 = vpack.c.b16 %v3461, %v3442
        %v4222 = vpack.c.b16 %v3462, %v3443
        %v4223 = vpack.c.b16 %v3482, %v3463
        %v4224 = vpack.c.b16 %v3483, %v3464
        %v4225 = vpack.c.b16 %v3484, %v3465
        %v4226 = vpack.c.b16 %v3485, %v3466
        %v4227 = vpack.c.b16 %v3486, %v3467
        %v4228 = vpack.c.b16 %v3487, %v3468
        %v4229 = vpack.c.b16 %v3488, %v3469
        %v4230 = vpack.c.b16 %v3489, %v3470
        %v4231 = vpack.c.b16 %v3490, %v3471
        %v4232 = vpack.c.b16 %v3491, %v3472
        %v4233 = vpack.c.b16 %v3492, %v3473
        %v4234 = vpack.c.b16 %v3493, %v3474
        %v4235 = vpack.c.b16 %v3494, %v3475
        %v4236 = vpack.c.b16 %v3495, %v3476
        %v4237 = vpack.c.b16 %v3496, %v3477
        %v4238 = vpack.c.b16 %v3497, %v3478
        %v4239 = vpack.c.b16 %v3498, %v3479
        %v4240 = vpack.c.b16 %v3499, %v3480
        %v4241 = vpack.c.b16 %v3500, %v3481
        %v4242 = vpack.c.b16 %v3520, %v3501
        %v4243 = vpack.c.b16 %v3521, %v3502
        %v4244 = vpack.c.b16 %v3522, %v3503
        %v4245 = vpack.c.b16 %v3523, %v3504
        %v4246 = vpack.c.b16 %v3524, %v3505
        %v4247 = vpack.c.b16 %v3525, %v3506
        %v4248 = vpack.c.b16 %v3526, %v3507
        %v4249 = vpack.c.b16 %v3527, %v3508
        %v4250 = vpack.c.b16 %v3528, %v3509
        %v4251 = vpack.c.b16 %v3529, %v3510
        %v4252 = vpack.c.b16 %v3530, %v3511
        %v4253 = vpack.c.b16 %v3531, %v3512
        %v4254 = vpack.c.b16 %v3532, %v3513
        %v4255 = vpack.c.b16 %v3533, %v3514
        %v4256 = vpack.c.b16 %v3534, %v3515
        %v4257 = vpack.c.b16 %v3535, %v3516
        %v4258 = vpack.c.b16 %v3536, %v3517
        %v4259 = vpack.c.b16 %v3537, %v3518
        %v4260 = vpack.c.b16 %v3538, %v3519
        %v4261 = vpack.c.b16 %v3558, %v3539
        %v4262 = vpack.c.b16 %v3559, %v3540
        %v4263 = vpack.c.b16 %v3560, %v3541
        %v4264 = vpack.c.b16 %v3561, %v3542
        %v4265 = vpack.c.b16 %v3562, %v3543
        %v4266 = vpack.c.b16 %v3563, %v3544
        %v4267 = vpack.c.b16 %v3564, %v3545
        %v4268 = vpack.c.b16 %v3565, %v3546
        %v4269 = vpack.c.b16 %v3566, %v3547
        %v4270 = vpack.c.b16 %v3567, %v3548
        %v4271 = vpack.c.b16 %v3568, %v3549
        %v4272 = vpack.c.b16 %v3569, %v3550
        %v4273 = vpack.c.b16 %v3570, %v3551
        %v4274 = vpack.c.b16 %v3571, %v3552
        %v4275 = vpack.c.b16 %v3572, %v3553
        %v4276 = vpack.c.b16 %v3573, %v3554
        %v4277 = vpack.c.b16 %v3574, %v3555
        %v4278 = vpack.c.b16 %v3575, %v3556
        %v4279 = vpack.c.b16 %v3576, %v3557
        %v4280 = vpack.c.b16 %v3596, %v3577
        %v4281 = vpack.c.b16 %v3597, %v3578
        %v4282 = vpack.c.b16 %v3598, %v3579
        %v4283 = vpack.c.b16 %v3599, %v3580
        %v4284 = vpack.c.b16 %v3600, %v3581
        %v4285 = vpack.c.b16 %v3601, %v3582
        %v4286 = vpack.c.b16 %v3602, %v3583
        %v4287 = vpack.c.b16 %v3603, %v3584
        %v4288 = vpack.c.b16 %v3604, %v3585
        %v4289 = vpack.c.b16 %v3605, %v3586
        %v4290 = vpack.c.b16 %v3606, %v3587
        %v4291 = vpack.c.b16 %v3607, %v3588
        %v4292 = vpack.c.b16 %v3608, %v3589
        %v4293 = vpack.c.b16 %v3609, %v3590
        %v4294 = vpack.c.b16 %v3610, %v3591
        %v4295 = vpack.c.b16 %v3611, %v3592
        %v4296 = vpack.c.b16 %v3612, %v3593
        %v4297 = vpack.c.b16 %v3613, %v3594
        %v4298 = vpack.c.b16 %v3614, %v3595
        %v4299 = vpack.c.b16 %v3634, %v3615
        %v4300 = vpack.c.b16 %v3635, %v3616
        %v4301 = vpack.c.b16 %v3636, %v3617
        %v4302 = vpack.c.b16 %v3637, %v3618
        %v4303 = vpack.c.b16 %v3638, %v3619
        %v4304 = vpack.c.b16 %v3639, %v3620
        %v4305 = vpack.c.b16 %v3640, %v3621
        %v4306 = vpack.c.b16 %v3641, %v3622
        %v4307 = vpack.c.b16 %v3642, %v3623
        %v4308 = vpack.c.b16 %v3643, %v3624
        %v4309 = vpack.c.b16 %v3644, %v3625
        %v4310 = vpack.c.b16 %v3645, %v3626
        %v4311 = vpack.c.b16 %v3646, %v3627
        %v4312 = vpack.c.b16 %v3647, %v3628
        %v4313 = vpack.c.b16 %v3648, %v3629
        %v4314 = vpack.c.b16 %v3649, %v3630
        %v4315 = vpack.c.b16 %v3650, %v3631
        %v4316 = vpack.c.b16 %v3651, %v3632
        %v4317 = vpack.c.b16 %v3652, %v3633
        %v4318 = vpack.c.b16 %v3672, %v3653
        %v4319 = vpack.c.b16 %v3673, %v3654
        %v4320 = vpack.c.b16 %v3674, %v3655
        %v4321 = vpack.c.b16 %v3675, %v3656
        %v4322 = vpack.c.b16 %v3676, %v3657
        %v4323 = vpack.c.b16 %v3677, %v3658
        %v4324 = vpack.c.b16 %v3678, %v3659
        %v4325 = vpack.c.b16 %v3679, %v3660
        %v4326 = vpack.c.b16 %v3680, %v3661
        %v4327 = vpack.c.b16 %v3681, %v3662
        %v4328 = vpack.c.b16 %v3682, %v3663
        %v4329 = vpack.c.b16 %v3683, %v3664
        %v4330 = vpack.c.b16 %v3684, %v3665
        %v4331 = vpack.c.b16 %v3685, %v3666
        %v4332 = vpack.c.b16 %v3686, %v3667
        %v4333 = vpack.c.b16 %v3687, %v3668
        %v4334 = vpack.c.b16 %v3688, %v3669
        %v4335 = vpack.c.b16 %v3689, %v3670
        %v4336 = vpack.c.b16 %v3690, %v3671
        %v4337 = vpack.c.b16 %v3710, %v3691
        %v4338 = vpack.c.b16 %v3711, %v3692
        %v4339 = vpack.c.b16 %v3712, %v3693
        %v4340 = vpack.c.b16 %v3713, %v3694
        %v4341 = vpack.c.b16 %v3714, %v3695
        %v4342 = vpack.c.b16 %v3715, %v3696
        %v4343 = vpack.c.b16 %v3716, %v3697
        %v4344 = vpack.c.b16 %v3717, %v3698
        %v4345 = vpack.c.b16 %v3718, %v3699
        %v4346 = vpack.c.b16 %v3719, %v3700
        %v4347 = vpack.c.b16 %v3720, %v3701
        %v4348 = vpack.c.b16 %v3721, %v3702
        %v4349 = vpack.c.b16 %v3722, %v3703
        %v4350 = vpack.c.b16 %v3723, %v3704
        %v4351 = vpack.c.b16 %v3724, %v3705
        %v4352 = vpack.c.b16 %v3725, %v3706
        %v4353 = vpack.c.b16 %v3726, %v3707
        %v4354 = vpack.c.b16 %v3727, %v3708
        %v4355 = vpack.c.b16 %v3728, %v3709
        %v4356 = vpack.c.b16 %v3748, %v3729
        %v4357 = vpack.c.b16 %v3749, %v3730
        %v4358 = vpack.c.b16 %v3750, %v3731
        %v4359 = vpack.c.b16 %v3751, %v3732
        %v4360 = vpack.c.b16 %v3752, %v3733
        %v4361 = vpack.c.b16 %v3753, %v3734
        %v4362 = vpack.c.b16 %v3754, %v3735
        %v4363 = vpack.c.b16 %v3755, %v3736
        %v4364 = vpack.c.b16 %v3756, %v3737
        %v4365 = vpack.c.b16 %v3757, %v3738
        %v4366 = vpack.c.b16 %v3758, %v3739
        %v4367 = vpack.c.b16 %v3759, %v3740
        %v4368 = vpack.c.b16 %v3760, %v3741
        %v4369 = vpack.c.b16 %v3761, %v3742
        %v4370 = vpack.c.b16 %v3762, %v3743
        %v4371 = vpack.c.b16 %v3763, %v3744
        %v4372 = vpack.c.b16 %v3764, %v3745
        %v4373 = vpack.c.b16 %v3765, %v3746
        %v4374 = vpack.c.b16 %v3766, %v3747
        %4983 = vmatprep.subr.bf16.mxu0 %v3768
        %4984 = vmatpush1.bf16.msra.mxu0 %v3767
        %4985 = vmatprep.subr.bf16.mxu0 %v3787
        %4986 = vmatpush1.bf16.msra.mxu0 %v3786
        %4987 = vmatprep.subr.bf16.mxu0 %v3806
        %4988 = vmatpush1.bf16.msra.mxu0 %v3805
        %4989 = vmatprep.subr.bf16.mxu0 %v3825
        %4990 = vmatpush1.bf16.msra.mxu0 %v3824
        %4991 = vmatprep.subr.bf16.mxu0 %v3844
        %4992 = vmatpush1.bf16.msra.mxu0 %v3843
        %4993 = vmatprep.subr.bf16.mxu0 %v3863
        %4994 = vmatpush1.bf16.msra.mxu0 %v3862
        %4995 = vmatprep.subr.bf16.mxu0 %v3882
        %4996 = vmatpush1.bf16.msra.mxu0 %v3881
        %4997 = vmatprep.subr.bf16.mxu0 %v3901
        %4998 = vmatpush1.bf16.msra.mxu0 %v3900
        %4999 = vmatprep.subr.bf16.mxu0 %v3920
        %5000 = vmatpush1.bf16.msra.mxu0 %v3919
        %5001 = vmatprep.subr.bf16.mxu0 %v3939
        %5002 = vmatpush1.bf16.msra.mxu0 %v3938
        %5003 = vmatprep.subr.bf16.mxu0 %v3958
        %5004 = vmatpush1.bf16.msra.mxu0 %v3957
        %5005 = vmatprep.subr.bf16.mxu0 %v3977
        %5006 = vmatpush1.bf16.msra.mxu0 %v3976
        %5007 = vmatprep.subr.bf16.mxu0 %v3996
        %5008 = vmatpush1.bf16.msra.mxu0 %v3995
        %5009 = vmatprep.subr.bf16.mxu0 %v4015
        %5010 = vmatpush1.bf16.msra.mxu0 %v4014
        %5011 = vmatprep.subr.bf16.mxu0 %v4034
        %5012 = vmatpush1.bf16.msra.mxu0 %v4033
        %5013 = vmatprep.subr.bf16.mxu0 %v4053
        %5014 = vmatpush1.bf16.msra.mxu0 %v4052
        %5015 = vmatprep.mubr.bf16.mxu0 %v1167
        %5016 = vmatmul.mubr.bf16.gmra.mrb[0].mxu0 %v1166
        %v5017 = vpop.f32.mrb[0].mxu0
        %v5018 = vadd.f32 %v1819, %v5017
        %v5019 = vpop.f32.mrb[0].mxu0
        %v5020 = vadd.f32 %v1823, %v5019
        %v5021 = vpop.f32.mrb[0].mxu0
        %v5022 = vpop.f32.mrb[0].mxu0
        %5023 = vdwg.mxu0
        %5024 = vmatprep.subr.bf16.mxu0 %v4072
        %5025 = vmatpush1.bf16.msra.mxu0 %v4071
        %5026 = vmatprep.subr.bf16.mxu0 %v4091
        %5027 = vmatpush1.bf16.msra.mxu0 %v4090
        %5028 = vmatprep.subr.bf16.mxu0 %v4110
        %5029 = vmatpush1.bf16.msra.mxu0 %v4109
        %5030 = vmatprep.subr.bf16.mxu0 %v4129
        %5031 = vmatpush1.bf16.msra.mxu0 %v4128
        %5032 = vmatprep.subr.bf16.mxu0 %v4148
        %5033 = vmatpush1.bf16.msra.mxu0 %v4147
        %5034 = vmatprep.subr.bf16.mxu0 %v4167
        %5035 = vmatpush1.bf16.msra.mxu0 %v4166
        %5036 = vmatprep.subr.bf16.mxu0 %v4186
        %5037 = vmatpush1.bf16.msra.mxu0 %v4185
        %5038 = vmatprep.subr.bf16.mxu0 %v4205
        %5039 = vmatpush1.bf16.msra.mxu0 %v4204
        %5040 = vmatprep.subr.bf16.mxu0 %v4224
        %5041 = vmatpush1.bf16.msra.mxu0 %v4223
        %5042 = vmatprep.subr.bf16.mxu0 %v4243
        %5043 = vmatpush1.bf16.msra.mxu0 %v4242
        %5044 = vmatprep.subr.bf16.mxu0 %v4262
        %5045 = vmatpush1.bf16.msra.mxu0 %v4261
        %5046 = vmatprep.subr.bf16.mxu0 %v4281
        %5047 = vmatpush1.bf16.msra.mxu0 %v4280
        %5048 = vmatprep.subr.bf16.mxu0 %v4300
        %5049 = vmatpush1.bf16.msra.mxu0 %v4299
        %5050 = vmatprep.subr.bf16.mxu0 %v4319
        %5051 = vmatpush1.bf16.msra.mxu0 %v4318
        %5052 = vmatprep.subr.bf16.mxu0 %v4338
        %5053 = vmatpush1.bf16.msra.mxu0 %v4337
        %5054 = vmatprep.subr.bf16.mxu0 %v4357
        %5055 = vmatpush1.bf16.msra.mxu0 %v4356
        %5056 = vmatprep.mubr.bf16.mxu0 %v1169
        %5057 = vmatmul.mubr.bf16.gmra.mrb[0].mxu0 %v1168
        %v5058 = vpop.f32.mrb[0].mxu0
        %v5059 = vadd.f32 %v5018, %v5058
        %v5060 = vpop.f32.mrb[0].mxu0
        %v5061 = vadd.f32 %v5020, %v5060
        %v5062 = vpop.f32.mrb[0].mxu0
        %v5063 = vpop.f32.mrb[0].mxu0
        %5064 = vdwg.mxu0
        %5065 = vmatprep.subr.bf16.mxu0 %v3770
        %5066 = vmatpush1.bf16.msra.mxu0 %v3769
        %5067 = vmatprep.subr.bf16.mxu0 %v3789
        %5068 = vmatpush1.bf16.msra.mxu0 %v3788
        %5069 = vmatprep.subr.bf16.mxu0 %v3808
        %5070 = vmatpush1.bf16.msra.mxu0 %v3807
        %5071 = vmatprep.subr.bf16.mxu0 %v3827
        %5072 = vmatpush1.bf16.msra.mxu0 %v3826
        %5073 = vmatprep.subr.bf16.mxu0 %v3846
        %5074 = vmatpush1.bf16.msra.mxu0 %v3845
        %5075 = vmatprep.subr.bf16.mxu0 %v3865
        %5076 = vmatpush1.bf16.msra.mxu0 %v3864
        %5077 = vmatprep.subr.bf16.mxu0 %v3884
        %5078 = vmatpush1.bf16.msra.mxu0 %v3883
        %5079 = vmatprep.subr.bf16.mxu0 %v3903
        %5080 = vmatpush1.bf16.msra.mxu0 %v3902
        %5081 = vmatprep.subr.bf16.mxu0 %v3922
        %5082 = vmatpush1.bf16.msra.mxu0 %v3921
        %5083 = vmatprep.subr.bf16.mxu0 %v3941
        %5084 = vmatpush1.bf16.msra.mxu0 %v3940
        %5085 = vmatprep.subr.bf16.mxu0 %v3960
        %5086 = vmatpush1.bf16.msra.mxu0 %v3959
        %5087 = vmatprep.subr.bf16.mxu0 %v3979
        %5088 = vmatpush1.bf16.msra.mxu0 %v3978
        %5089 = vmatprep.subr.bf16.mxu0 %v3998
        %5090 = vmatpush1.bf16.msra.mxu0 %v3997
        %5091 = vmatprep.subr.bf16.mxu0 %v4017
        %5092 = vmatpush1.bf16.msra.mxu0 %v4016
        %5093 = vmatprep.subr.bf16.mxu0 %v4036
        %5094 = vmatpush1.bf16.msra.mxu0 %v4035
        %5095 = vmatprep.subr.bf16.mxu0 %v4055
        %5096 = vmatpush1.bf16.msra.mxu0 %v4054
        %5097 = vmatprep.mubr.bf16.mxu0 %v1167
        %5098 = vmatmul.mubr.bf16.gmra.mrb[0].mxu0 %v1166
        %v5099 = vpop.f32.mrb[0].mxu0
        %v5100 = vadd.f32 %v1827, %v5099
        %v5101 = vpop.f32.mrb[0].mxu0
        %v5102 = vadd.f32 %v1831, %v5101
        %v5103 = vpop.f32.mrb[0].mxu0
        %v5104 = vpop.f32.mrb[0].mxu0
        %5105 = vdwg.mxu0
        %5106 = vmatprep.subr.bf16.mxu0 %v4074
        %5107 = vmatpush1.bf16.msra.mxu0 %v4073
        %5108 = vmatprep.subr.bf16.mxu0 %v4093
        %5109 = vmatpush1.bf16.msra.mxu0 %v4092
        %5110 = vmatprep.subr.bf16.mxu0 %v4112
        %5111 = vmatpush1.bf16.msra.mxu0 %v4111
        %5112 = vmatprep.subr.bf16.mxu0 %v4131
        %5113 = vmatpush1.bf16.msra.mxu0 %v4130
        %5114 = vmatprep.subr.bf16.mxu0 %v4150
        %5115 = vmatpush1.bf16.msra.mxu0 %v4149
        %5116 = vmatprep.subr.bf16.mxu0 %v4169
        %5117 = vmatpush1.bf16.msra.mxu0 %v4168
        %5118 = vmatprep.subr.bf16.mxu0 %v4188
        %5119 = vmatpush1.bf16.msra.mxu0 %v4187
        %5120 = vmatprep.subr.bf16.mxu0 %v4207
        %5121 = vmatpush1.bf16.msra.mxu0 %v4206
        %5122 = vmatprep.subr.bf16.mxu0 %v4226
        %5123 = vmatpush1.bf16.msra.mxu0 %v4225
        %5124 = vmatprep.subr.bf16.mxu0 %v4245
        %5125 = vmatpush1.bf16.msra.mxu0 %v4244
        %5126 = vmatprep.subr.bf16.mxu0 %v4264
        %5127 = vmatpush1.bf16.msra.mxu0 %v4263
        %5128 = vmatprep.subr.bf16.mxu0 %v4283
        %5129 = vmatpush1.bf16.msra.mxu0 %v4282
        %5130 = vmatprep.subr.bf16.mxu0 %v4302
        %5131 = vmatpush1.bf16.msra.mxu0 %v4301
        %5132 = vmatprep.subr.bf16.mxu0 %v4321
        %5133 = vmatpush1.bf16.msra.mxu0 %v4320
        %5134 = vmatprep.subr.bf16.mxu0 %v4340
        %5135 = vmatpush1.bf16.msra.mxu0 %v4339
        %5136 = vmatprep.subr.bf16.mxu0 %v4359
        %5137 = vmatpush1.bf16.msra.mxu0 %v4358
        %5138 = vmatprep.mubr.bf16.mxu0 %v1169
        %5139 = vmatmul.mubr.bf16.gmra.mrb[0].mxu0 %v1168
        %v5140 = vpop.f32.mrb[0].mxu0
        %v5141 = vadd.f32 %v5100, %v5140
        %v5142 = vpop.f32.mrb[0].mxu0
        %v5143 = vadd.f32 %v5102, %v5142
        %v5144 = vpop.f32.mrb[0].mxu0
        %v5145 = vpop.f32.mrb[0].mxu0
        %5146 = vdwg.mxu0
        %5147 = vmatprep.subr.bf16.mxu0 %v3772
        %5148 = vmatpush1.bf16.msra.mxu0 %v3771
        %5149 = vmatprep.subr.bf16.mxu0 %v3791
        %5150 = vmatpush1.bf16.msra.mxu0 %v3790
        %5151 = vmatprep.subr.bf16.mxu0 %v3810
        %5152 = vmatpush1.bf16.msra.mxu0 %v3809
        %5153 = vmatprep.subr.bf16.mxu0 %v3829
        %5154 = vmatpush1.bf16.msra.mxu0 %v3828
        %5155 = vmatprep.subr.bf16.mxu0 %v3848
        %5156 = vmatpush1.bf16.msra.mxu0 %v3847
        %5157 = vmatprep.subr.bf16.mxu0 %v3867
        %5158 = vmatpush1.bf16.msra.mxu0 %v3866
        %5159 = vmatprep.subr.bf16.mxu0 %v3886
        %5160 = vmatpush1.bf16.msra.mxu0 %v3885
        %5161 = vmatprep.subr.bf16.mxu0 %v3905
        %5162 = vmatpush1.bf16.msra.mxu0 %v3904
        %5163 = vmatprep.subr.bf16.mxu0 %v3924
        %5164 = vmatpush1.bf16.msra.mxu0 %v3923
        %5165 = vmatprep.subr.bf16.mxu0 %v3943
        %5166 = vmatpush1.bf16.msra.mxu0 %v3942
        %5167 = vmatprep.subr.bf16.mxu0 %v3962
        %5168 = vmatpush1.bf16.msra.mxu0 %v3961
        %5169 = vmatprep.subr.bf16.mxu0 %v3981
        %5170 = vmatpush1.bf16.msra.mxu0 %v3980
        %5171 = vmatprep.subr.bf16.mxu0 %v4000
        %5172 = vmatpush1.bf16.msra.mxu0 %v3999
        %5173 = vmatprep.subr.bf16.mxu0 %v4019
        %5174 = vmatpush1.bf16.msra.mxu0 %v4018
        %5175 = vmatprep.subr.bf16.mxu0 %v4038
        %5176 = vmatpush1.bf16.msra.mxu0 %v4037
        %5177 = vmatprep.subr.bf16.mxu0 %v4057
        %5178 = vmatpush1.bf16.msra.mxu0 %v4056
        %5179 = vmatprep.mubr.bf16.mxu0 %v1167
        %5180 = vmatmul.mubr.bf16.gmra.mrb[0].mxu0 %v1166
        %v5181 = vpop.f32.mrb[0].mxu0
        %v5182 = vadd.f32 %v1835, %v5181
        %v5183 = vpop.f32.mrb[0].mxu0
        %v5184 = vadd.f32 %v1839, %v5183
        %v5185 = vpop.f32.mrb[0].mxu0
        %v5186 = vpop.f32.mrb[0].mxu0
        %5187 = vdwg.mxu0
        %5188 = vmatprep.subr.bf16.mxu0 %v4076
        %5189 = vmatpush1.bf16.msra.mxu0 %v4075
        %5190 = vmatprep.subr.bf16.mxu0 %v4095
        %5191 = vmatpush1.bf16.msra.mxu0 %v4094
        %5192 = vmatprep.subr.bf16.mxu0 %v4114
        %5193 = vmatpush1.bf16.msra.mxu0 %v4113
        %5194 = vmatprep.subr.bf16.mxu0 %v4133
        %5195 = vmatpush1.bf16.msra.mxu0 %v4132
        %5196 = vmatprep.subr.bf16.mxu0 %v4152
        %5197 = vmatpush1.bf16.msra.mxu0 %v4151
        %5198 = vmatprep.subr.bf16.mxu0 %v4171
        %5199 = vmatpush1.bf16.msra.mxu0 %v4170
        %5200 = vmatprep.subr.bf16.mxu0 %v4190
        %5201 = vmatpush1.bf16.msra.mxu0 %v4189
        %5202 = vmatprep.subr.bf16.mxu0 %v4209
        %5203 = vmatpush1.bf16.msra.mxu0 %v4208
        %5204 = vmatprep.subr.bf16.mxu0 %v4228
        %5205 = vmatpush1.bf16.msra.mxu0 %v4227
        %5206 = vmatprep.subr.bf16.mxu0 %v4247
        %5207 = vmatpush1.bf16.msra.mxu0 %v4246
        %5208 = vmatprep.subr.bf16.mxu0 %v4266
        %5209 = vmatpush1.bf16.msra.mxu0 %v4265
        %5210 = vmatprep.subr.bf16.mxu0 %v4285
        %5211 = vmatpush1.bf16.msra.mxu0 %v4284
        %5212 = vmatprep.subr.bf16.mxu0 %v4304
        %5213 = vmatpush1.bf16.msra.mxu0 %v4303
        %5214 = vmatprep.subr.bf16.mxu0 %v4323
        %5215 = vmatpush1.bf16.msra.mxu0 %v4322
        %5216 = vmatprep.subr.bf16.mxu0 %v4342
        %5217 = vmatpush1.bf16.msra.mxu0 %v4341
        %5218 = vmatprep.subr.bf16.mxu0 %v4361
        %5219 = vmatpush1.bf16.msra.mxu0 %v4360
        %5220 = vmatprep.mubr.bf16.mxu0 %v1169
        %5221 = vmatmul.mubr.bf16.gmra.mrb[0].mxu0 %v1168
        %v5222 = vpop.f32.mrb[0].mxu0
        %v5223 = vadd.f32 %v5182, %v5222
        %v5224 = vpop.f32.mrb[0].mxu0
        %v5225 = vadd.f32 %v5184, %v5224
        %v5226 = vpop.f32.mrb[0].mxu0
        %v5227 = vpop.f32.mrb[0].mxu0
        %5228 = vdwg.mxu0
        %5229 = vmatprep.subr.bf16.mxu0 %v3774
        %5230 = vmatpush1.bf16.msra.mxu0 %v3773
        %5231 = vmatprep.subr.bf16.mxu0 %v3793
        %5232 = vmatpush1.bf16.msra.mxu0 %v3792
        %5233 = vmatprep.subr.bf16.mxu0 %v3812
        %5234 = vmatpush1.bf16.msra.mxu0 %v3811
        %5235 = vmatprep.subr.bf16.mxu0 %v3831
        %5236 = vmatpush1.bf16.msra.mxu0 %v3830
        %5237 = vmatprep.subr.bf16.mxu0 %v3850
        %5238 = vmatpush1.bf16.msra.mxu0 %v3849
        %5239 = vmatprep.subr.bf16.mxu0 %v3869
        %5240 = vmatpush1.bf16.msra.mxu0 %v3868
        %5241 = vmatprep.subr.bf16.mxu0 %v3888
        %5242 = vmatpush1.bf16.msra.mxu0 %v3887
        %5243 = vmatprep.subr.bf16.mxu0 %v3907
        %5244 = vmatpush1.bf16.msra.mxu0 %v3906
        %5245 = vmatprep.subr.bf16.mxu0 %v3926
        %5246 = vmatpush1.bf16.msra.mxu0 %v3925
        %5247 = vmatprep.subr.bf16.mxu0 %v3945
        %5248 = vmatpush1.bf16.msra.mxu0 %v3944
        %5249 = vmatprep.subr.bf16.mxu0 %v3964
        %5250 = vmatpush1.bf16.msra.mxu0 %v3963
        %5251 = vmatprep.subr.bf16.mxu0 %v3983
        %5252 = vmatpush1.bf16.msra.mxu0 %v3982
        %5253 = vmatprep.subr.bf16.mxu0 %v4002
        %5254 = vmatpush1.bf16.msra.mxu0 %v4001
        %5255 = vmatprep.subr.bf16.mxu0 %v4021
        %5256 = vmatpush1.bf16.msra.mxu0 %v4020
        %5257 = vmatprep.subr.bf16.mxu0 %v4040
        %5258 = vmatpush1.bf16.msra.mxu0 %v4039
        %5259 = vmatprep.subr.bf16.mxu0 %v4059
        %5260 = vmatpush1.bf16.msra.mxu0 %v4058
        %5261 = vmatprep.mubr.bf16.mxu0 %v1167
        %5262 = vmatmul.mubr.bf16.gmra.mrb[0].mxu0 %v1166
        %v5263 = vpop.f32.mrb[0].mxu0
        %v5264 = vadd.f32 %v1843, %v5263
        %v5265 = vpop.f32.mrb[0].mxu0
        %v5266 = vadd.f32 %v1847, %v5265
        %v5267 = vpop.f32.mrb[0].mxu0
        %v5268 = vpop.f32.mrb[0].mxu0
        %5269 = vdwg.mxu0
        %5270 = vmatprep.subr.bf16.mxu0 %v4078
        %5271 = vmatpush1.bf16.msra.mxu0 %v4077
        %5272 = vmatprep.subr.bf16.mxu0 %v4097
        %5273 = vmatpush1.bf16.msra.mxu0 %v4096
        %5274 = vmatprep.subr.bf16.mxu0 %v4116
        %5275 = vmatpush1.bf16.msra.mxu0 %v4115
        %5276 = vmatprep.subr.bf16.mxu0 %v4135
        %5277 = vmatpush1.bf16.msra.mxu0 %v4134
        %5278 = vmatprep.subr.bf16.mxu0 %v4154
        %5279 = vmatpush1.bf16.msra.mxu0 %v4153
        %5280 = vmatprep.subr.bf16.mxu0 %v4173
        %5281 = vmatpush1.bf16.msra.mxu0 %v4172
        %5282 = vmatprep.subr.bf16.mxu0 %v4192
        %5283 = vmatpush1.bf16.msra.mxu0 %v4191
        %5284 = vmatprep.subr.bf16.mxu0 %v4211
        %5285 = vmatpush1.bf16.msra.mxu0 %v4210
        %5286 = vmatprep.subr.bf16.mxu0 %v4230
        %5287 = vmatpush1.bf16.msra.mxu0 %v4229
        %5288 = vmatprep.subr.bf16.mxu0 %v4249
        %5289 = vmatpush1.bf16.msra.mxu0 %v4248
        %5290 = vmatprep.subr.bf16.mxu0 %v4268
        %5291 = vmatpush1.bf16.msra.mxu0 %v4267
        %5292 = vmatprep.subr.bf16.mxu0 %v4287
        %5293 = vmatpush1.bf16.msra.mxu0 %v4286
        %5294 = vmatprep.subr.bf16.mxu0 %v4306
        %5295 = vmatpush1.bf16.msra.mxu0 %v4305
        %5296 = vmatprep.subr.bf16.mxu0 %v4325
        %5297 = vmatpush1.bf16.msra.mxu0 %v4324
        %5298 = vmatprep.subr.bf16.mxu0 %v4344
        %5299 = vmatpush1.bf16.msra.mxu0 %v4343
        %5300 = vmatprep.subr.bf16.mxu0 %v4363
        %5301 = vmatpush1.bf16.msra.mxu0 %v4362
        %5302 = vmatprep.mubr.bf16.mxu0 %v1169
        %5303 = vmatmul.mubr.bf16.gmra.mrb[0].mxu0 %v1168
        %v5304 = vpop.f32.mrb[0].mxu0
        %v5305 = vadd.f32 %v5264, %v5304
        %v5306 = vpop.f32.mrb[0].mxu0
        %v5307 = vadd.f32 %v5266, %v5306
        %v5308 = vpop.f32.mrb[0].mxu0
        %v5309 = vpop.f32.mrb[0].mxu0
        %5310 = vdwg.mxu0
        %5311 = vmatprep.subr.bf16.mxu0 %v3776
        %5312 = vmatpush1.bf16.msra.mxu0 %v3775
        %5313 = vmatprep.subr.bf16.mxu0 %v3795
        %5314 = vmatpush1.bf16.msra.mxu0 %v3794
        %5315 = vmatprep.subr.bf16.mxu0 %v3814
        %5316 = vmatpush1.bf16.msra.mxu0 %v3813
        %5317 = vmatprep.subr.bf16.mxu0 %v3833
        %5318 = vmatpush1.bf16.msra.mxu0 %v3832
        %5319 = vmatprep.subr.bf16.mxu0 %v3852
        %5320 = vmatpush1.bf16.msra.mxu0 %v3851
        %5321 = vmatprep.subr.bf16.mxu0 %v3871
        %5322 = vmatpush1.bf16.msra.mxu0 %v3870
        %5323 = vmatprep.subr.bf16.mxu0 %v3890
        %5324 = vmatpush1.bf16.msra.mxu0 %v3889
        %5325 = vmatprep.subr.bf16.mxu0 %v3909
        %5326 = vmatpush1.bf16.msra.mxu0 %v3908
        %5327 = vmatprep.subr.bf16.mxu0 %v3928
        %5328 = vmatpush1.bf16.msra.mxu0 %v3927
        %5329 = vmatprep.subr.bf16.mxu0 %v3947
        %5330 = vmatpush1.bf16.msra.mxu0 %v3946
        %5331 = vmatprep.subr.bf16.mxu0 %v3966
        %5332 = vmatpush1.bf16.msra.mxu0 %v3965
        %5333 = vmatprep.subr.bf16.mxu0 %v3985
        %5334 = vmatpush1.bf16.msra.mxu0 %v3984
        %5335 = vmatprep.subr.bf16.mxu0 %v4004
        %5336 = vmatpush1.bf16.msra.mxu0 %v4003
        %5337 = vmatprep.subr.bf16.mxu0 %v4023
        %5338 = vmatpush1.bf16.msra.mxu0 %v4022
        %5339 = vmatprep.subr.bf16.mxu0 %v4042
        %5340 = vmatpush1.bf16.msra.mxu0 %v4041
        %5341 = vmatprep.subr.bf16.mxu0 %v4061
        %5342 = vmatpush1.bf16.msra.mxu0 %v4060
        %5343 = vmatprep.mubr.bf16.mxu0 %v1167
        %5344 = vmatmul.mubr.bf16.gmra.mrb[0].mxu0 %v1166
        %v5345 = vpop.f32.mrb[0].mxu0
        %v5346 = vadd.f32 %v1851, %v5345
        %v5347 = vpop.f32.mrb[0].mxu0
        %v5348 = vadd.f32 %v1855, %v5347
        %v5349 = vpop.f32.mrb[0].mxu0
        %v5350 = vpop.f32.mrb[0].mxu0
        %5351 = vdwg.mxu0
        %5352 = vmatprep.subr.bf16.mxu0 %v4080
        %5353 = vmatpush1.bf16.msra.mxu0 %v4079
        %5354 = vmatprep.subr.bf16.mxu0 %v4099
        %5355 = vmatpush1.bf16.msra.mxu0 %v4098
        %5356 = vmatprep.subr.bf16.mxu0 %v4118
        %5357 = vmatpush1.bf16.msra.mxu0 %v4117
        %5358 = vmatprep.subr.bf16.mxu0 %v4137
        %5359 = vmatpush1.bf16.msra.mxu0 %v4136
        %5360 = vmatprep.subr.bf16.mxu0 %v4156
        %5361 = vmatpush1.bf16.msra.mxu0 %v4155
        %5362 = vmatprep.subr.bf16.mxu0 %v4175
        %5363 = vmatpush1.bf16.msra.mxu0 %v4174
        %5364 = vmatprep.subr.bf16.mxu0 %v4194
        %5365 = vmatpush1.bf16.msra.mxu0 %v4193
        %5366 = vmatprep.subr.bf16.mxu0 %v4213
        %5367 = vmatpush1.bf16.msra.mxu0 %v4212
        %5368 = vmatprep.subr.bf16.mxu0 %v4232
        %5369 = vmatpush1.bf16.msra.mxu0 %v4231
        %5370 = vmatprep.subr.bf16.mxu0 %v4251
        %5371 = vmatpush1.bf16.msra.mxu0 %v4250
        %5372 = vmatprep.subr.bf16.mxu0 %v4270
        %5373 = vmatpush1.bf16.msra.mxu0 %v4269
        %5374 = vmatprep.subr.bf16.mxu0 %v4289
        %5375 = vmatpush1.bf16.msra.mxu0 %v4288
        %5376 = vmatprep.subr.bf16.mxu0 %v4308
        %5377 = vmatpush1.bf16.msra.mxu0 %v4307
        %5378 = vmatprep.subr.bf16.mxu0 %v4327
        %5379 = vmatpush1.bf16.msra.mxu0 %v4326
        %5380 = vmatprep.subr.bf16.mxu0 %v4346
        %5381 = vmatpush1.bf16.msra.mxu0 %v4345
        %5382 = vmatprep.subr.bf16.mxu0 %v4365
        %5383 = vmatpush1.bf16.msra.mxu0 %v4364
        %5384 = vmatprep.mubr.bf16.mxu0 %v1169
        %5385 = vmatmul.mubr.bf16.gmra.mrb[0].mxu0 %v1168
        %v5386 = vpop.f32.mrb[0].mxu0
        %v5387 = vadd.f32 %v5346, %v5386
        %v5388 = vpop.f32.mrb[0].mxu0
        %v5389 = vadd.f32 %v5348, %v5388
        %v5390 = vpop.f32.mrb[0].mxu0
        %v5391 = vpop.f32.mrb[0].mxu0
        %5392 = vdwg.mxu0
        %5393 = vmatprep.subr.bf16.mxu0 %v3778
        %5394 = vmatpush1.bf16.msra.mxu0 %v3777
        %5395 = vmatprep.subr.bf16.mxu0 %v3797
        %5396 = vmatpush1.bf16.msra.mxu0 %v3796
        %5397 = vmatprep.subr.bf16.mxu0 %v3816
        %5398 = vmatpush1.bf16.msra.mxu0 %v3815
        %5399 = vmatprep.subr.bf16.mxu0 %v3835
        %5400 = vmatpush1.bf16.msra.mxu0 %v3834
        %5401 = vmatprep.subr.bf16.mxu0 %v3854
        %5402 = vmatpush1.bf16.msra.mxu0 %v3853
        %5403 = vmatprep.subr.bf16.mxu0 %v3873
        %5404 = vmatpush1.bf16.msra.mxu0 %v3872
        %5405 = vmatprep.subr.bf16.mxu0 %v3892
        %5406 = vmatpush1.bf16.msra.mxu0 %v3891
        %5407 = vmatprep.subr.bf16.mxu0 %v3911
        %5408 = vmatpush1.bf16.msra.mxu0 %v3910
        %5409 = vmatprep.subr.bf16.mxu0 %v3930
        %5410 = vmatpush1.bf16.msra.mxu0 %v3929
        %5411 = vmatprep.subr.bf16.mxu0 %v3949
        %5412 = vmatpush1.bf16.msra.mxu0 %v3948
        %5413 = vmatprep.subr.bf16.mxu0 %v3968
        %5414 = vmatpush1.bf16.msra.mxu0 %v3967
        %5415 = vmatprep.subr.bf16.mxu0 %v3987
        %5416 = vmatpush1.bf16.msra.mxu0 %v3986
        %5417 = vmatprep.subr.bf16.mxu0 %v4006
        %5418 = vmatpush1.bf16.msra.mxu0 %v4005
        %5419 = vmatprep.subr.bf16.mxu0 %v4025
        %5420 = vmatpush1.bf16.msra.mxu0 %v4024
        %5421 = vmatprep.subr.bf16.mxu0 %v4044
        %5422 = vmatpush1.bf16.msra.mxu0 %v4043
        %5423 = vmatprep.subr.bf16.mxu0 %v4063
        %5424 = vmatpush1.bf16.msra.mxu0 %v4062
        %5425 = vmatprep.mubr.bf16.mxu0 %v1167
        %5426 = vmatmul.mubr.bf16.gmra.mrb[0].mxu0 %v1166
        %v5427 = vpop.f32.mrb[0].mxu0
        %v5428 = vadd.f32 %v1859, %v5427
        %v5429 = vpop.f32.mrb[0].mxu0
        %v5430 = vadd.f32 %v1863, %v5429
        %v5431 = vpop.f32.mrb[0].mxu0
        %v5432 = vpop.f32.mrb[0].mxu0
        %5433 = vdwg.mxu0
        %5434 = vmatprep.subr.bf16.mxu0 %v4082
        %5435 = vmatpush1.bf16.msra.mxu0 %v4081
        %5436 = vmatprep.subr.bf16.mxu0 %v4101
        %5437 = vmatpush1.bf16.msra.mxu0 %v4100
        %5438 = vmatprep.subr.bf16.mxu0 %v4120
        %5439 = vmatpush1.bf16.msra.mxu0 %v4119
        %5440 = vmatprep.subr.bf16.mxu0 %v4139
        %5441 = vmatpush1.bf16.msra.mxu0 %v4138
        %5442 = vmatprep.subr.bf16.mxu0 %v4158
        %5443 = vmatpush1.bf16.msra.mxu0 %v4157
        %5444 = vmatprep.subr.bf16.mxu0 %v4177
        %5445 = vmatpush1.bf16.msra.mxu0 %v4176
        %5446 = vmatprep.subr.bf16.mxu0 %v4196
        %5447 = vmatpush1.bf16.msra.mxu0 %v4195
        %5448 = vmatprep.subr.bf16.mxu0 %v4215
        %5449 = vmatpush1.bf16.msra.mxu0 %v4214
        %5450 = vmatprep.subr.bf16.mxu0 %v4234
        %5451 = vmatpush1.bf16.msra.mxu0 %v4233
        %5452 = vmatprep.subr.bf16.mxu0 %v4253
        %5453 = vmatpush1.bf16.msra.mxu0 %v4252
        %5454 = vmatprep.subr.bf16.mxu0 %v4272
        %5455 = vmatpush1.bf16.msra.mxu0 %v4271
        %5456 = vmatprep.subr.bf16.mxu0 %v4291
        %5457 = vmatpush1.bf16.msra.mxu0 %v4290
        %5458 = vmatprep.subr.bf16.mxu0 %v4310
        %5459 = vmatpush1.bf16.msra.mxu0 %v4309
        %5460 = vmatprep.subr.bf16.mxu0 %v4329
        %5461 = vmatpush1.bf16.msra.mxu0 %v4328
        %5462 = vmatprep.subr.bf16.mxu0 %v4348
        %5463 = vmatpush1.bf16.msra.mxu0 %v4347
        %5464 = vmatprep.subr.bf16.mxu0 %v4367
        %5465 = vmatpush1.bf16.msra.mxu0 %v4366
        %5466 = vmatprep.mubr.bf16.mxu0 %v1169
        %5467 = vmatmul.mubr.bf16.gmra.mrb[0].mxu0 %v1168
        %v5468 = vpop.f32.mrb[0].mxu0
        %v5469 = vadd.f32 %v5428, %v5468
        %v5470 = vpop.f32.mrb[0].mxu0
        %v5471 = vadd.f32 %v5430, %v5470
        %v5472 = vpop.f32.mrb[0].mxu0
        %v5473 = vpop.f32.mrb[0].mxu0
        %5474 = vdwg.mxu0
        %5475 = vmatprep.subr.bf16.mxu0 %v3780
        %5476 = vmatpush1.bf16.msra.mxu0 %v3779
        %5477 = vmatprep.subr.bf16.mxu0 %v3799
        %5478 = vmatpush1.bf16.msra.mxu0 %v3798
        %5479 = vmatprep.subr.bf16.mxu0 %v3818
        %5480 = vmatpush1.bf16.msra.mxu0 %v3817
        %5481 = vmatprep.subr.bf16.mxu0 %v3837
        %5482 = vmatpush1.bf16.msra.mxu0 %v3836
        %5483 = vmatprep.subr.bf16.mxu0 %v3856
        %5484 = vmatpush1.bf16.msra.mxu0 %v3855
        %5485 = vmatprep.subr.bf16.mxu0 %v3875
        %5486 = vmatpush1.bf16.msra.mxu0 %v3874
        %5487 = vmatprep.subr.bf16.mxu0 %v3894
        %5488 = vmatpush1.bf16.msra.mxu0 %v3893
        %5489 = vmatprep.subr.bf16.mxu0 %v3913
        %5490 = vmatpush1.bf16.msra.mxu0 %v3912
        %5491 = vmatprep.subr.bf16.mxu0 %v3932
        %5492 = vmatpush1.bf16.msra.mxu0 %v3931
        %5493 = vmatprep.subr.bf16.mxu0 %v3951
        %5494 = vmatpush1.bf16.msra.mxu0 %v3950
        %5495 = vmatprep.subr.bf16.mxu0 %v3970
        %5496 = vmatpush1.bf16.msra.mxu0 %v3969
        %5497 = vmatprep.subr.bf16.mxu0 %v3989
        %5498 = vmatpush1.bf16.msra.mxu0 %v3988
        %5499 = vmatprep.subr.bf16.mxu0 %v4008
        %5500 = vmatpush1.bf16.msra.mxu0 %v4007
        %5501 = vmatprep.subr.bf16.mxu0 %v4027
        %5502 = vmatpush1.bf16.msra.mxu0 %v4026
        %5503 = vmatprep.subr.bf16.mxu0 %v4046
        %5504 = vmatpush1.bf16.msra.mxu0 %v4045
        %5505 = vmatprep.subr.bf16.mxu0 %v4065
        %5506 = vmatpush1.bf16.msra.mxu0 %v4064
        %5507 = vmatprep.mubr.bf16.mxu0 %v1167
        %5508 = vmatmul.mubr.bf16.gmra.mrb[0].mxu0 %v1166
        %v5509 = vpop.f32.mrb[0].mxu0
        %v5510 = vadd.f32 %v1867, %v5509
        %v5511 = vpop.f32.mrb[0].mxu0
        %v5512 = vadd.f32 %v1871, %v5511
        %v5513 = vpop.f32.mrb[0].mxu0
        %v5514 = vpop.f32.mrb[0].mxu0
        %5515 = vdwg.mxu0
        %5516 = vmatprep.subr.bf16.mxu0 %v4084
        %5517 = vmatpush1.bf16.msra.mxu0 %v4083
        %5518 = vmatprep.subr.bf16.mxu0 %v4103
        %5519 = vmatpush1.bf16.msra.mxu0 %v4102
        %5520 = vmatprep.subr.bf16.mxu0 %v4122
        %5521 = vmatpush1.bf16.msra.mxu0 %v4121
        %5522 = vmatprep.subr.bf16.mxu0 %v4141
        %5523 = vmatpush1.bf16.msra.mxu0 %v4140
        %5524 = vmatprep.subr.bf16.mxu0 %v4160
        %5525 = vmatpush1.bf16.msra.mxu0 %v4159
        %5526 = vmatprep.subr.bf16.mxu0 %v4179
        %5527 = vmatpush1.bf16.msra.mxu0 %v4178
        %5528 = vmatprep.subr.bf16.mxu0 %v4198
        %5529 = vmatpush1.bf16.msra.mxu0 %v4197
        %5530 = vmatprep.subr.bf16.mxu0 %v4217
        %5531 = vmatpush1.bf16.msra.mxu0 %v4216
        %5532 = vmatprep.subr.bf16.mxu0 %v4236
        %5533 = vmatpush1.bf16.msra.mxu0 %v4235
        %5534 = vmatprep.subr.bf16.mxu0 %v4255
        %5535 = vmatpush1.bf16.msra.mxu0 %v4254
        %5536 = vmatprep.subr.bf16.mxu0 %v4274
        %5537 = vmatpush1.bf16.msra.mxu0 %v4273
        %5538 = vmatprep.subr.bf16.mxu0 %v4293
        %5539 = vmatpush1.bf16.msra.mxu0 %v4292
        %5540 = vmatprep.subr.bf16.mxu0 %v4312
        %5541 = vmatpush1.bf16.msra.mxu0 %v4311
        %5542 = vmatprep.subr.bf16.mxu0 %v4331
        %5543 = vmatpush1.bf16.msra.mxu0 %v4330
        %5544 = vmatprep.subr.bf16.mxu0 %v4350
        %5545 = vmatpush1.bf16.msra.mxu0 %v4349
        %5546 = vmatprep.subr.bf16.mxu0 %v4369
        %5547 = vmatpush1.bf16.msra.mxu0 %v4368
        %5548 = vmatprep.mubr.bf16.mxu0 %v1169
        %5549 = vmatmul.mubr.bf16.gmra.mrb[0].mxu0 %v1168
        %v5550 = vpop.f32.mrb[0].mxu0
        %v5551 = vadd.f32 %v5510, %v5550
        %v5552 = vpop.f32.mrb[0].mxu0
        %v5553 = vadd.f32 %v5512, %v5552
        %v5554 = vpop.f32.mrb[0].mxu0
        %v5555 = vpop.f32.mrb[0].mxu0
        %5556 = vdwg.mxu0
        %5557 = vmatprep.subr.bf16.mxu0 %v3782
        %5558 = vmatpush1.bf16.msra.mxu0 %v3781
        %5559 = vmatprep.subr.bf16.mxu0 %v3801
        %5560 = vmatpush1.bf16.msra.mxu0 %v3800
        %5561 = vmatprep.subr.bf16.mxu0 %v3820
        %5562 = vmatpush1.bf16.msra.mxu0 %v3819
        %5563 = vmatprep.subr.bf16.mxu0 %v3839
        %5564 = vmatpush1.bf16.msra.mxu0 %v3838
        %5565 = vmatprep.subr.bf16.mxu0 %v3858
        %5566 = vmatpush1.bf16.msra.mxu0 %v3857
        %5567 = vmatprep.subr.bf16.mxu0 %v3877
        %5568 = vmatpush1.bf16.msra.mxu0 %v3876
        %5569 = vmatprep.subr.bf16.mxu0 %v3896
        %5570 = vmatpush1.bf16.msra.mxu0 %v3895
        %5571 = vmatprep.subr.bf16.mxu0 %v3915
        %5572 = vmatpush1.bf16.msra.mxu0 %v3914
        %5573 = vmatprep.subr.bf16.mxu0 %v3934
        %5574 = vmatpush1.bf16.msra.mxu0 %v3933
        %5575 = vmatprep.subr.bf16.mxu0 %v3953
        %5576 = vmatpush1.bf16.msra.mxu0 %v3952
        %5577 = vmatprep.subr.bf16.mxu0 %v3972
        %5578 = vmatpush1.bf16.msra.mxu0 %v3971
        %5579 = vmatprep.subr.bf16.mxu0 %v3991
        %5580 = vmatpush1.bf16.msra.mxu0 %v3990
        %5581 = vmatprep.subr.bf16.mxu0 %v4010
        %5582 = vmatpush1.bf16.msra.mxu0 %v4009
        %5583 = vmatprep.subr.bf16.mxu0 %v4029
        %5584 = vmatpush1.bf16.msra.mxu0 %v4028
        %5585 = vmatprep.subr.bf16.mxu0 %v4048
        %5586 = vmatpush1.bf16.msra.mxu0 %v4047
        %5587 = vmatprep.subr.bf16.mxu0 %v4067
        %5588 = vmatpush1.bf16.msra.mxu0 %v4066
        %5589 = vmatprep.mubr.bf16.mxu0 %v1167
        %5590 = vmatmul.mubr.bf16.gmra.mrb[0].mxu0 %v1166
        %v5591 = vpop.f32.mrb[0].mxu0
        %v5592 = vadd.f32 %v1875, %v5591
        %v5593 = vpop.f32.mrb[0].mxu0
        %v5594 = vadd.f32 %v1879, %v5593
        %v5595 = vpop.f32.mrb[0].mxu0
        %v5596 = vpop.f32.mrb[0].mxu0
        %5597 = vdwg.mxu0
        %5598 = vmatprep.subr.bf16.mxu0 %v4086
        %5599 = vmatpush1.bf16.msra.mxu0 %v4085
        %5600 = vmatprep.subr.bf16.mxu0 %v4105
        %5601 = vmatpush1.bf16.msra.mxu0 %v4104
        %5602 = vmatprep.subr.bf16.mxu0 %v4124
        %5603 = vmatpush1.bf16.msra.mxu0 %v4123
        %5604 = vmatprep.subr.bf16.mxu0 %v4143
        %5605 = vmatpush1.bf16.msra.mxu0 %v4142
        %5606 = vmatprep.subr.bf16.mxu0 %v4162
        %5607 = vmatpush1.bf16.msra.mxu0 %v4161
        %5608 = vmatprep.subr.bf16.mxu0 %v4181
        %5609 = vmatpush1.bf16.msra.mxu0 %v4180
        %5610 = vmatprep.subr.bf16.mxu0 %v4200
        %5611 = vmatpush1.bf16.msra.mxu0 %v4199
        %5612 = vmatprep.subr.bf16.mxu0 %v4219
        %5613 = vmatpush1.bf16.msra.mxu0 %v4218
        %5614 = vmatprep.subr.bf16.mxu0 %v4238
        %5615 = vmatpush1.bf16.msra.mxu0 %v4237
        %5616 = vmatprep.subr.bf16.mxu0 %v4257
        %5617 = vmatpush1.bf16.msra.mxu0 %v4256
        %5618 = vmatprep.subr.bf16.mxu0 %v4276
        %5619 = vmatpush1.bf16.msra.mxu0 %v4275
        %5620 = vmatprep.subr.bf16.mxu0 %v4295
        %5621 = vmatpush1.bf16.msra.mxu0 %v4294
        %5622 = vmatprep.subr.bf16.mxu0 %v4314
        %5623 = vmatpush1.bf16.msra.mxu0 %v4313
        %5624 = vmatprep.subr.bf16.mxu0 %v4333
        %5625 = vmatpush1.bf16.msra.mxu0 %v4332
        %5626 = vmatprep.subr.bf16.mxu0 %v4352
        %5627 = vmatpush1.bf16.msra.mxu0 %v4351
        %5628 = vmatprep.subr.bf16.mxu0 %v4371
        %5629 = vmatpush1.bf16.msra.mxu0 %v4370
        %5630 = vmatprep.mubr.bf16.mxu0 %v1169
        %5631 = vmatmul.mubr.bf16.gmra.mrb[0].mxu0 %v1168
        %v5632 = vpop.f32.mrb[0].mxu0
        %v5633 = vadd.f32 %v5592, %v5632
        %v5634 = vpop.f32.mrb[0].mxu0
        %v5635 = vadd.f32 %v5594, %v5634
        %v5636 = vpop.f32.mrb[0].mxu0
        %v5637 = vpop.f32.mrb[0].mxu0
        %5638 = vdwg.mxu0
        %5639 = vmatprep.subr.bf16.mxu0 %v3784
        %5640 = vmatpush1.bf16.msra.mxu0 %v3783
        %5641 = vmatprep.subr.bf16.mxu0 %v3803
        %5642 = vmatpush1.bf16.msra.mxu0 %v3802
        %5643 = vmatprep.subr.bf16.mxu0 %v3822
        %5644 = vmatpush1.bf16.msra.mxu0 %v3821
        %5645 = vmatprep.subr.bf16.mxu0 %v3841
        %5646 = vmatpush1.bf16.msra.mxu0 %v3840
        %5647 = vmatprep.subr.bf16.mxu0 %v3860
        %5648 = vmatpush1.bf16.msra.mxu0 %v3859
        %5649 = vmatprep.subr.bf16.mxu0 %v3879
        %5650 = vmatpush1.bf16.msra.mxu0 %v3878
        %5651 = vmatprep.subr.bf16.mxu0 %v3898
        %5652 = vmatpush1.bf16.msra.mxu0 %v3897
        %5653 = vmatprep.subr.bf16.mxu0 %v3917
        %5654 = vmatpush1.bf16.msra.mxu0 %v3916
        %5655 = vmatprep.subr.bf16.mxu0 %v3936
        %5656 = vmatpush1.bf16.msra.mxu0 %v3935
        %5657 = vmatprep.subr.bf16.mxu0 %v3955
        %5658 = vmatpush1.bf16.msra.mxu0 %v3954
        %5659 = vmatprep.subr.bf16.mxu0 %v3974
        %5660 = vmatpush1.bf16.msra.mxu0 %v3973
        %5661 = vmatprep.subr.bf16.mxu0 %v3993
        %5662 = vmatpush1.bf16.msra.mxu0 %v3992
        %5663 = vmatprep.subr.bf16.mxu0 %v4012
        %5664 = vmatpush1.bf16.msra.mxu0 %v4011
        %5665 = vmatprep.subr.bf16.mxu0 %v4031
        %5666 = vmatpush1.bf16.msra.mxu0 %v4030
        %5667 = vmatprep.subr.bf16.mxu0 %v4050
        %5668 = vmatpush1.bf16.msra.mxu0 %v4049
        %5669 = vmatprep.subr.bf16.mxu0 %v4069
        %5670 = vmatpush1.bf16.msra.mxu0 %v4068
        %5671 = vmatprep.mubr.bf16.mxu0 %v1167
        %5672 = vmatmul.mubr.bf16.gmra.mrb[0].mxu0 %v1166
        %v5673 = vpop.f32.mrb[0].mxu0
        %v5674 = vadd.f32 %v1883, %v5673
        %v5675 = vpop.f32.mrb[0].mxu0
        %v5676 = vadd.f32 %v1887, %v5675
        %v5677 = vpop.f32.mrb[0].mxu0
        %v5678 = vpop.f32.mrb[0].mxu0
        %5679 = vdwg.mxu0
        %5680 = vmatprep.subr.bf16.mxu0 %v4088
        %5681 = vmatpush1.bf16.msra.mxu0 %v4087
        %5682 = vmatprep.subr.bf16.mxu0 %v4107
        %5683 = vmatpush1.bf16.msra.mxu0 %v4106
        %5684 = vmatprep.subr.bf16.mxu0 %v4126
        %5685 = vmatpush1.bf16.msra.mxu0 %v4125
        %5686 = vmatprep.subr.bf16.mxu0 %v4145
        %5687 = vmatpush1.bf16.msra.mxu0 %v4144
        %5688 = vmatprep.subr.bf16.mxu0 %v4164
        %5689 = vmatpush1.bf16.msra.mxu0 %v4163
        %5690 = vmatprep.subr.bf16.mxu0 %v4183
        %5691 = vmatpush1.bf16.msra.mxu0 %v4182
        %5692 = vmatprep.subr.bf16.mxu0 %v4202
        %5693 = vmatpush1.bf16.msra.mxu0 %v4201
        %5694 = vmatprep.subr.bf16.mxu0 %v4221
        %5695 = vmatpush1.bf16.msra.mxu0 %v4220
        %5696 = vmatprep.subr.bf16.mxu0 %v4240
        %5697 = vmatpush1.bf16.msra.mxu0 %v4239
        %5698 = vmatprep.subr.bf16.mxu0 %v4259
        %5699 = vmatpush1.bf16.msra.mxu0 %v4258
        %5700 = vmatprep.subr.bf16.mxu0 %v4278
        %5701 = vmatpush1.bf16.msra.mxu0 %v4277
        %5702 = vmatprep.subr.bf16.mxu0 %v4297
        %5703 = vmatpush1.bf16.msra.mxu0 %v4296
        %5704 = vmatprep.subr.bf16.mxu0 %v4316
        %5705 = vmatpush1.bf16.msra.mxu0 %v4315
        %5706 = vmatprep.subr.bf16.mxu0 %v4335
        %5707 = vmatpush1.bf16.msra.mxu0 %v4334
        %5708 = vmatprep.subr.bf16.mxu0 %v4354
        %5709 = vmatpush1.bf16.msra.mxu0 %v4353
        %5710 = vmatprep.subr.bf16.mxu0 %v4373
        %5711 = vmatpush1.bf16.msra.mxu0 %v4372
        %5712 = vmatprep.mubr.bf16.mxu0 %v1169
        %5713 = vmatmul.mubr.bf16.gmra.mrb[0].mxu0 %v1168
        %v5714 = vpop.f32.mrb[0].mxu0
        %v5715 = vadd.f32 %v5674, %v5714
        %v5716 = vpop.f32.mrb[0].mxu0
        %v5717 = vadd.f32 %v5676, %v5716
        %v5718 = vpop.f32.mrb[0].mxu0
        %v5719 = vpop.f32.mrb[0].mxu0
        %5720 = vdwg.mxu0
        %5721 = vmatprep.subr.bf16.mxu0 0
        %5722 = vmatpush1.bf16.msra.mxu0 %v3785
        %5723 = vmatprep.subr.bf16.mxu0 0
        %5724 = vmatpush1.bf16.msra.mxu0 %v3804
        %5725 = vmatprep.subr.bf16.mxu0 0
        %5726 = vmatpush1.bf16.msra.mxu0 %v3823
        %5727 = vmatprep.subr.bf16.mxu0 0
        %5728 = vmatpush1.bf16.msra.mxu0 %v3842
        %5729 = vmatprep.subr.bf16.mxu0 0
        %5730 = vmatpush1.bf16.msra.mxu0 %v3861
        %5731 = vmatprep.subr.bf16.mxu0 0
        %5732 = vmatpush1.bf16.msra.mxu0 %v3880
        %5733 = vmatprep.subr.bf16.mxu0 0
        %5734 = vmatpush1.bf16.msra.mxu0 %v3899
        %5735 = vmatprep.subr.bf16.mxu0 0
        %5736 = vmatpush1.bf16.msra.mxu0 %v3918
        %5737 = vmatprep.subr.bf16.mxu0 0
        %5738 = vmatpush1.bf16.msra.mxu0 %v3937
        %5739 = vmatprep.subr.bf16.mxu0 0
        %5740 = vmatpush1.bf16.msra.mxu0 %v3956
        %5741 = vmatprep.subr.bf16.mxu0 0
        %5742 = vmatpush1.bf16.msra.mxu0 %v3975
        %5743 = vmatprep.subr.bf16.mxu0 0
        %5744 = vmatpush1.bf16.msra.mxu0 %v3994
        %5745 = vmatprep.subr.bf16.mxu0 0
        %5746 = vmatpush1.bf16.msra.mxu0 %v4013
        %5747 = vmatprep.subr.bf16.mxu0 0
        %5748 = vmatpush1.bf16.msra.mxu0 %v4032
        %5749 = vmatprep.subr.bf16.mxu0 0
        %5750 = vmatpush1.bf16.msra.mxu0 %v4051
        %5751 = vmatprep.subr.bf16.mxu0 0
        %5752 = vmatpush1.bf16.msra.mxu0 %v4070
        %5753 = vmatprep.mubr.bf16.mxu0 %v1167
        %5754 = vmatmul.mubr.bf16.gmra.mrb[0].mxu0 %v1166
        %v5755 = vpop.f32.mrb[0].mxu0
        %v5756 = vadd.f32 %v1891, %v5755
        %v5757 = vpop.f32.mrb[0].mxu0
        %v5758 = vpop.f32.mrb[0].mxu0
        %v5759 = vpop.f32.mrb[0].mxu0
        %5760 = vdwg.mxu0
        %5761 = vmatprep.subr.bf16.mxu0 0
        %5762 = vmatpush1.bf16.msra.mxu0 %v4089
        %5763 = vmatprep.subr.bf16.mxu0 0
        %5764 = vmatpush1.bf16.msra.mxu0 %v4108
        %5765 = vmatprep.subr.bf16.mxu0 0
        %5766 = vmatpush1.bf16.msra.mxu0 %v4127
        %5767 = vmatprep.subr.bf16.mxu0 0
        %5768 = vmatpush1.bf16.msra.mxu0 %v4146
        %5769 = vmatprep.subr.bf16.mxu0 0
        %5770 = vmatpush1.bf16.msra.mxu0 %v4165
        %5771 = vmatprep.subr.bf16.mxu0 0
        %5772 = vmatpush1.bf16.msra.mxu0 %v4184
        %5773 = vmatprep.subr.bf16.mxu0 0
        %5774 = vmatpush1.bf16.msra.mxu0 %v4203
        %5775 = vmatprep.subr.bf16.mxu0 0
        %5776 = vmatpush1.bf16.msra.mxu0 %v4222
        %5777 = vmatprep.subr.bf16.mxu0 0
        %5778 = vmatpush1.bf16.msra.mxu0 %v4241
        %5779 = vmatprep.subr.bf16.mxu0 0
        %5780 = vmatpush1.bf16.msra.mxu0 %v4260
        %5781 = vmatprep.subr.bf16.mxu0 0
        %5782 = vmatpush1.bf16.msra.mxu0 %v4279
        %5783 = vmatprep.subr.bf16.mxu0 0
        %5784 = vmatpush1.bf16.msra.mxu0 %v4298
        %5785 = vmatprep.subr.bf16.mxu0 0
        %5786 = vmatpush1.bf16.msra.mxu0 %v4317
        %5787 = vmatprep.subr.bf16.mxu0 0
        %5788 = vmatpush1.bf16.msra.mxu0 %v4336
        %5789 = vmatprep.subr.bf16.mxu0 0
        %5790 = vmatpush1.bf16.msra.mxu0 %v4355
        %5791 = vmatprep.subr.bf16.mxu0 0
        %5792 = vmatpush1.bf16.msra.mxu0 %v4374
        %5793 = vmatprep.mubr.bf16.mxu0 %v1169
        %5794 = vmatmul.mubr.bf16.gmra.mrb[0].mxu0 %v1168
        %v5795 = vpop.f32.mrb[0].mxu0
        %v5796 = vadd.f32 %v5756, %v5795
        %v5797 = vpop.f32.mrb[0].mxu0
        %v5798 = vpop.f32.mrb[0].mxu0
        %v5799 = vpop.f32.mrb[0].mxu0
        %5800 = vdwg.mxu0
        %v5801 = vsub.f32 0.0, %v5059
        %v5802 = vsub.f32 0.0, %v5061
        %v5803 = vsub.f32 0.0, %v5141
        %v5804 = vsub.f32 0.0, %v5143
        %v5805 = vsub.f32 0.0, %v5223
        %v5806 = vsub.f32 0.0, %v5225
        %v5807 = vsub.f32 0.0, %v5305
        %v5808 = vsub.f32 0.0, %v5307
        %v5809 = vsub.f32 0.0, %v5387
        %v5810 = vsub.f32 0.0, %v5389
        %v5811 = vsub.f32 0.0, %v5469
        %v5812 = vsub.f32 0.0, %v5471
        %v5813 = vsub.f32 0.0, %v5551
        %v5814 = vsub.f32 0.0, %v5553
        %v5815 = vsub.f32 0.0, %v5633
        %v5816 = vsub.f32 0.0, %v5635
        %v5817 = vsub.f32 0.0, %v5715
        %v5818 = vsub.f32 0.0, %v5717
        %v5819 = vsub.f32 0.0, %v5796
        %v5820 = vmul.f32 %v5801, 1.442695
        %v5821 = vpow.pop %v5820
        %v5822 = vmul.f32 %v5802, 1.442695
        %v5823 = vpow.pop %v5822
        %v5824 = vmul.f32 %v5803, 1.442695
        %v5825 = vpow.pop %v5824
        %v5826 = vmul.f32 %v5804, 1.442695
        %v5827 = vpow.pop %v5826
        %v5828 = vmul.f32 %v5805, 1.442695
        %v5829 = vpow.pop %v5828
        %v5830 = vmul.f32 %v5806, 1.442695
        %v5831 = vpow.pop %v5830
        %v5832 = vmul.f32 %v5807, 1.442695
        %v5833 = vpow.pop %v5832
        %v5834 = vmul.f32 %v5808, 1.442695
        %v5835 = vpow.pop %v5834
        %v5836 = vmul.f32 %v5809, 1.442695
        %v5837 = vpow.pop %v5836
        %v5838 = vmul.f32 %v5810, 1.442695
        %v5839 = vpow.pop %v5838
        %v5840 = vmul.f32 %v5811, 1.442695
        %v5841 = vpow.pop %v5840
        %v5842 = vmul.f32 %v5812, 1.442695
        %v5843 = vpow.pop %v5842
        %v5844 = vmul.f32 %v5813, 1.442695
        %v5845 = vpow.pop %v5844
        %v5846 = vmul.f32 %v5814, 1.442695
        %v5847 = vpow.pop %v5846
        %v5848 = vmul.f32 %v5815, 1.442695
        %v5849 = vpow.pop %v5848
        %v5850 = vmul.f32 %v5816, 1.442695
        %v5851 = vpow.pop %v5850
        %v5852 = vmul.f32 %v5817, 1.442695
        %v5853 = vpow.pop %v5852
        %v5854 = vmul.f32 %v5818, 1.442695
        %v5855 = vpow.pop %v5854
        %v5856 = vmul.f32 %v5819, 1.442695
        %v5857 = vpow.pop %v5856
        %v5858 = vadd.f32 %v5821, 1.0
        %v5859 = vadd.f32 %v5823, 1.0
        %v5860 = vadd.f32 %v5825, 1.0
        %v5861 = vadd.f32 %v5827, 1.0
        %v5862 = vadd.f32 %v5829, 1.0
        %v5863 = vadd.f32 %v5831, 1.0
        %v5864 = vadd.f32 %v5833, 1.0
        %v5865 = vadd.f32 %v5835, 1.0
        %v5866 = vadd.f32 %v5837, 1.0
        %v5867 = vadd.f32 %v5839, 1.0
        %v5868 = vadd.f32 %v5841, 1.0
        %v5869 = vadd.f32 %v5843, 1.0
        %v5870 = vadd.f32 %v5845, 1.0
        %v5871 = vadd.f32 %v5847, 1.0
        %v5872 = vadd.f32 %v5849, 1.0
        %v5873 = vadd.f32 %v5851, 1.0
        %v5874 = vadd.f32 %v5853, 1.0
        %v5875 = vadd.f32 %v5855, 1.0
        %v5876 = vadd.f32 %v5857, 1.0
        %v5877 = vrcp.pop %v5858
        %v5878 = vrcp.pop %v5859
        %v5879 = vrcp.pop %v5860
        %v5880 = vrcp.pop %v5861
        %v5881 = vrcp.pop %v5862
        %v5882 = vrcp.pop %v5863
        %v5883 = vrcp.pop %v5864
        %v5884 = vrcp.pop %v5865
        %v5885 = vrcp.pop %v5866
        %v5886 = vrcp.pop %v5867
        %v5887 = vrcp.pop %v5868
        %v5888 = vrcp.pop %v5869
        %v5889 = vrcp.pop %v5870
        %v5890 = vrcp.pop %v5871
        %v5891 = vrcp.pop %v5872
        %v5892 = vrcp.pop %v5873
        %v5893 = vrcp.pop %v5874
        %v5894 = vrcp.pop %v5875
        %v5895 = vrcp.pop %v5876
        %5896 = vst [vmem:[%s469] sm:$0xff] %v5877
        %5897 = vst [vmem:[%s469 + $0x8] sm:$0xff] %v5878
        %5898 = vst [vmem:[%s469 + $0x10] sm:$0xff] %v5879
        %5899 = vst [vmem:[%s469 + $0x18] sm:$0xff] %v5880
        %5900 = vst [vmem:[%s469 + $0x20] sm:$0xff] %v5881
        %5901 = vst [vmem:[%s469 + $0x28] sm:$0xff] %v5882
        %5902 = vst [vmem:[%s469 + $0x30] sm:$0xff] %v5883
        %5903 = vst [vmem:[%s469 + $0x38] sm:$0xff] %v5884
        %5904 = vst [vmem:[%s469 + $0x40] sm:$0xff] %v5885
        %5905 = vst [vmem:[%s469 + $0x48] sm:$0xff] %v5886
        %5906 = vst [vmem:[%s469 + $0x50] sm:$0xff] %v5887
        %5907 = vst [vmem:[%s469 + $0x58] sm:$0xff] %v5888
        %5908 = vst [vmem:[%s469 + $0x60] sm:$0xff] %v5889
        %5909 = vst [vmem:[%s469 + $0x68] sm:$0xff] %v5890
        %5910 = vst [vmem:[%s469 + $0x70] sm:$0xff] %v5891
        %5911 = vst [vmem:[%s469 + $0x78] sm:$0xff] %v5892
        %5912 = vst [vmem:[%s469 + $0x80] sm:$0xff] %v5893
        %5913 = vst [vmem:[%s469 + $0x88] sm:$0xff] %v5894
        %5914 = vst [vmem:[%s469 + $0x90] sm:$0xff] %v5895
        %s5915 = sand.u32 %s222, 1
        %s5916 = scalar_lea.sflag [#allocation4], %s5915
        %s5917 = sand.u32 %s222, 1
        %s5918 = smul.addr %s5917, 152
        %s5919 = scalar_lea.vmem [#allocation16], %s5918
        %s5920 = sand.u32 %s248, 1
        %s5921 = scalar_lea.sflag [#allocation18], %s5920
        %s5922 = sand.u32 %s248, 1
        %s5923 = smul.addr %s5922, 8
        %s5924 = scalar_lea.vmem [#allocation17], %s5923
        // Predicated region
        $region85: #{tpu_custom_call.1} parent=51 // pred_check
          %p5925 = pneg %p232
        $region86: #{tpu_custom_call.1} parent=51 // pred_check_branch
          %5927 = sbr.rel (%p5925) target = $region88
        $region87: #{tpu_custom_call.1} parent=51 // pred_region
          %s5929 = ssub.s32 2432, 2432
          %5930 = vsyncadd %s5916, %s5929
          %s5931 = smul.addr %s36, 19
          %s5932 = smul.addr %s5931, 128
          %s5933 = scalar_lea.hbm %s8, %s5932
          %s5935 = sshll.u32 %s5919, 4
          %s5936 = int_to_ptr.vmem [resolvable:$true] %s5935
          %5938 = dma.vmem_to_hbm [thread:$0]  %s5936, 2432, %s5933, %s5916
        $region88: #{tpu_custom_call.1} parent=51 // pred_fallthru
          _
        // Predicated region
        $region89: #{tpu_custom_call.1} parent=51 // pred_check
          %p5939 = pneg %p258
        $region90: #{tpu_custom_call.1} parent=51 // pred_check_branch
          %5941 = sbr.rel (%p5939) target = $region92
        $region91: #{tpu_custom_call.1} parent=51 // pred_region
          %s5943 = ssub.s32 128, 128
          %5944 = vsyncadd %s5921, %s5943
          %s5945 = smul.addr %s36, 128
          %s5946 = scalar_lea.hbm %s9, %s5945
          %s5948 = sshll.u32 %s5924, 4
          %s5949 = int_to_ptr.vmem [resolvable:$true] %s5948
          %5951 = dma.vmem_to_hbm [thread:$0]  %s5949, 128, %s5946, %s5921
        $region92: #{tpu_custom_call.1} parent=51 // pred_fallthru
          _
      $region52: #{tpu_custom_call.1} parent=5 // pred_fallthru
        _
      %p5952 = scmp.le.s32.totalorder 2, %s31
      // Predicated region
      $region93: #{tpu_custom_call.1} parent=5 // pred_check
        %p5953 = pneg %p5952
      $region94: #{tpu_custom_call.1} parent=5 // pred_check_branch
        %5955 = sbr.rel (%p5953) target = $region96
      $region95: #{tpu_custom_call.1} parent=5 // pred_region
        %s5956 = ssub.s32 %s31, 2
        // Predicated region
        $region97: #{tpu_custom_call.1} parent=95 // pred_check
          %p5957 = pneg %p238
        $region98: #{tpu_custom_call.1} parent=95 // pred_check_branch
          %5959 = sbr.rel (%p5957) target = $region100
        $region99: #{tpu_custom_call.1} parent=95 // pred_region
          %s5960 = sand.u32 %s223, 1
          %s5961 = scalar_lea.sflag [#allocation4], %s5960
          %s5962 = sand.u32 %s223, 1
          %s5963 = smul.addr %s5962, 152
          %s5964 = scalar_lea.vmem [#allocation16], %s5963
          %5965 = dma.done %s5961, 2432
        $region100: #{tpu_custom_call.1} parent=95 // pred_fallthru
          _
        // Predicated region
        $region101: #{tpu_custom_call.1} parent=95 // pred_check
          %p5966 = pneg %p264
        $region102: #{tpu_custom_call.1} parent=95 // pred_check_branch
          %5968 = sbr.rel (%p5966) target = $region104
        $region103: #{tpu_custom_call.1} parent=95 // pred_region
          %s5969 = sand.u32 %s249, 1
          %s5970 = scalar_lea.sflag [#allocation18], %s5969
          %s5971 = sand.u32 %s249, 1
          %s5972 = smul.addr %s5971, 8
          %s5973 = scalar_lea.vmem [#allocation17], %s5972
          %5974 = dma.done %s5970, 128
        $region104: #{tpu_custom_call.1} parent=95 // pred_fallthru
          _
      $region96: #{tpu_custom_call.1} parent=5 // pred_fallthru
        _
    $region6: #{tpu_custom_call.1} parent=1 // loop_footer
      %s35 = sadd.s32 1, %s31
    $region7: #{tpu_custom_call.1} parent=1 // loop_footer_branch
      %30 = sbr.rel target = $region3
    $region8: #{tpu_custom_call.1} parent=1 // loop_exit
      _
    %5975 = vsyncpa [#allocation3], 1
    %s5976 = scalar_lea.sflag [#allocation3], 1
    %5977 = vsyncpa %s5976, 1
    %5978 = vsyncpa [#allocation6], 1
    %s5979 = scalar_lea.sflag [#allocation6], 1
    %5980 = vsyncpa %s5979, 1
    %5981 = vsyncpa [#allocation9], 1
    %5982 = vsyncpa [#allocation12], 1
    %5983 = vsyncpa [#allocation15], 1
    %5984 = vsyncpa [#allocation4], 1
    %s5985 = scalar_lea.sflag [#allocation4], 1
    %5986 = vsyncpa %s5985, 1
    %5987 = vsyncpa [#allocation18], 1
    %s5988 = scalar_lea.sflag [#allocation18], 1
    %5989 = vsyncpa %s5988, 1

</llo_original>
